<compile_context>
chip_gen: v5e
topology: v5e:2x2
jax: 0.10.0
libtpu: 0.0.40
codegen_flags: <defaults>
</compile_context>

<pallas_src>
import functools

import jax
import jax.numpy as jnp
import numpy as np
from jax.experimental import pallas as pl
from jax.experimental.pallas import tpu as pltpu

_VMEM_LIMIT = 48 * 1024 * 1024  # fits v5e/v6e/v7x (<= 64 MiB physical on v7x)


def _round_up(x, m):
    return (x + m - 1) // m * m


def _pick_row_tile(n, target, align=16):
    """Largest divisor of n that is <= target and a multiple of `align`.
    Falls back to n (single full block) if no aligned divisor exists."""
    best = None
    d = align
    while d <= min(n, target):
        if n % d == 0:
            best = d
        d += align
    return best if best is not None else n


def _largest_divisor_leq(n, target):
    for d in range(min(n, target), 0, -1):
        if n % d == 0:
            return d
    return 1


# ----------------------------------------------------------------------------
# Kernel 1: plain row-tiled linear (+ReLU) -- used for conv1 over im2col rows
# ----------------------------------------------------------------------------
def _linear_kernel(x_ref, w_ref, b_ref, o_ref, *, act):
    y = jnp.dot(x_ref[...], w_ref[...],
                preferred_element_type=jnp.float32) + b_ref[...]
    if act == "relu":
        y = jnp.maximum(y, 0.0)
    o_ref[...] = y.astype(o_ref.dtype)


def linear_pallas(x, w, b, act=None, out_dtype=jnp.float32, row_tile=512):
    """(N, K) @ (K, M) + b, optional ReLU.  Row-tiled, weight resident.
    N must be a multiple of 16 (guaranteed by the batch-padded wrapper)."""
    N, K = x.shape
    M = w.shape[1]
    rt = _pick_row_tile(N, row_tile)
    kernel = functools.partial(_linear_kernel, act=act)
    return pl.pallas_call(
        kernel,
        out_shape=jax.ShapeDtypeStruct((N, M), out_dtype),
        grid=(N // rt,),
        in_specs=[
            pl.BlockSpec((rt, K), lambda i: (i, 0)),
            pl.BlockSpec((K, M), lambda i: (0, 0)),
            pl.BlockSpec((1, M), lambda i: (0, 0)),
        ],
        out_specs=pl.BlockSpec((rt, M), lambda i: (i, 0)),
        compiler_params=pltpu.CompilerParams(
            dimension_semantics=("parallel",),
            vmem_limit_bytes=_VMEM_LIMIT),
    )(x, w, b.reshape(1, M).astype(jnp.float32))


# ----------------------------------------------------------------------------
# Kernel 2: fused conv2 + FC(+ReLU) + LSTM input projection (gates_x)
#   gates_x = relu( sum_p relu(p2[p] @ w2 + b2) @ fc_w[p] + fc_b ) @ W_ih_fc
#             + act @ W_ih_act + b_lstm
#   Grid: (row blocks "parallel", conv2-position chunks "arbitrary") with an
#   f32 VMEM accumulator for the FC contraction.
# ----------------------------------------------------------------------------
def _conv2_fc_gates_kernel(p2_ref, act_ref, w2_ref, b2_ref, fcw_ref, fcb_ref,
                           wihfc_ref, wihact_ref, blstm_ref,
                           gates_ref, fcacc_ref, *, p2_tile):
    pc = pl.program_id(1)

    @pl.when(pc == 0)
    def _():
        fcacc_ref[...] = jnp.zeros_like(fcacc_ref)

    acc = fcacc_ref[...]
    w2 = w2_ref[...]
    b2 = b2_ref[...]
    for p in range(p2_tile):                       # static unroll (small)
        y2 = jnp.dot(p2_ref[p], w2, preferred_element_type=jnp.float32) + b2
        y2 = jnp.maximum(y2, 0.0).astype(jnp.bfloat16)   # conv2 + ReLU (VMEM only)
        acc = acc + jnp.dot(y2, fcw_ref[p], preferred_element_type=jnp.float32)
    fcacc_ref[...] = acc

    @pl.when(pc == pl.num_programs(1) - 1)
    def _():
        fc = jnp.maximum(fcacc_ref[...] + fcb_ref[...], 0.0).astype(jnp.bfloat16)
        gates_ref[...] = (
            jnp.dot(fc, wihfc_ref[...], preferred_element_type=jnp.float32)
            + jnp.dot(act_ref[...], wihact_ref[...],
                      preferred_element_type=jnp.float32)
            + blstm_ref[...])


def conv2_fc_gates_pallas(p2, act, w2m, b2, fc_w_r, fc_b, w_ih_fc, w_ih_act,
                          b_lstm, *, row_tile=512, p2_chunk=16):
    """p2: (P2, N, K2) bf16 conv2 patches; act: (N, Ap) bf16.
    Returns gates_x: (N, 4H) f32 (kept f32 -- the bf16 option loses bias
    precision per the review's caveat)."""
    P2, N, K2 = p2.shape
    C2 = w2m.shape[1]
    FC = fc_w_r.shape[-1]
    Ap = act.shape[1]
    G = w_ih_fc.shape[1]
    rt = _pick_row_tile(N, row_tile)
    pt = _largest_divisor_leq(P2, p2_chunk)
    kernel = functools.partial(_conv2_fc_gates_kernel, p2_tile=pt)
    return pl.pallas_call(
        kernel,
        out_shape=jax.ShapeDtypeStruct((N, G), jnp.float32),
        grid=(N // rt, P2 // pt),
        in_specs=[
            pl.BlockSpec((pt, rt, K2), lambda i, pc: (pc, i, 0)),
            pl.BlockSpec((rt, Ap), lambda i, pc: (i, 0)),
            pl.BlockSpec((K2, C2), lambda i, pc: (0, 0)),
            pl.BlockSpec((1, C2), lambda i, pc: (0, 0)),
            pl.BlockSpec((pt, C2, FC), lambda i, pc: (pc, 0, 0)),
            pl.BlockSpec((1, FC), lambda i, pc: (0, 0)),
            pl.BlockSpec((FC, G), lambda i, pc: (0, 0)),
            pl.BlockSpec((Ap, G), lambda i, pc: (0, 0)),
            pl.BlockSpec((1, G), lambda i, pc: (0, 0)),
        ],
        out_specs=pl.BlockSpec((rt, G), lambda i, pc: (i, 0)),
        scratch_shapes=[pltpu.VMEM((rt, FC), jnp.float32)],
        compiler_params=pltpu.CompilerParams(
            dimension_semantics=("parallel", "arbitrary"),
            vmem_limit_bytes=_VMEM_LIMIT),
    )(p2, act, w2m, b2.reshape(1, C2).astype(jnp.float32), fc_w_r,
      fc_b.reshape(1, FC).astype(jnp.float32), w_ih_fc, w_ih_act,
      b_lstm.reshape(1, G).astype(jnp.float32))


# ----------------------------------------------------------------------------
# Kernel 3: single-call LSTM (in-kernel fori_loop over T) with fused
#           policy-softmax + value heads per timestep.
# ----------------------------------------------------------------------------
def _lstm_heads_kernel(gx_ref, h0_ref, c0_ref, whh_ref, wcat_ref, bcat_ref,
                       head_ref, hn_ref, cn_ref, *, num_actions):
    T = gx_ref.shape[0]
    Bp = hn_ref.shape[0]
    H = hn_ref.shape[-1]
    Mh = head_ref.shape[-1]

    col = jax.lax.broadcasted_iota(jnp.int32, (Bp, Mh), 1)
    is_pi = col < num_actions

    def step(t, carry):
        h, c = carry
        gates = gx_ref[t] + jnp.dot(h.astype(jnp.bfloat16), whh_ref[...],
                                    preferred_element_type=jnp.float32)
        i = jax.nn.sigmoid(gates[:, 0 * H:1 * H])
        f = jax.nn.sigmoid(gates[:, 1 * H:2 * H])
        g = jnp.tanh(gates[:, 2 * H:3 * H])
        o = jax.nn.sigmoid(gates[:, 3 * H:4 * H])
        c_new = f * c + i * g
        h_new = o * jnp.tanh(c_new)

        # Fused policy/value heads for this timestep (lane-dense 128-col store;
        # cols [0,A) = softmax(pi), col A = value, rest = 0-weighted raw).
        raw = (jnp.dot(h_new.astype(jnp.bfloat16), wcat_ref[...],
                       preferred_element_type=jnp.float32) + bcat_ref[...])
        masked = jnp.where(is_pi, raw, -jnp.inf)
        m = jnp.max(masked, axis=-1, keepdims=True)
        e = jnp.where(is_pi, jnp.exp(masked - m), 0.0)
        s = jnp.sum(e, axis=-1, keepdims=True)
        probs = e * pl.reciprocal(s, approx=True)
        head_ref[t] = jnp.where(is_pi, probs, raw)
        return (h_new, c_new)

    h_fin, c_fin = jax.lax.fori_loop(0, T, step, (h0_ref[...], c0_ref[...]))
    hn_ref[...] = h_fin
    cn_ref[...] = c_fin


def lstm_heads_pallas(gates_x, h0, c0, w_hh_bf16, w_cat, b_cat, num_actions):
    """gates_x: (T, Bp, 4H) f32 (whole sequence resident in VMEM)."""
    T, Bp, G = gates_x.shape
    H = h0.shape[-1]
    Mh = w_cat.shape[1]
    kernel = functools.partial(_lstm_heads_kernel, num_actions=num_actions)
    return pl.pallas_call(
        kernel,
        out_shape=(
            jax.ShapeDtypeStruct((T, Bp, Mh), jnp.float32),
            jax.ShapeDtypeStruct((Bp, H), jnp.float32),
            jax.ShapeDtypeStruct((Bp, H), jnp.float32),
        ),
        grid=(1,),
        in_specs=[
            pl.BlockSpec((T, Bp, G), lambda i: (0, 0, 0)),
            pl.BlockSpec((Bp, H), lambda i: (0, 0)),
            pl.BlockSpec((Bp, H), lambda i: (0, 0)),
            pl.BlockSpec((H, G), lambda i: (0, 0)),
            pl.BlockSpec((H, Mh), lambda i: (0, 0)),
            pl.BlockSpec((1, Mh), lambda i: (0, 0)),
        ],
        out_specs=(
            pl.BlockSpec((T, Bp, Mh), lambda i: (0, 0, 0)),
            pl.BlockSpec((Bp, H), lambda i: (0, 0)),
            pl.BlockSpec((Bp, H), lambda i: (0, 0)),
        ),
        compiler_params=pltpu.CompilerParams(
            dimension_semantics=("arbitrary",),
            vmem_limit_bytes=_VMEM_LIMIT),
    )(gates_x, h0, c0, w_hh_bf16, w_cat, b_cat)


# ----------------------------------------------------------------------------
# Glue: channels-last im2col (gather/reshape only; matmuls are the Pallas path)
# ----------------------------------------------------------------------------
def im2col_nhwc(x, kh, kw, stride, pad):
    """x: (N, H, W, C) -> (N*Ho*Wo, kh*kw*C); patch flatten order (kh, kw, C)."""
    if pad:
        x = jnp.pad(x, ((0, 0), (pad, pad), (pad, pad), (0, 0)))
    N, Hh, Ww, C = x.shape
    Ho = (Hh - kh) // stride + 1
    Wo = (Ww - kw) // stride + 1
    cols = []
    for i in range(kh):
        for j in range(kw):
            cols.append(x[:, i:i + stride * Ho:stride, j:j + stride * Wo:stride, :])
    p = jnp.stack(cols, axis=3)                    # (N, Ho, Wo, kh*kw, C)
    p = p.reshape(N * Ho * Wo, kh * kw * C)
    return p, Ho, Wo


def im2col_pos_major(x, kh, kw, stride, pad):
    """x: (N, H, W, C) -> (Ho*Wo, N, kh*kw*C) (conv2-output-position major,
    so the fused kernel can index whole (rows, K) slabs on the outer dim)."""
    if pad:
        x = jnp.pad(x, ((0, 0), (pad, pad), (pad, pad), (0, 0)))
    N, Hh, Ww, C = x.shape
    Ho = (Hh - kh) // stride + 1
    Wo = (Ww - kw) // stride + 1
    cols = []
    for i in range(kh):
        for j in range(kw):
            cols.append(x[:, i:i + stride * Ho:stride, j:j + stride * Wo:stride, :])
    p = jnp.stack(cols, axis=3)                    # (N, Ho, Wo, kh*kw, C)
    p = p.transpose(1, 2, 0, 3, 4)                 # (Ho, Wo, N, kh*kw, C)
    p = p.reshape(Ho * Wo, N, kh * kw * C)
    return p, Ho, Wo


# ----------------------------------------------------------------------------
# AtariLstmModel forward (default Conv2dHeadModel head, no curiosity/obs_stats)
# ----------------------------------------------------------------------------
def atari_lstm_forward(params, image, prev_action, prev_reward, init_rnn_state):
    """image: uint8 [T, B, C, H, W]; prev_action: one-hot float [T, B, A];
    prev_reward: [T, B] (unused by the forward, kept for signature parity);
    init_rnn_state: (h, c) each [1, B, lstm_size]. Returns (pi, v, (hn, cn))."""
    del prev_reward
    f32, bf16 = jnp.float32, jnp.bfloat16
    T, B, C, Hi, Wi = image.shape
    A = prev_action.shape[-1]
    H = params["w_hh"].shape[0]
    FC = params["fc_w"].shape[1]

    # Pad the batch ONCE (sublane / bf16-pack friendly); every kernel below
    # runs on the padded row count and only pi/v/hn/cn are sliced at the end.
    Bp = _round_up(B, 16)
    N = T * Bp
    img = jnp.pad(image, ((0, 0), (0, Bp - B), (0, 0), (0, 0), (0, 0)))
    # uint8 -> bf16 directly (exact for 0..255, matches img.type(torch.float)
    # as a matmul operand); channels-last layout from here on.
    img = img.reshape(N, C, Hi, Wi).transpose(0, 2, 3, 1).astype(bf16)

    # conv1: 16ch, k8, s4, p0, ReLU (im2col in XLA, matmul in Pallas).
    w1 = params["conv1_w"]
    C1 = w1.shape[0]
    p1, Ho1, Wo1 = im2col_nhwc(img, 8, 8, 4, 0)
    w1m = w1.transpose(2, 3, 1, 0).reshape(-1, C1).astype(bf16)
    y1 = linear_pallas(p1, w1m, params["conv1_b"], act="relu", out_dtype=bf16)
    y1 = y1.reshape(N, Ho1, Wo1, C1)

    # conv2 patches, position-major, for the fused conv2+FC+gates kernel.
    w2 = params["conv2_w"]
    C2 = w2.shape[0]
    p2, Ho2, Wo2 = im2col_pos_major(y1, 4, 4, 2, 1)        # (P2, N, 4*4*C1)
    P2 = Ho2 * Wo2
    w2m = w2.transpose(2, 3, 1, 0).reshape(-1, C2).astype(bf16)

    # FC weight regrouped per conv2 output position (rows stored for NCHW
    # flatten in the torch model -> permute to NHWC / per-position order).
    fc_w_r = (params["fc_w"].reshape(C2, Ho2, Wo2, FC)
              .transpose(1, 2, 0, 3).reshape(P2, C2, FC).astype(bf16))

    # LSTM input-projection weights; actions padded only to 16 rows.
    w_ih = params["w_ih"]                                  # (FC + A, 4H)
    w_ih_fc = w_ih[:FC].astype(bf16)
    Ap = _round_up(max(A, 1), 16)
    w_ih_act = jnp.zeros((Ap, 4 * H), f32).at[:A].set(w_ih[FC:FC + A]).astype(bf16)
    act_flat = (jnp.zeros((T, Bp, Ap), f32)
                .at[:, :B, :A].set(prev_action).astype(bf16)).reshape(N, Ap)

    gates_x = conv2_fc_gates_pallas(p2, act_flat, w2m, params["conv2_b"],
                                    fc_w_r, params["fc_b"], w_ih_fc, w_ih_act,
                                    params["b_lstm"])
    gates_x = gates_x.reshape(T, Bp, 4 * H)

    h0 = jnp.pad(init_rnn_state[0].reshape(B, H), ((0, Bp - B), (0, 0)))
    c0 = jnp.pad(init_rnn_state[1].reshape(B, H), ((0, Bp - B), (0, 0)))

    # Fused policy + value head weights: [pi_w | v_w | 0...] padded to 128 lanes.
    Mh = _round_up(A + 1, 128)
    w_cat = (jnp.zeros((H, Mh), f32)
             .at[:, :A].set(params["pi_w"])
             .at[:, A].set(params["v_w"][:, 0]).astype(bf16))
    b_cat = (jnp.zeros((Mh,), f32)
             .at[:A].set(params["pi_b"]).at[A].set(params["v_b"][0])).reshape(1, Mh)

    head, hn_p, cn_p = lstm_heads_pallas(gates_x, h0, c0,
                                         params["w_hh"].astype(bf16),
                                         w_cat, b_cat, A)
    pi = head[:, :B, :A]
    v = head[:, :B, A]
    next_rnn_state = (hn_p[:B].reshape(1, B, H), cn_p[:B].reshape(1, B, H))
    return pi, v, next_rnn_state


# ----------------------------------------------------------------------------
# Pure-JAX reference (same bf16-operand / f32-accumulate matmul semantics)
# ----------------------------------------------------------------------------
def reference_forward(params, image, prev_action, init_rnn_state):
    f32, bf16 = jnp.float32, jnp.bfloat16
    T, B = image.shape[:2]
    H = params["w_hh"].shape[0]
    img = image.astype(f32).reshape(T * B, *image.shape[2:])

    def bdot(a, b):
        return jnp.dot(a.astype(bf16), b.astype(bf16), preferred_element_type=f32)

    def conv(x, w, b, s, p):
        y = jax.lax.conv_general_dilated(
            x.astype(bf16), w.astype(bf16), window_strides=(s, s),
            padding=[(p, p), (p, p)],
            dimension_numbers=("NCHW", "OIHW", "NCHW"),
            preferred_element_type=f32)
        return jnp.maximum(y + b[None, :, None, None], 0.0)

    x = conv(img, params["conv1_w"], params["conv1_b"], 4, 0)
    x = conv(x, params["conv2_w"], params["conv2_b"], 2, 1)
    x = x.reshape(T * B, -1)
    fc = jnp.maximum(bdot(x, params["fc_w"]) + params["fc_b"], 0.0)
    xs = jnp.concatenate([fc.reshape(T, B, -1), prev_action], axis=2)

    h = init_rnn_state[0].reshape(B, H)
    c = init_rnn_state[1].reshape(B, H)
    outs = []
    for t in range(T):
        g = bdot(xs[t], params["w_ih"]) + bdot(h, params["w_hh"]) + params["b_lstm"]
        i = jax.nn.sigmoid(g[:, :H])
        f = jax.nn.sigmoid(g[:, H:2 * H])
        gg = jnp.tanh(g[:, 2 * H:3 * H])
        o = jax.nn.sigmoid(g[:, 3 * H:])
        c = f * c + i * gg
        h = o * jnp.tanh(c)
        outs.append(h)
    out = jnp.stack(outs, axis=0).reshape(T * B, H)
    pi = jax.nn.softmax(bdot(out, params["pi_w"]) + params["pi_b"], axis=-1)
    pi = pi.reshape(T, B, -1)
    v = (bdot(out, params["v_w"]) + params["v_b"]).reshape(T, B)
    return pi, v, (h.reshape(1, B, H), c.reshape(1, B, H))


# ----------------------------------------------------------------------------
# Main
# ----------------------------------------------------------------------------
if __name__ == "__main__":
    # Small-but-consistent shapes: image_shape=(4,16,16), actions=6, fc=lstm=128
    T, B = 8, 2
    C, Himg, Wimg = 4, 16, 16
    A = 6
    FC = 128
    LSTM = 128
    CONV_OUT = 32  # 32 channels * 1 * 1 after the two convs on 16x16 input

    key = jax.random.PRNGKey(0)
    ks = jax.random.split(key, 16)

    def init(k, shape, scale=0.05):
        return (scale * jax.random.normal(k, shape)).astype(jnp.float32)

    params = {
        "conv1_w": init(ks[0], (16, C, 8, 8)),
        "conv1_b": init(ks[1], (16,)),
        "conv2_w": init(ks[2], (32, 16, 4, 4)),
        "conv2_b": init(ks[3], (32,)),
        "fc_w": init(ks[4], (CONV_OUT, FC)),
        "fc_b": init(ks[5], (FC,)),
        "w_ih": init(ks[6], (FC + A, 4 * LSTM)),
        "w_hh": init(ks[7], (LSTM, 4 * LSTM)),
        "b_lstm": init(ks[8], (4 * LSTM,)),   # b_ih + b_hh folded together
        "pi_w": init(ks[9], (LSTM, A)),
        "pi_b": init(ks[10], (A,)),
        "v_w": init(ks[11], (LSTM, 1)),
        "v_b": init(ks[12], (1,)),
    }

    image = jax.random.randint(ks[13], (T, B, C, Himg, Wimg), 0, 256, dtype=jnp.int32)
    image = image.astype(jnp.uint8)
    act_idx = jax.random.randint(ks[14], (T, B), 0, A)
    prev_action = jax.nn.one_hot(act_idx, A, dtype=jnp.float32)
    prev_reward = jnp.zeros((T, B), jnp.float32)
    init_rnn_state = (
        init(ks[15], (1, B, LSTM), scale=0.1),
        init(ks[15], (1, B, LSTM), scale=0.1),
    )

    fwd = jax.jit(atari_lstm_forward)
    pi, v, (hn, cn) = jax.block_until_ready(
        fwd(params, image, prev_action, prev_reward, init_rnn_state))

    # Correctness check vs. pure-JAX reference (matching bf16 matmul operands).
    pi_r, v_r, (hn_r, cn_r) = reference_forward(params, image, prev_action, init_rnn_state)
    assert pi.shape == (T, B, A) and v.shape == (T, B)
    # approx-reciprocal softmax denominator -> sums are ~1 to ~1e-3.
    np.testing.assert_allclose(np.asarray(jnp.sum(pi, -1)), np.ones((T, B)),
                               rtol=2e-3, atol=2e-3)
    np.testing.assert_allclose(np.asarray(pi), np.asarray(pi_r), rtol=5e-3, atol=2e-3)
    np.testing.assert_allclose(np.asarray(v), np.asarray(v_r), rtol=5e-3, atol=2e-3)
    np.testing.assert_allclose(np.asarray(hn), np.asarray(hn_r), rtol=5e-3, atol=2e-3)
    np.testing.assert_allclose(np.asarray(cn), np.asarray(cn_r), rtol=5e-3, atol=2e-3)

    print("KERNEL_OK")
</pallas_src>

<mosaic_0001>
module attributes {stable_mosaic.version = 11 : i64} {
  func.func @_linear_kernel(%arg0: i32, %arg1: memref<384x256xbf16, #tpu.memory_space<vmem>>, %arg2: memref<256x16xbf16, #tpu.memory_space<vmem>>, %arg3: memref<1x16xf32, #tpu.memory_space<vmem>>, %arg4: memref<384x16xbf16, #tpu.memory_space<vmem>>) attributes {dimension_semantics = [#tpu.dimension_semantics<parallel>], iteration_bounds = array<i64: 3>, scalar_prefetch = 0 : i64, scratch_operands = 0 : i64, tpu.core_type = #tpu.core_type<tc>, window_params = [{transform_indices = @transform_0, window_bounds = array<i64: 384, 256>}, {pipeline_mode = #tpu.pipeline_mode<synchronous>, transform_indices = @transform_1, window_bounds = array<i64: 256, 16>}, {pipeline_mode = #tpu.pipeline_mode<synchronous>, transform_indices = @transform_2, window_bounds = array<i64: 1, 16>}, {transform_indices = @transform_3, window_bounds = array<i64: 384, 16>}]} {
    %c0 = arith.constant 0 : index
    %c0_0 = arith.constant 0 : index
    %0 = vector.load %arg1[%c0, %c0_0] : memref<384x256xbf16, #tpu.memory_space<vmem>>, vector<384x256xbf16>
    %c0_1 = arith.constant 0 : index
    %c0_2 = arith.constant 0 : index
    %1 = vector.load %arg2[%c0_1, %c0_2] : memref<256x16xbf16, #tpu.memory_space<vmem>>, vector<256x16xbf16>
    %cst = arith.constant dense<0.000000e+00> : vector<384x16xf32>
    %2 = tpu.matmul %0, %1, %cst {dimension_numbers = #tpu.dot_dimension_numbers<[1], [0], [0], [1], [0, 0, 1, 1], [], []>} : vector<384x256xbf16>, vector<256x16xbf16>, vector<384x16xf32> -> vector<384x16xf32>
    %c0_3 = arith.constant 0 : index
    %c0_4 = arith.constant 0 : index
    %3 = vector.load %arg3[%c0_3, %c0_4] : memref<1x16xf32, #tpu.memory_space<vmem>>, vector<1x16xf32>
    %4 = vector.broadcast %3 : vector<1x16xf32> to vector<384x16xf32>
    %5 = arith.addf %2, %4 : vector<384x16xf32>
    %cst_5 = arith.constant 0.000000e+00 : f32
    %6 = vector.broadcast %cst_5 : f32 to vector<384x16xf32>
    %7 = arith.maximumf %5, %6 : vector<384x16xf32>
    %8 = arith.truncf %7 : vector<384x16xf32> to vector<384x16xbf16>
    %c0_6 = arith.constant 0 : index
    %c0_7 = arith.constant 0 : index
    %9 = vector.load %arg4[%c0_6, %c0_7] : memref<384x16xbf16, #tpu.memory_space<vmem>>, vector<384x16xbf16>
    tpu.vector_store %arg4[%c0_6, %c0_7], %8 {strides = array<i32>} : memref<384x16xbf16, #tpu.memory_space<vmem>>, vector<384x16xbf16>,
    return
  }
  func.func @transform_0(%arg0: i32) -> (i32, i32) {
    %c0_i32 = arith.constant 0 : i32
    %c0_i32_0 = arith.constant 0 : i32
    return %arg0, %c0_i32 : i32, i32
  }
  func.func @transform_1(%arg0: i32) -> (i32, i32) {
    %c0_i32 = arith.constant 0 : i32
    %c0_i32_0 = arith.constant 0 : i32
    %c0_i32_1 = arith.constant 0 : i32
    return %c0_i32, %c0_i32_0 : i32, i32
  }
  func.func @transform_2(%arg0: i32) -> (i32, i32) {
    %c0_i32 = arith.constant 0 : i32
    %c0_i32_0 = arith.constant 0 : i32
    %c0_i32_1 = arith.constant 0 : i32
    return %c0_i32, %c0_i32_0 : i32, i32
  }
  func.func @transform_3(%arg0: i32) -> (i32, i32) {
    %c0_i32 = arith.constant 0 : i32
    %c0_i32_0 = arith.constant 0 : i32
    return %arg0, %c0_i32 : i32, i32
  }
}

module attributes {stable_mosaic.version = 11 : i64} {
  func.func @_conv2_fc_gates_kernel(%arg0: i32, %arg1: i32, %arg2: memref<1x128x256xbf16, #tpu.memory_space<vmem>>, %arg3: memref<128x16xbf16, #tpu.memory_space<vmem>>, %arg4: memref<256x32xbf16, #tpu.memory_space<vmem>>, %arg5: memref<1x32xf32, #tpu.memory_space<vmem>>, %arg6: memref<1x32x128xbf16, #tpu.memory_space<vmem>>, %arg7: memref<1x128xf32, #tpu.memory_space<vmem>>, %arg8: memref<128x512xbf16, #tpu.memory_space<vmem>>, %arg9: memref<16x512xbf16, #tpu.memory_space<vmem>>, %arg10: memref<1x512xf32, #tpu.memory_space<vmem>>, %arg11: memref<128x512xf32, #tpu.memory_space<vmem>>, %arg12: memref<128x128xf32, #tpu.memory_space<vmem>>) attributes {dimension_semantics = [#tpu.dimension_semantics<parallel>, #tpu.dimension_semantics<arbitrary>], iteration_bounds = array<i64: 1, 1>, scalar_prefetch = 0 : i64, scratch_operands = 1 : i64, tpu.core_type = #tpu.core_type<tc>, window_params = [{transform_indices = @transform_0, window_bounds = array<i64: 1, 128, 256>}, {transform_indices = @transform_1, window_bounds = array<i64: 128, 16>}, {pipeline_mode = #tpu.pipeline_mode<synchronous>, transform_indices = @transform_2, window_bounds = array<i64: 256, 32>}, {pipeline_mode = #tpu.pipeline_mode<synchronous>, transform_indices = @transform_3, window_bounds = array<i64: 1, 32>}, {transform_indices = @transform_4, window_bounds = array<i64: 1, 32, 128>}, {pipeline_mode = #tpu.pipeline_mode<synchronous>, transform_indices = @transform_5, window_bounds = array<i64: 1, 128>}, {pipeline_mode = #tpu.pipeline_mode<synchronous>, transform_indices = @transform_6, window_bounds = array<i64: 128, 512>}, {pipeline_mode = #tpu.pipeline_mode<synchronous>, transform_indices = @transform_7, window_bounds = array<i64: 16, 512>}, {pipeline_mode = #tpu.pipeline_mode<synchronous>, transform_indices = @transform_8, window_bounds = array<i64: 1, 512>}, {transform_indices = @transform_9, window_bounds = array<i64: 128, 512>}]} {
    %c0_i32 = arith.constant 0 : i32
    %0 = arith.cmpi eq, %arg1, %c0_i32 : i32
    %1 = arith.extui %0 : i1 to i32
    %c0_i32_0 = arith.constant 0 : i32
    %2 = arith.cmpi ne, %1, %c0_i32_0 : i32
    scf.if %2 {
      %cst_18 = arith.constant 0.000000e+00 : f32
      %22 = vector.broadcast %cst_18 : f32 to vector<128x128xf32>
      %c0_19 = arith.constant 0 : index
      %c0_20 = arith.constant 0 : index
      %23 = vector.load %arg12[%c0_19, %c0_20] : memref<128x128xf32, #tpu.memory_space<vmem>>, vector<128x128xf32>
      tpu.vector_store %arg12[%c0_19, %c0_20], %22 {strides = array<i32>} : memref<128x128xf32, #tpu.memory_space<vmem>>, vector<128x128xf32>,
    } else {
    }
    %c0 = arith.constant 0 : index
    %c0_1 = arith.constant 0 : index
    %3 = vector.load %arg12[%c0, %c0_1] : memref<128x128xf32, #tpu.memory_space<vmem>>, vector<128x128xf32>
    %c0_2 = arith.constant 0 : index
    %c0_3 = arith.constant 0 : index
    %4 = vector.load %arg4[%c0_2, %c0_3] : memref<256x32xbf16, #tpu.memory_space<vmem>>, vector<256x32xbf16>
    %c0_4 = arith.constant 0 : index
    %c0_5 = arith.constant 0 : index
    %5 = vector.load %arg5[%c0_4, %c0_5] : memref<1x32xf32, #tpu.memory_space<vmem>>, vector<1x32xf32>
    %c0_6 = arith.constant 0 : index
    %c0_7 = arith.constant 0 : index
    %c0_8 = arith.constant 0 : index
    %6 = vector.load %arg2[%c0_6, %c0_7, %c0_8] : memref<1x128x256xbf16, #tpu.memory_space<vmem>>, vector<1x128x256xbf16>
    %7 = vector.shape_cast %6 : vector<1x128x256xbf16> to vector<128x256xbf16>
    %cst = arith.constant dense<0.000000e+00> : vector<128x32xf32>
    %8 = tpu.matmul %7, %4, %cst {dimension_numbers = #tpu.dot_dimension_numbers<[1], [0], [0], [1], [0, 0, 1, 1], [], []>} : vector<128x256xbf16>, vector<256x32xbf16>, vector<128x32xf32> -> vector<128x32xf32>
    %9 = vector.broadcast %5 : vector<1x32xf32> to vector<128x32xf32>
    %10 = arith.addf %8, %9 : vector<128x32xf32>
    %cst_9 = arith.constant 0.000000e+00 : f32
    %11 = vector.broadcast %cst_9 : f32 to vector<128x32xf32>
    %12 = arith.maximumf %10, %11 : vector<128x32xf32>
    %13 = arith.truncf %12 : vector<128x32xf32> to vector<128x32xbf16>
    %c0_10 = arith.constant 0 : index
    %c0_11 = arith.constant 0 : index
    %c0_12 = arith.constant 0 : index
    %14 = vector.load %arg6[%c0_10, %c0_11, %c0_12] : memref<1x32x128xbf16, #tpu.memory_space<vmem>>, vector<1x32x128xbf16>
    %15 = vector.shape_cast %14 : vector<1x32x128xbf16> to vector<32x128xbf16>
    %cst_13 = arith.constant dense<0.000000e+00> : vector<128x128xf32>
    %16 = tpu.matmul %13, %15, %cst_13 {dimension_numbers = #tpu.dot_dimension_numbers<[1], [0], [0], [1], [0, 0, 1, 1], [], []>} : vector<128x32xbf16>, vector<32x128xbf16>, vector<128x128xf32> -> vector<128x128xf32>
    %17 = arith.addf %3, %16 : vector<128x128xf32>
    %c0_14 = arith.constant 0 : index
    %c0_15 = arith.constant 0 : index
    %18 = vector.load %arg12[%c0_14, %c0_15] : memref<128x128xf32, #tpu.memory_space<vmem>>, vector<128x128xf32>
    tpu.vector_store %arg12[%c0_14, %c0_15], %17 {strides = array<i32>} : memref<128x128xf32, #tpu.memory_space<vmem>>, vector<128x128xf32>,
    %c0_i32_16 = arith.constant 0 : i32
    %19 = arith.cmpi eq, %arg1, %c0_i32_16 : i32
    %20 = arith.extui %19 : i1 to i32
    %c0_i32_17 = arith.constant 0 : i32
    %21 = arith.cmpi ne, %20, %c0_i32_17 : i32
    scf.if %21 {
      %c0_18 = arith.constant 0 : index
      %c0_19 = arith.constant 0 : index
      %22 = vector.load %arg12[%c0_18, %c0_19] : memref<128x128xf32, #tpu.memory_space<vmem>>, vector<128x128xf32>
      %c0_20 = arith.constant 0 : index
      %c0_21 = arith.constant 0 : index
      %23 = vector.load %arg7[%c0_20, %c0_21] : memref<1x128xf32, #tpu.memory_space<vmem>>, vector<1x128xf32>
      %24 = vector.broadcast %23 : vector<1x128xf32> to vector<128x128xf32>
      %25 = arith.addf %22, %24 : vector<128x128xf32>
      %cst_22 = arith.constant 0.000000e+00 : f32
      %26 = vector.broadcast %cst_22 : f32 to vector<128x128xf32>
      %27 = arith.maximumf %25, %26 : vector<128x128xf32>
      %28 = arith.truncf %27 : vector<128x128xf32> to vector<128x128xbf16>
      %c0_23 = arith.constant 0 : index
      %c0_24 = arith.constant 0 : index
      %29 = vector.load %arg8[%c0_23, %c0_24] : memref<128x512xbf16, #tpu.memory_space<vmem>>, vector<128x512xbf16>
      %cst_25 = arith.constant dense<0.000000e+00> : vector<128x512xf32>
      %30 = tpu.matmul %28, %29, %cst_25 {dimension_numbers = #tpu.dot_dimension_numbers<[1], [0], [0], [1], [0, 0, 1, 1], [], []>} : vector<128x128xbf16>, vector<128x512xbf16>, vector<128x512xf32> -> vector<128x512xf32>
      %c0_26 = arith.constant 0 : index
      %c0_27 = arith.constant 0 : index
      %31 = vector.load %arg3[%c0_26, %c0_27] : memref<128x16xbf16, #tpu.memory_space<vmem>>, vector<128x16xbf16>
      %c0_28 = arith.constant 0 : index
      %c0_29 = arith.constant 0 : index
      %32 = vector.load %arg9[%c0_28, %c0_29] : memref<16x512xbf16, #tpu.memory_space<vmem>>, vector<16x512xbf16>
      %cst_30 = arith.constant dense<0.000000e+00> : vector<128x512xf32>
      %33 = tpu.matmul %31, %32, %cst_30 {dimension_numbers = #tpu.dot_dimension_numbers<[1], [0], [0], [1], [0, 0, 1, 1], [], []>} : vector<128x16xbf16>, vector<16x512xbf16>, vector<128x512xf32> -> vector<128x512xf32>
      %34 = arith.addf %30, %33 : vector<128x512xf32>
      %c0_31 = arith.constant 0 : index
      %c0_32 = arith.constant 0 : index
      %35 = vector.load %arg10[%c0_31, %c0_32] : memref<1x512xf32, #tpu.memory_space<vmem>>, vector<1x512xf32>
      %36 = vector.broadcast %35 : vector<1x512xf32> to vector<128x512xf32>
      %37 = arith.addf %34, %36 : vector<128x512xf32>
      %c0_33 = arith.constant 0 : index
      %c0_34 = arith.constant 0 : index
      %38 = vector.load %arg11[%c0_33, %c0_34] : memref<128x512xf32, #tpu.memory_space<vmem>>, vector<128x512xf32>
      tpu.vector_store %arg11[%c0_33, %c0_34], %37 {strides = array<i32>} : memref<128x512xf32, #tpu.memory_space<vmem>>, vector<128x512xf32>,
    } else {
    }
    return
  }
  func.func @transform_0(%arg0: i32, %arg1: i32) -> (i32, i32, i32) {
    %c0_i32 = arith.constant 0 : i32
    %c0_i32_0 = arith.constant 0 : i32
    return %arg1, %arg0, %c0_i32 : i32, i32, i32
  }
  func.func @transform_1(%arg0: i32, %arg1: i32) -> (i32, i32) {
    %c0_i32 = arith.constant 0 : i32
    %c0_i32_0 = arith.constant 0 : i32
    return %arg0, %c0_i32 : i32, i32
  }
  func.func @transform_2(%arg0: i32, %arg1: i32) -> (i32, i32) {
    %c0_i32 = arith.constant 0 : i32
    %c0_i32_0 = arith.constant 0 : i32
    %c0_i32_1 = arith.constant 0 : i32
    return %c0_i32, %c0_i32_0 : i32, i32
  }
  func.func @transform_3(%arg0: i32, %arg1: i32) -> (i32, i32) {
    %c0_i32 = arith.constant 0 : i32
    %c0_i32_0 = arith.constant 0 : i32
    %c0_i32_1 = arith.constant 0 : i32
    return %c0_i32, %c0_i32_0 : i32, i32
  }
  func.func @transform_4(%arg0: i32, %arg1: i32) -> (i32, i32, i32) {
    %c0_i32 = arith.constant 0 : i32
    %c0_i32_0 = arith.constant 0 : i32
    %c0_i32_1 = arith.constant 0 : i32
    return %arg1, %c0_i32, %c0_i32_0 : i32, i32, i32
  }
  func.func @transform_5(%arg0: i32, %arg1: i32) -> (i32, i32) {
    %c0_i32 = arith.constant 0 : i32
    %c0_i32_0 = arith.constant 0 : i32
    %c0_i32_1 = arith.constant 0 : i32
    return %c0_i32, %c0_i32_0 : i32, i32
  }
  func.func @transform_6(%arg0: i32, %arg1: i32) -> (i32, i32) {
    %c0_i32 = arith.constant 0 : i32
    %c0_i32_0 = arith.constant 0 : i32
    %c0_i32_1 = arith.constant 0 : i32
    return %c0_i32, %c0_i32_0 : i32, i32
  }
  func.func @transform_7(%arg0: i32, %arg1: i32) -> (i32, i32) {
    %c0_i32 = arith.constant 0 : i32
    %c0_i32_0 = arith.constant 0 : i32
    %c0_i32_1 = arith.constant 0 : i32
    return %c0_i32, %c0_i32_0 : i32, i32
  }
  func.func @transform_8(%arg0: i32, %arg1: i32) -> (i32, i32) {
    %c0_i32 = arith.constant 0 : i32
    %c0_i32_0 = arith.constant 0 : i32
    %c0_i32_1 = arith.constant 0 : i32
    return %c0_i32, %c0_i32_0 : i32, i32
  }
  func.func @transform_9(%arg0: i32, %arg1: i32) -> (i32, i32) {
    %c0_i32 = arith.constant 0 : i32
    %c0_i32_0 = arith.constant 0 : i32
    return %arg0, %c0_i32 : i32, i32
  }
}

module attributes {stable_mosaic.version = 11 : i64} {
  func.func @_lstm_heads_kernel(%arg0: i32, %arg1: memref<8x16x512xf32, #tpu.memory_space<vmem>>, %arg2: memref<16x128xf32, #tpu.memory_space<vmem>>, %arg3: memref<16x128xf32, #tpu.memory_space<vmem>>, %arg4: memref<128x512xbf16, #tpu.memory_space<vmem>>, %arg5: memref<128x128xbf16, #tpu.memory_space<vmem>>, %arg6: memref<1x128xf32, #tpu.memory_space<vmem>>, %arg7: memref<8x16x128xf32, #tpu.memory_space<vmem>>, %arg8: memref<16x128xf32, #tpu.memory_space<vmem>>, %arg9: memref<16x128xf32, #tpu.memory_space<vmem>>) attributes {dimension_semantics = [#tpu.dimension_semantics<arbitrary>], iteration_bounds = array<i64: 1>, scalar_prefetch = 0 : i64, scratch_operands = 0 : i64, tpu.core_type = #tpu.core_type<tc>, window_params = [{pipeline_mode = #tpu.pipeline_mode<synchronous>, transform_indices = @transform_0, window_bounds = array<i64: 8, 16, 512>}, {pipeline_mode = #tpu.pipeline_mode<synchronous>, transform_indices = @transform_1, window_bounds = array<i64: 16, 128>}, {pipeline_mode = #tpu.pipeline_mode<synchronous>, transform_indices = @transform_2, window_bounds = array<i64: 16, 128>}, {pipeline_mode = #tpu.pipeline_mode<synchronous>, transform_indices = @transform_3, window_bounds = array<i64: 128, 512>}, {pipeline_mode = #tpu.pipeline_mode<synchronous>, transform_indices = @transform_4, window_bounds = array<i64: 128, 128>}, {pipeline_mode = #tpu.pipeline_mode<synchronous>, transform_indices = @transform_5, window_bounds = array<i64: 1, 128>}, {pipeline_mode = #tpu.pipeline_mode<synchronous>, transform_indices = @transform_6, window_bounds = array<i64: 8, 16, 128>}, {pipeline_mode = #tpu.pipeline_mode<synchronous>, transform_indices = @transform_7, window_bounds = array<i64: 16, 128>}, {pipeline_mode = #tpu.pipeline_mode<synchronous>, transform_indices = @transform_8, window_bounds = array<i64: 16, 128>}]} {
    %0 = tpu.iota {dimensions = array<i32: 1>} : vector<16x128xi32>
    %c6_i32 = arith.constant 6 : i32
    %1 = vector.broadcast %c6_i32 : i32 to vector<16x128xi32>
    %2 = arith.cmpi slt, %0, %1 : vector<16x128xi32>
    %c0 = arith.constant 0 : index
    %c0_0 = arith.constant 0 : index
    %3 = vector.load %arg2[%c0, %c0_0] : memref<16x128xf32, #tpu.memory_space<vmem>>, vector<16x128xf32>
    %c0_1 = arith.constant 0 : index
    %c0_2 = arith.constant 0 : index
    %4 = vector.load %arg3[%c0_1, %c0_2] : memref<16x128xf32, #tpu.memory_space<vmem>>, vector<16x128xf32>
    %c0_i32 = arith.constant 0 : i32
    %c8_i32 = arith.constant 8 : i32
    %5 = arith.addi %c0_i32, %c8_i32 : i32
    %c1_i32 = arith.constant 1 : i32
    %6:2 = scf.for %arg10 = %c0_i32 to %5 step %c1_i32 iter_args(%arg11 = %3, %arg12 = %4) -> (vector<16x128xf32>, vector<16x128xf32>)  : i32 {
      %9 = arith.index_cast %arg10 : i32 to index
      %c0_8 = arith.constant 0 : index
      %c0_9 = arith.constant 0 : index
      %10 = vector.load %arg1[%9, %c0_8, %c0_9] : memref<8x16x512xf32, #tpu.memory_space<vmem>>, vector<1x16x512xf32>
      %11 = vector.shape_cast %10 : vector<1x16x512xf32> to vector<16x512xf32>
      %12 = arith.truncf %arg11 : vector<16x128xf32> to vector<16x128xbf16>
      %c0_10 = arith.constant 0 : index
      %c0_11 = arith.constant 0 : index
      %13 = vector.load %arg4[%c0_10, %c0_11] : memref<128x512xbf16, #tpu.memory_space<vmem>>, vector<128x512xbf16>
      %cst = arith.constant dense<0.000000e+00> : vector<16x512xf32>
      %14 = tpu.matmul %12, %13, %cst {dimension_numbers = #tpu.dot_dimension_numbers<[1], [0], [0], [1], [0, 0, 1, 1], [], []>} : vector<16x128xbf16>, vector<128x512xbf16>, vector<16x512xf32> -> vector<16x512xf32>
      %15 = arith.addf %11, %14 : vector<16x512xf32>
      %16 = vector.extract_strided_slice %15 {offsets = [0, 0], sizes = [16, 128], strides = [1, 1]} : vector<16x512xf32> to vector<16x128xf32>
      %17 = arith.negf %16 : vector<16x128xf32>
      %18 = math.exp %17 : vector<16x128xf32>
      %cst_12 = arith.constant 1.000000e+00 : f32
      %19 = vector.broadcast %cst_12 : f32 to vector<16x128xf32>
      %20 = arith.addf %19, %18 : vector<16x128xf32>
      %21 = arith.divf %19, %20 : vector<16x128xf32>
      %22 = vector.extract_strided_slice %15 {offsets = [0, 128], sizes = [16, 128], strides = [1, 1]} : vector<16x512xf32> to vector<16x128xf32>
      %23 = arith.negf %22 : vector<16x128xf32>
      %24 = math.exp %23 : vector<16x128xf32>
      %cst_13 = arith.constant 1.000000e+00 : f32
      %25 = vector.broadcast %cst_13 : f32 to vector<16x128xf32>
      %26 = arith.addf %25, %24 : vector<16x128xf32>
      %27 = arith.divf %25, %26 : vector<16x128xf32>
      %28 = vector.extract_strided_slice %15 {offsets = [0, 256], sizes = [16, 128], strides = [1, 1]} : vector<16x512xf32> to vector<16x128xf32>
      %29 = math.tanh %28 : vector<16x128xf32>
      %30 = vector.extract_strided_slice %15 {offsets = [0, 384], sizes = [16, 128], strides = [1, 1]} : vector<16x512xf32> to vector<16x128xf32>
      %31 = arith.negf %30 : vector<16x128xf32>
      %32 = math.exp %31 : vector<16x128xf32>
      %cst_14 = arith.constant 1.000000e+00 : f32
      %33 = vector.broadcast %cst_14 : f32 to vector<16x128xf32>
      %34 = arith.addf %33, %32 : vector<16x128xf32>
      %35 = arith.divf %33, %34 : vector<16x128xf32>
      %36 = arith.mulf %27, %arg12 : vector<16x128xf32>
      %37 = arith.mulf %21, %29 : vector<16x128xf32>
      %38 = arith.addf %36, %37 : vector<16x128xf32>
      %39 = math.tanh %38 : vector<16x128xf32>
      %40 = arith.mulf %35, %39 : vector<16x128xf32>
      %41 = arith.truncf %40 : vector<16x128xf32> to vector<16x128xbf16>
      %c0_15 = arith.constant 0 : index
      %c0_16 = arith.constant 0 : index
      %42 = vector.load %arg5[%c0_15, %c0_16] : memref<128x128xbf16, #tpu.memory_space<vmem>>, vector<128x128xbf16>
      %cst_17 = arith.constant dense<0.000000e+00> : vector<16x128xf32>
      %43 = tpu.matmul %41, %42, %cst_17 {dimension_numbers = #tpu.dot_dimension_numbers<[1], [0], [0], [1], [0, 0, 1, 1], [], []>} : vector<16x128xbf16>, vector<128x128xbf16>, vector<16x128xf32> -> vector<16x128xf32>
      %c0_18 = arith.constant 0 : index
      %c0_19 = arith.constant 0 : index
      %44 = vector.load %arg6[%c0_18, %c0_19] : memref<1x128xf32, #tpu.memory_space<vmem>>, vector<1x128xf32>
      %45 = vector.broadcast %44 : vector<1x128xf32> to vector<16x128xf32>
      %46 = arith.addf %43, %45 : vector<16x128xf32>
      %cst_20 = arith.constant 0xFF800000 : f32
      %47 = vector.broadcast %cst_20 : f32 to vector<16x128xf32>
      %48 = arith.select %2, %46, %47 : vector<16x128xi1>, vector<16x128xf32>
      %cst_21 = arith.constant dense<0xFF800000> : vector<16xf32>
      %49 = vector.multi_reduction <maximumf>, %48, %cst_21 [1] : vector<16x128xf32> to vector<16xf32>
      %50 = vector.shape_cast %49 : vector<16xf32> to vector<16x1xf32>
      %51 = vector.broadcast %50 : vector<16x1xf32> to vector<16x128xf32>
      %52 = arith.subf %48, %51 : vector<16x128xf32>
      %53 = math.exp %52 : vector<16x128xf32>
      %cst_22 = arith.constant 0.000000e+00 : f32
      %54 = vector.broadcast %cst_22 : f32 to vector<16x128xf32>
      %55 = arith.select %2, %53, %54 : vector<16x128xi1>, vector<16x128xf32>
      %cst_23 = arith.constant dense<0.000000e+00> : vector<16xf32>
      %56 = vector.multi_reduction <add>, %55, %cst_23 [1] : vector<16x128xf32> to vector<16xf32>
      %57 = vector.shape_cast %56 : vector<16xf32> to vector<16x1xf32>
      %58 = tpu.reciprocal %57 {approx = true} : vector<16x1xf32> -> vector<16x1xf32>
      %59 = vector.broadcast %58 : vector<16x1xf32> to vector<16x128xf32>
      %60 = arith.mulf %55, %59 : vector<16x128xf32>
      %61 = arith.select %2, %60, %46 : vector<16x128xi1>, vector<16x128xf32>
      %62 = arith.index_cast %arg10 : i32 to index
      %c0_24 = arith.constant 0 : index
      %c0_25 = arith.constant 0 : index
      %63 = vector.load %arg7[%62, %c0_24, %c0_25] : memref<8x16x128xf32, #tpu.memory_space<vmem>>, vector<1x16x128xf32>
      %64 = vector.shape_cast %63 : vector<1x16x128xf32> to vector<16x128xf32>
      %65 = vector.shape_cast %61 : vector<16x128xf32> to vector<1x16x128xf32>
      tpu.vector_store %arg7[%62, %c0_24, %c0_25], %65 {strides = array<i32>} : memref<8x16x128xf32, #tpu.memory_space<vmem>>, vector<1x16x128xf32>,
      scf.yield %40, %38 : vector<16x128xf32>, vector<16x128xf32>
    }
    %c8_i32_3 = arith.constant 8 : i32
    %c0_4 = arith.constant 0 : index
    %c0_5 = arith.constant 0 : index
    %7 = vector.load %arg8[%c0_4, %c0_5] : memref<16x128xf32, #tpu.memory_space<vmem>>, vector<16x128xf32>
    tpu.vector_store %arg8[%c0_4, %c0_5], %6#0 {strides = array<i32>} : memref<16x128xf32, #tpu.memory_space<vmem>>, vector<16x128xf32>,
    %c0_6 = arith.constant 0 : index
    %c0_7 = arith.constant 0 : index
    %8 = vector.load %arg9[%c0_6, %c0_7] : memref<16x128xf32, #tpu.memory_space<vmem>>, vector<16x128xf32>
    tpu.vector_store %arg9[%c0_6, %c0_7], %6#1 {strides = array<i32>} : memref<16x128xf32, #tpu.memory_space<vmem>>, vector<16x128xf32>,
    return
  }
  func.func @transform_0(%arg0: i32) -> (i32, i32, i32) {
    %c0_i32 = arith.constant 0 : i32
    %c0_i32_0 = arith.constant 0 : i32
    %c0_i32_1 = arith.constant 0 : i32
    %c0_i32_2 = arith.constant 0 : i32
    return %c0_i32, %c0_i32_0, %c0_i32_1 : i32, i32, i32
  }
  func.func @transform_1(%arg0: i32) -> (i32, i32) {
    %c0_i32 = arith.constant 0 : i32
    %c0_i32_0 = arith.constant 0 : i32
    %c0_i32_1 = arith.constant 0 : i32
    return %c0_i32, %c0_i32_0 : i32, i32
  }
  func.func @transform_2(%arg0: i32) -> (i32, i32) {
    %c0_i32 = arith.constant 0 : i32
    %c0_i32_0 = arith.constant 0 : i32
    %c0_i32_1 = arith.constant 0 : i32
    return %c0_i32, %c0_i32_0 : i32, i32
  }
  func.func @transform_3(%arg0: i32) -> (i32, i32) {
    %c0_i32 = arith.constant 0 : i32
    %c0_i32_0 = arith.constant 0 : i32
    %c0_i32_1 = arith.constant 0 : i32
    return %c0_i32, %c0_i32_0 : i32, i32
  }
  func.func @transform_4(%arg0: i32) -> (i32, i32) {
    %c0_i32 = arith.constant 0 : i32
    %c0_i32_0 = arith.constant 0 : i32
    %c0_i32_1 = arith.constant 0 : i32
    return %c0_i32, %c0_i32_0 : i32, i32
  }
  func.func @transform_5(%arg0: i32) -> (i32, i32) {
    %c0_i32 = arith.constant 0 : i32
    %c0_i32_0 = arith.constant 0 : i32
    %c0_i32_1 = arith.constant 0 : i32
    return %c0_i32, %c0_i32_0 : i32, i32
  }
  func.func @transform_6(%arg0: i32) -> (i32, i32, i32) {
    %c0_i32 = arith.constant 0 : i32
    %c0_i32_0 = arith.constant 0 : i32
    %c0_i32_1 = arith.constant 0 : i32
    %c0_i32_2 = arith.constant 0 : i32
    return %c0_i32, %c0_i32_0, %c0_i32_1 : i32, i32, i32
  }
  func.func @transform_7(%arg0: i32) -> (i32, i32) {
    %c0_i32 = arith.constant 0 : i32
    %c0_i32_0 = arith.constant 0 : i32
    %c0_i32_1 = arith.constant 0 : i32
    return %c0_i32, %c0_i32_0 : i32, i32
  }
  func.func @transform_8(%arg0: i32) -> (i32, i32) {
    %c0_i32 = arith.constant 0 : i32
    %c0_i32_0 = arith.constant 0 : i32
    %c0_i32_1 = arith.constant 0 : i32
    return %c0_i32, %c0_i32_0 : i32, i32
  }
}

</mosaic_0001>

<llo_original>
// kernel: atari_lstm_forward.3
$region0: #{atari_lstm_forward.3}
  #allocation0 [shape = 'u32[]', space=smem, size = 0x4, offset = 0x4, fixed_abs, tag = 'smem constant byte address 0x4 - core index']
  #allocation1 [shape = 'u32[72,128]{1,0:T(1,128)}', space=vmem, size = 0x9000, scoped, tag = 'internal scratch']
  %s0 = inlined_call_operand.vmem [shape: bf16[1152,256], index: 0, kind: input, shape index: {}]
  %s1 = inlined_call_operand.vmem [shape: bf16[256,16], index: 1, kind: input, shape index: {}]
  %s2 = inlined_call_operand.vmem [shape: f32[1,16], index: 2, kind: input, shape index: {}]
  %s3 = inlined_call_operand.vmem [shape: bf16[1152,16], index: 3, kind: output, shape index: {}]
  %s4 = sld [smem:[#allocation0]]
  $region45: #{atari_lstm_forward.3} parent=0
    _
  %s6 = ssub.s32 1, %s4
  %s7 = scalar_select 0, %s6, %s4
  loop: start=0, step=1, limit=5
  $region2: #{atari_lstm_forward.3} parent=0 // loop_pre_header
    _
  $region3: #{atari_lstm_forward.3} parent=0 // loop_header
    %s9 = sphi 0, %s13
    %p10 = scmp.ge.s32.totalorder %s9, 5
    %s19 = sphi 0, %s21
    %s22 = sphi 0, %s19
    %s23 = sphi 0, %s22
    %s39 = sphi 0, %s23
    %s43 = sphi 0, %s43
    %s45 = sphi 0, %s43
    %s46 = sphi 0, %s45
    %s60 = sphi 0, %s46
    %s64 = sphi 0, %s64
    %s66 = sphi 0, %s64
    %s67 = sphi 0, %s66
    %s81 = sphi 0, %s67
    %s87 = sphi 0, %s89
    %s90 = sphi 0, %s87
    %s91 = sphi 0, %s90
    %s107 = sphi 0, %s91
  $region4: #{atari_lstm_forward.3} parent=0 // loop_header_branch
    %12 = sbr.rel (%p10) target = $region8
  $region5: #{atari_lstm_forward.3} parent=0 // loop_body
    %s14 = ssub.s32 %s9, 1
    %s15 = ssub.s32 %s9, 2
    %s16 = sadd.s32 %s9, 1
    %s17 = ssub.s32 %s9, %s16
    %p18 = scmp.eq.s32.totalorder %s17, 0
    %s20 = sadd.s32 %s19, 1
    %s21 = scalar_select %p18, %s19, %s20
    %p24 = pneg %p18
    %p25 = scmp.eq.s32.totalorder %s9, 2
    %p26 = por %p24, %p25
    %p27 = scmp.ne.s32.totalorder %s19, %s22
    %p28 = scmp.eq.s32.totalorder %s9, 0
    %p29 = por %p27, %p28
    %p30 = scmp.ne.s32.totalorder %s19, %s22
    %p31 = scmp.eq.s32.totalorder %s14, 2
    %p32 = por %p30, %p31
    %p33 = scmp.ne.s32.totalorder %s22, %s23
    %p34 = scmp.eq.s32.totalorder %s14, 0
    %p35 = por %p33, %p34
    %p36 = scmp.ne.s32.totalorder %s22, %s23
    %p37 = scmp.eq.s32.totalorder %s15, 2
    %p38 = por %p36, %p37
    %p40 = scmp.ne.s32.totalorder %s23, %s39
    %p41 = scmp.eq.s32.totalorder %s15, 0
    %p42 = por %p40, %p41
    %s44 = sadd.s32 %s43, 1
    %p47 = scmp.eq.s32.totalorder %s9, 2
    %p48 = scmp.ne.s32.totalorder %s43, %s45
    %p49 = scmp.eq.s32.totalorder %s9, 0
    %p50 = por %p48, %p49
    %p51 = scmp.ne.s32.totalorder %s43, %s45
    %p52 = scmp.eq.s32.totalorder %s14, 2
    %p53 = por %p51, %p52
    %p54 = scmp.ne.s32.totalorder %s45, %s46
    %p55 = scmp.eq.s32.totalorder %s14, 0
    %p56 = por %p54, %p55
    %p57 = scmp.ne.s32.totalorder %s45, %s46
    %p58 = scmp.eq.s32.totalorder %s15, 2
    %p59 = por %p57, %p58
    %p61 = scmp.ne.s32.totalorder %s46, %s60
    %p62 = scmp.eq.s32.totalorder %s15, 0
    %p63 = por %p61, %p62
    %s65 = sadd.s32 %s64, 1
    %p68 = scmp.eq.s32.totalorder %s9, 2
    %p69 = scmp.ne.s32.totalorder %s64, %s66
    %p70 = scmp.eq.s32.totalorder %s9, 0
    %p71 = por %p69, %p70
    %p72 = scmp.ne.s32.totalorder %s64, %s66
    %p73 = scmp.eq.s32.totalorder %s14, 2
    %p74 = por %p72, %p73
    %p75 = scmp.ne.s32.totalorder %s66, %s67
    %p76 = scmp.eq.s32.totalorder %s14, 0
    %p77 = por %p75, %p76
    %p78 = scmp.ne.s32.totalorder %s66, %s67
    %p79 = scmp.eq.s32.totalorder %s15, 2
    %p80 = por %p78, %p79
    %p82 = scmp.ne.s32.totalorder %s67, %s81
    %p83 = scmp.eq.s32.totalorder %s15, 0
    %p84 = por %p82, %p83
    %s85 = ssub.s32 %s9, %s16
    %p86 = scmp.eq.s32.totalorder %s85, 0
    %s88 = sadd.s32 %s87, 1
    %s89 = scalar_select %p86, %s87, %s88
    %p92 = pneg %p86
    %p93 = scmp.eq.s32.totalorder %s9, 2
    %p94 = por %p92, %p93
    %p95 = scmp.ne.s32.totalorder %s87, %s90
    %p96 = scmp.eq.s32.totalorder %s9, 0
    %p97 = por %p95, %p96
    %p98 = scmp.ne.s32.totalorder %s87, %s90
    %p99 = scmp.eq.s32.totalorder %s14, 2
    %p100 = por %p98, %p99
    %p101 = scmp.ne.s32.totalorder %s90, %s91
    %p102 = scmp.eq.s32.totalorder %s14, 0
    %p103 = por %p101, %p102
    %p104 = scmp.ne.s32.totalorder %s90, %s91
    %p105 = scmp.eq.s32.totalorder %s15, 2
    %p106 = por %p104, %p105
    %p108 = scmp.ne.s32.totalorder %s91, %s107
    %p109 = scmp.eq.s32.totalorder %s15, 0
    %p110 = por %p108, %p109
    %p111 = scmp.le.s32.totalorder 1, %s9
    %p112 = scmp.lt.s32.totalorder %s9, 4
    %p113 = pnand %p111, %p112
    %p114 = pneg %p113
    // Predicated region
    $region9: #{atari_lstm_forward.3} parent=5 // pred_check
      _
    $region10: #{atari_lstm_forward.3} parent=5 // pred_check_branch
      %116 = sbr.rel (%p113) target = $region12
    $region11: #{atari_lstm_forward.3} parent=5 // pred_region
      %s117 = ssub.s32 %s9, 1
      // Predicated region
      $region13: #{atari_lstm_forward.3} parent=11 // pred_check
        %p118 = pneg %p56
      $region14: #{atari_lstm_forward.3} parent=11 // pred_check_branch
        %120 = sbr.rel (%p118) target = $region16
      $region15: #{atari_lstm_forward.3} parent=11 // pred_region
        _
      $region16: #{atari_lstm_forward.3} parent=11 // pred_fallthru
        _
      // Predicated region
      $region17: #{atari_lstm_forward.3} parent=11 // pred_check
        %p121 = pneg %p77
      $region18: #{atari_lstm_forward.3} parent=11 // pred_check_branch
        %123 = sbr.rel (%p121) target = $region20
      $region19: #{atari_lstm_forward.3} parent=11 // pred_region
        _
      $region20: #{atari_lstm_forward.3} parent=11 // pred_fallthru
        _
    $region12: #{atari_lstm_forward.3} parent=5 // pred_fallthru
      _
    %p124 = scmp.lt.s32.totalorder %s9, 3
    // Predicated region
    $region21: #{atari_lstm_forward.3} parent=5 // pred_check
      %p125 = pneg %p124
    $region22: #{atari_lstm_forward.3} parent=5 // pred_check_branch
      %127 = sbr.rel (%p125) target = $region24
    $region23: #{atari_lstm_forward.3} parent=5 // pred_region
      // Predicated region
      $region25: #{atari_lstm_forward.3} parent=23 // pred_check
        %p128 = pneg %p29
      $region26: #{atari_lstm_forward.3} parent=23 // pred_check_branch
        %130 = sbr.rel (%p128) target = $region28
      $region27: #{atari_lstm_forward.3} parent=23 // pred_region
        %s131 = smul.u32 48, %s9
        %p132 = scmp.lt.s32.totalorder %s131, 143
        %s133 = scalar_select %p132, %s131, 143
        %s134 = smul.addr %s133, 2
        %s135 = smul.addr %s134, 4
        %s136 = scalar_lea.vmem %s0, %s135
        %s137 = smul.u32 48, %s9
      $region28: #{atari_lstm_forward.3} parent=23 // pred_fallthru
        _
    $region24: #{atari_lstm_forward.3} parent=5 // pred_fallthru
      _
    %p138 = scmp.le.s32.totalorder 1, %s9
    %p139 = scmp.lt.s32.totalorder %s9, 4
    %p140 = pnand %p138, %p139
    %p141 = pneg %p140
    // Predicated region
    $region29: #{atari_lstm_forward.3} parent=5 // pred_check
      _
    $region30: #{atari_lstm_forward.3} parent=5 // pred_check_branch
      %143 = sbr.rel (%p140) target = $region32
    $region31: #{atari_lstm_forward.3} parent=5 // pred_region
      %s144 = ssub.s32 %s9, 1
      %s145 = smul.u32 48, %s14
      %p146 = scmp.lt.s32.totalorder %s145, 143
      %s147 = scalar_select %p146, %s145, 143
      %s148 = smul.addr %s147, 2
      %s149 = smul.addr %s148, 4
      %s150 = scalar_lea.vmem %s0, %s149
      %p151 = pneg %p35
      %p152 = pneg %p32
      %p153 = pneg %p56
      %p154 = pneg %p53
      %p155 = pneg %p77
      %p156 = pneg %p74
      %p157 = pneg %p103
      %p158 = pneg %p100
      %s159 = smul.u32 48, %s14
      %p160 = scmp.lt.s32.totalorder %s159, 143
      %s161 = scalar_select %p160, %s159, 143
      %s162 = smul.addr %s161, 4
      %s163 = scalar_lea.vmem %s3, %s162
      %s164 = smul.u32 48, %s14
      %p165 = scmp.lt.s32.totalorder %s164, 143
      %s166 = scalar_select %p165, %s164, 143
      %s167 = smul.addr %s166, 2
      %s168 = smul.addr %s167, 4
      %s169 = scalar_lea.vmem %s0, %s168
      %s170 = smul.u32 48, %s14
      %s171 = smul.u32 48, %s14
      %p172 = scmp.lt.s32.totalorder %s171, 143
      %s173 = scalar_select %p172, %s171, 143
      %s174 = smul.addr %s173, 4
      %s175 = scalar_lea.vmem %s3, %s174
      %s176 = smul.u32 48, %s14
      %v177 = vld [vmem:[%s169] sm:$0xff]
      %v178 = vld [vmem:[%s169 + $0x8] sm:$0xff]
      %v179 = vld [vmem:[%s169 + $0x10] sm:$0xff]
      %v180 = vld [vmem:[%s169 + $0x18] sm:$0xff]
      %v181 = vld [vmem:[%s169 + $0x20] sm:$0xff]
      %v182 = vld [vmem:[%s169 + $0x28] sm:$0xff]
      %v183 = vld [vmem:[%s169 + $0x30] sm:$0xff]
      %v184 = vld [vmem:[%s169 + $0x38] sm:$0xff]
      %v185 = vld [vmem:[%s169 + $0x40] sm:$0xff]
      %v186 = vld [vmem:[%s169 + $0x48] sm:$0xff]
      %v187 = vld [vmem:[%s169 + $0x50] sm:$0xff]
      %v188 = vld [vmem:[%s169 + $0x58] sm:$0xff]
      %v189 = vld [vmem:[%s169 + $0x60] sm:$0xff]
      %v190 = vld [vmem:[%s169 + $0x68] sm:$0xff]
      %v191 = vld [vmem:[%s169 + $0x70] sm:$0xff]
      %v192 = vld [vmem:[%s169 + $0x78] sm:$0xff]
      %v193 = vld [vmem:[%s169 + $0x80] sm:$0xff]
      %v194 = vld [vmem:[%s169 + $0x88] sm:$0xff]
      %v195 = vld [vmem:[%s169 + $0x90] sm:$0xff]
      %v196 = vld [vmem:[%s169 + $0x98] sm:$0xff]
      %v197 = vld [vmem:[%s169 + $0xa0] sm:$0xff]
      %v198 = vld [vmem:[%s169 + $0xa8] sm:$0xff]
      %v199 = vld [vmem:[%s169 + $0xb0] sm:$0xff]
      %v200 = vld [vmem:[%s169 + $0xb8] sm:$0xff]
      %v201 = vld [vmem:[%s169 + $0xc0] sm:$0xff]
      %v202 = vld [vmem:[%s169 + $0xc8] sm:$0xff]
      %v203 = vld [vmem:[%s169 + $0xd0] sm:$0xff]
      %v204 = vld [vmem:[%s169 + $0xd8] sm:$0xff]
      %v205 = vld [vmem:[%s169 + $0xe0] sm:$0xff]
      %v206 = vld [vmem:[%s169 + $0xe8] sm:$0xff]
      %v207 = vld [vmem:[%s169 + $0xf0] sm:$0xff]
      %v208 = vld [vmem:[%s169 + $0xf8] sm:$0xff]
      %v209 = vld [vmem:[%s169 + $0x100] sm:$0xff]
      %v210 = vld [vmem:[%s169 + $0x108] sm:$0xff]
      %v211 = vld [vmem:[%s169 + $0x110] sm:$0xff]
      %v212 = vld [vmem:[%s169 + $0x118] sm:$0xff]
      %v213 = vld [vmem:[%s169 + $0x120] sm:$0xff]
      %v214 = vld [vmem:[%s169 + $0x128] sm:$0xff]
      %v215 = vld [vmem:[%s169 + $0x130] sm:$0xff]
      %v216 = vld [vmem:[%s169 + $0x138] sm:$0xff]
      %v217 = vld [vmem:[%s169 + $0x140] sm:$0xff]
      %v218 = vld [vmem:[%s169 + $0x148] sm:$0xff]
      %v219 = vld [vmem:[%s169 + $0x150] sm:$0xff]
      %v220 = vld [vmem:[%s169 + $0x158] sm:$0xff]
      %v221 = vld [vmem:[%s169 + $0x160] sm:$0xff]
      %v222 = vld [vmem:[%s169 + $0x168] sm:$0xff]
      %v223 = vld [vmem:[%s169 + $0x170] sm:$0xff]
      %v224 = vld [vmem:[%s169 + $0x178] sm:$0xff]
      %v225 = vld [vmem:[%s1] sm:$0xf]
      %v226 = vld [vmem:[%s1 + $0x4] sm:$0xf]
      %v227 = vld [vmem:[%s1 + $0x8] sm:$0xf]
      %v228 = vld [vmem:[%s1 + $0xc] sm:$0xf]
      %v229 = vld [vmem:[%s1 + $0x10] sm:$0xf]
      %v230 = vld [vmem:[%s1 + $0x14] sm:$0xf]
      %v231 = vld [vmem:[%s1 + $0x18] sm:$0xf]
      %v232 = vld [vmem:[%s1 + $0x1c] sm:$0xf]
      %v233 = vld [vmem:[%s1 + $0x20] sm:$0xf]
      %v234 = vld [vmem:[%s1 + $0x24] sm:$0xf]
      %v235 = vld [vmem:[%s1 + $0x28] sm:$0xf]
      %v236 = vld [vmem:[%s1 + $0x2c] sm:$0xf]
      %v237 = vld [vmem:[%s1 + $0x30] sm:$0xf]
      %v238 = vld [vmem:[%s1 + $0x34] sm:$0xf]
      %v239 = vld [vmem:[%s1 + $0x38] sm:$0xf]
      %v240 = vld [vmem:[%s1 + $0x3c] sm:$0xf]
      %v241 = vld [vmem:[%s1 + $0x40] sm:$0xf]
      %v242 = vld [vmem:[%s1 + $0x44] sm:$0xf]
      %v243 = vld [vmem:[%s1 + $0x48] sm:$0xf]
      %v244 = vld [vmem:[%s1 + $0x4c] sm:$0xf]
      %v245 = vld [vmem:[%s1 + $0x50] sm:$0xf]
      %v246 = vld [vmem:[%s1 + $0x54] sm:$0xf]
      %v247 = vld [vmem:[%s1 + $0x58] sm:$0xf]
      %v248 = vld [vmem:[%s1 + $0x5c] sm:$0xf]
      %v249 = vld [vmem:[%s1 + $0x60] sm:$0xf]
      %v250 = vld [vmem:[%s1 + $0x64] sm:$0xf]
      %v251 = vld [vmem:[%s1 + $0x68] sm:$0xf]
      %v252 = vld [vmem:[%s1 + $0x6c] sm:$0xf]
      %v253 = vld [vmem:[%s1 + $0x70] sm:$0xf]
      %v254 = vld [vmem:[%s1 + $0x74] sm:$0xf]
      %v255 = vld [vmem:[%s1 + $0x78] sm:$0xf]
      %v256 = vld [vmem:[%s1 + $0x7c] sm:$0xf]
      %v257 = vld [vmem:[%s2] sm:$0x1]
      %v259 = vperm.slane %v257, 0
      %v309 = vunpack.c.l.b16 %v177
      %v310 = vunpack.c.h.b16 %v177
      %v311 = vunpack.c.l.b16 %v178
      %v312 = vunpack.c.h.b16 %v178
      %v313 = vunpack.c.l.b16 %v179
      %v314 = vunpack.c.h.b16 %v179
      %v315 = vunpack.c.l.b16 %v180
      %v316 = vunpack.c.h.b16 %v180
      %v317 = vunpack.c.l.b16 %v181
      %v318 = vunpack.c.h.b16 %v181
      %v319 = vunpack.c.l.b16 %v182
      %v320 = vunpack.c.h.b16 %v182
      %v321 = vunpack.c.l.b16 %v183
      %v322 = vunpack.c.h.b16 %v183
      %v323 = vunpack.c.l.b16 %v184
      %v324 = vunpack.c.h.b16 %v184
      %v325 = vunpack.c.l.b16 %v185
      %v326 = vunpack.c.h.b16 %v185
      %v327 = vunpack.c.l.b16 %v186
      %v328 = vunpack.c.h.b16 %v186
      %v329 = vunpack.c.l.b16 %v187
      %v330 = vunpack.c.h.b16 %v187
      %v331 = vunpack.c.l.b16 %v188
      %v332 = vunpack.c.h.b16 %v188
      %v333 = vunpack.c.l.b16 %v189
      %v334 = vunpack.c.h.b16 %v189
      %v335 = vunpack.c.l.b16 %v190
      %v336 = vunpack.c.h.b16 %v190
      %v337 = vunpack.c.l.b16 %v191
      %v338 = vunpack.c.h.b16 %v191
      %v339 = vunpack.c.l.b16 %v192
      %v340 = vunpack.c.h.b16 %v192
      %v341 = vunpack.c.l.b16 %v193
      %v342 = vunpack.c.h.b16 %v193
      %v343 = vunpack.c.l.b16 %v194
      %v344 = vunpack.c.h.b16 %v194
      %v345 = vunpack.c.l.b16 %v195
      %v346 = vunpack.c.h.b16 %v195
      %v347 = vunpack.c.l.b16 %v196
      %v348 = vunpack.c.h.b16 %v196
      %v349 = vunpack.c.l.b16 %v197
      %v350 = vunpack.c.h.b16 %v197
      %v351 = vunpack.c.l.b16 %v198
      %v352 = vunpack.c.h.b16 %v198
      %v353 = vunpack.c.l.b16 %v199
      %v354 = vunpack.c.h.b16 %v199
      %v355 = vunpack.c.l.b16 %v200
      %v356 = vunpack.c.h.b16 %v200
      %v357 = vunpack.c.l.b16 %v201
      %v358 = vunpack.c.h.b16 %v201
      %v359 = vunpack.c.l.b16 %v202
      %v360 = vunpack.c.h.b16 %v202
      %v361 = vunpack.c.l.b16 %v203
      %v362 = vunpack.c.h.b16 %v203
      %v363 = vunpack.c.l.b16 %v204
      %v364 = vunpack.c.h.b16 %v204
      %v365 = vunpack.c.l.b16 %v205
      %v366 = vunpack.c.h.b16 %v205
      %v367 = vunpack.c.l.b16 %v206
      %v368 = vunpack.c.h.b16 %v206
      %v369 = vunpack.c.l.b16 %v207
      %v370 = vunpack.c.h.b16 %v207
      %v371 = vunpack.c.l.b16 %v208
      %v372 = vunpack.c.h.b16 %v208
      %v373 = vunpack.c.l.b16 %v209
      %v374 = vunpack.c.h.b16 %v209
      %v375 = vunpack.c.l.b16 %v210
      %v376 = vunpack.c.h.b16 %v210
      %v377 = vunpack.c.l.b16 %v211
      %v378 = vunpack.c.h.b16 %v211
      %v379 = vunpack.c.l.b16 %v212
      %v380 = vunpack.c.h.b16 %v212
      %v381 = vunpack.c.l.b16 %v213
      %v382 = vunpack.c.h.b16 %v213
      %v383 = vunpack.c.l.b16 %v214
      %v384 = vunpack.c.h.b16 %v214
      %v385 = vunpack.c.l.b16 %v215
      %v386 = vunpack.c.h.b16 %v215
      %v387 = vunpack.c.l.b16 %v216
      %v388 = vunpack.c.h.b16 %v216
      %v389 = vunpack.c.l.b16 %v217
      %v390 = vunpack.c.h.b16 %v217
      %v391 = vunpack.c.l.b16 %v218
      %v392 = vunpack.c.h.b16 %v218
      %v393 = vunpack.c.l.b16 %v219
      %v394 = vunpack.c.h.b16 %v219
      %v395 = vunpack.c.l.b16 %v220
      %v396 = vunpack.c.h.b16 %v220
      %v397 = vunpack.c.l.b16 %v221
      %v398 = vunpack.c.h.b16 %v221
      %v399 = vunpack.c.l.b16 %v222
      %v400 = vunpack.c.h.b16 %v222
      %v401 = vunpack.c.l.b16 %v223
      %v402 = vunpack.c.h.b16 %v223
      %v403 = vunpack.c.l.b16 %v224
      %v404 = vunpack.c.h.b16 %v224
      %v405 = vpack.c.b16 %v311, %v309
      %v406 = vpack.c.b16 %v312, %v310
      %v407 = vpack.c.b16 %v315, %v313
      %v408 = vpack.c.b16 %v316, %v314
      %v409 = vpack.c.b16 %v319, %v317
      %v410 = vpack.c.b16 %v320, %v318
      %v411 = vpack.c.b16 %v323, %v321
      %v412 = vpack.c.b16 %v324, %v322
      %v413 = vpack.c.b16 %v327, %v325
      %v414 = vpack.c.b16 %v328, %v326
      %v415 = vpack.c.b16 %v331, %v329
      %v416 = vpack.c.b16 %v332, %v330
      %v417 = vpack.c.b16 %v335, %v333
      %v418 = vpack.c.b16 %v336, %v334
      %v419 = vpack.c.b16 %v339, %v337
      %v420 = vpack.c.b16 %v340, %v338
      %v421 = vpack.c.b16 %v343, %v341
      %v422 = vpack.c.b16 %v344, %v342
      %v423 = vpack.c.b16 %v347, %v345
      %v424 = vpack.c.b16 %v348, %v346
      %v425 = vpack.c.b16 %v351, %v349
      %v426 = vpack.c.b16 %v352, %v350
      %v427 = vpack.c.b16 %v355, %v353
      %v428 = vpack.c.b16 %v356, %v354
      %v429 = vpack.c.b16 %v359, %v357
      %v430 = vpack.c.b16 %v360, %v358
      %v431 = vpack.c.b16 %v363, %v361
      %v432 = vpack.c.b16 %v364, %v362
      %v433 = vpack.c.b16 %v367, %v365
      %v434 = vpack.c.b16 %v368, %v366
      %v435 = vpack.c.b16 %v371, %v369
      %v436 = vpack.c.b16 %v372, %v370
      %v437 = vpack.c.b16 %v375, %v373
      %v438 = vpack.c.b16 %v376, %v374
      %v439 = vpack.c.b16 %v379, %v377
      %v440 = vpack.c.b16 %v380, %v378
      %v441 = vpack.c.b16 %v383, %v381
      %v442 = vpack.c.b16 %v384, %v382
      %v443 = vpack.c.b16 %v387, %v385
      %v444 = vpack.c.b16 %v388, %v386
      %v445 = vpack.c.b16 %v391, %v389
      %v446 = vpack.c.b16 %v392, %v390
      %v447 = vpack.c.b16 %v395, %v393
      %v448 = vpack.c.b16 %v396, %v394
      %v449 = vpack.c.b16 %v399, %v397
      %v450 = vpack.c.b16 %v400, %v398
      %v451 = vpack.c.b16 %v403, %v401
      %v452 = vpack.c.b16 %v404, %v402
      %v533 = vunpack.c.l.b16 %v225
      %v534 = vunpack.c.l.b16 %v226
      %v535 = vunpack.c.l.b16 %v227
      %v536 = vunpack.c.l.b16 %v228
      %v537 = vunpack.c.l.b16 %v229
      %v538 = vunpack.c.l.b16 %v230
      %v539 = vunpack.c.l.b16 %v231
      %v540 = vunpack.c.l.b16 %v232
      %v541 = vunpack.c.l.b16 %v233
      %v542 = vunpack.c.l.b16 %v234
      %v543 = vunpack.c.l.b16 %v235
      %v544 = vunpack.c.l.b16 %v236
      %v545 = vunpack.c.l.b16 %v237
      %v546 = vunpack.c.l.b16 %v238
      %v547 = vunpack.c.l.b16 %v239
      %v548 = vunpack.c.l.b16 %v240
      %v549 = vunpack.c.l.b16 %v241
      %v550 = vunpack.c.l.b16 %v242
      %v551 = vunpack.c.l.b16 %v243
      %v552 = vunpack.c.l.b16 %v244
      %v553 = vunpack.c.l.b16 %v245
      %v554 = vunpack.c.l.b16 %v246
      %v555 = vunpack.c.l.b16 %v247
      %v556 = vunpack.c.l.b16 %v248
      %v557 = vunpack.c.l.b16 %v249
      %v558 = vunpack.c.l.b16 %v250
      %v559 = vunpack.c.l.b16 %v251
      %v560 = vunpack.c.l.b16 %v252
      %v561 = vunpack.c.l.b16 %v253
      %v562 = vunpack.c.l.b16 %v254
      %v563 = vunpack.c.l.b16 %v255
      %v564 = vunpack.c.l.b16 %v256
      %v565 = vpack.c.b16 %v534, %v533
      %v566 = vpack.c.b16 %v536, %v535
      %v567 = vpack.c.b16 %v538, %v537
      %v568 = vpack.c.b16 %v540, %v539
      %v569 = vpack.c.b16 %v542, %v541
      %v570 = vpack.c.b16 %v544, %v543
      %v571 = vpack.c.b16 %v546, %v545
      %v572 = vpack.c.b16 %v548, %v547
      %v573 = vpack.c.b16 %v550, %v549
      %v574 = vpack.c.b16 %v552, %v551
      %v575 = vpack.c.b16 %v554, %v553
      %v576 = vpack.c.b16 %v556, %v555
      %v577 = vpack.c.b16 %v558, %v557
      %v578 = vpack.c.b16 %v560, %v559
      %v579 = vpack.c.b16 %v562, %v561
      %v580 = vpack.c.b16 %v564, %v563
      %597 = vmatpush.bf16.msra.mxu0 %v572
      %598 = vmatpush.bf16.msra.mxu0 %v571
      %599 = vmatpush.bf16.msra.mxu0 %v570
      %600 = vmatpush.bf16.msra.mxu0 %v569
      %601 = vmatpush.bf16.msra.mxu0 %v568
      %602 = vmatpush.bf16.msra.mxu0 %v567
      %603 = vmatpush.bf16.msra.mxu0 %v566
      %604 = vmatpush.bf16.msra.mxu0 %v565
      %605 = vmatmul.bf16.gmra.mxu0 %v405
      %v606 = vpop.f32.mrf.mxu0
      %v607 = vadd.f32 %v259, %v606
      %v608 = vpop.f32.mrf.mxu0
      %v609 = vadd.f32 %v259, %v608
      %610 = vmatmul.bf16.gmra.mxu0 %v407
      %v611 = vpop.f32.mrf.mxu0
      %v612 = vadd.f32 %v259, %v611
      %v613 = vpop.f32.mrf.mxu0
      %v614 = vadd.f32 %v259, %v613
      %615 = vmatmul.bf16.gmra.mxu0 %v409
      %v616 = vpop.f32.mrf.mxu0
      %v617 = vadd.f32 %v259, %v616
      %v618 = vpop.f32.mrf.mxu0
      %v619 = vadd.f32 %v259, %v618
      %620 = vmatmul.bf16.gmra.mxu0 %v411
      %v621 = vpop.f32.mrf.mxu0
      %v622 = vadd.f32 %v259, %v621
      %v623 = vpop.f32.mrf.mxu0
      %v624 = vadd.f32 %v259, %v623
      %625 = vmatmul.bf16.gmra.mxu0 %v413
      %v626 = vpop.f32.mrf.mxu0
      %v627 = vadd.f32 %v259, %v626
      %v628 = vpop.f32.mrf.mxu0
      %v629 = vadd.f32 %v259, %v628
      %630 = vmatmul.bf16.gmra.mxu0 %v415
      %v631 = vpop.f32.mrf.mxu0
      %v632 = vadd.f32 %v259, %v631
      %v633 = vpop.f32.mrf.mxu0
      %v634 = vadd.f32 %v259, %v633
      %635 = vmatmul.bf16.gmra.mxu0 %v417
      %v636 = vpop.f32.mrf.mxu0
      %v637 = vadd.f32 %v259, %v636
      %v638 = vpop.f32.mrf.mxu0
      %v639 = vadd.f32 %v259, %v638
      %640 = vmatmul.bf16.gmra.mxu0 %v419
      %v641 = vpop.f32.mrf.mxu0
      %v642 = vadd.f32 %v259, %v641
      %v643 = vpop.f32.mrf.mxu0
      %v644 = vadd.f32 %v259, %v643
      %645 = vmatmul.bf16.gmra.mxu0 %v421
      %v646 = vpop.f32.mrf.mxu0
      %v647 = vadd.f32 %v259, %v646
      %v648 = vpop.f32.mrf.mxu0
      %v649 = vadd.f32 %v259, %v648
      %650 = vmatmul.bf16.gmra.mxu0 %v423
      %v651 = vpop.f32.mrf.mxu0
      %v652 = vadd.f32 %v259, %v651
      %v653 = vpop.f32.mrf.mxu0
      %v654 = vadd.f32 %v259, %v653
      %655 = vmatmul.bf16.gmra.mxu0 %v425
      %v656 = vpop.f32.mrf.mxu0
      %v657 = vadd.f32 %v259, %v656
      %v658 = vpop.f32.mrf.mxu0
      %v659 = vadd.f32 %v259, %v658
      %660 = vmatmul.bf16.gmra.mxu0 %v427
      %v661 = vpop.f32.mrf.mxu0
      %v662 = vadd.f32 %v259, %v661
      %v663 = vpop.f32.mrf.mxu0
      %v664 = vadd.f32 %v259, %v663
      %665 = vmatmul.bf16.gmra.mxu0 %v429
      %v666 = vpop.f32.mrf.mxu0
      %v667 = vadd.f32 %v259, %v666
      %v668 = vpop.f32.mrf.mxu0
      %v669 = vadd.f32 %v259, %v668
      %670 = vmatmul.bf16.gmra.mxu0 %v431
      %v671 = vpop.f32.mrf.mxu0
      %v672 = vadd.f32 %v259, %v671
      %v673 = vpop.f32.mrf.mxu0
      %v674 = vadd.f32 %v259, %v673
      %675 = vmatmul.bf16.gmra.mxu0 %v433
      %v676 = vpop.f32.mrf.mxu0
      %v677 = vadd.f32 %v259, %v676
      %v678 = vpop.f32.mrf.mxu0
      %v679 = vadd.f32 %v259, %v678
      %680 = vmatmul.bf16.gmra.mxu0 %v435
      %v681 = vpop.f32.mrf.mxu0
      %v682 = vadd.f32 %v259, %v681
      %v683 = vpop.f32.mrf.mxu0
      %v684 = vadd.f32 %v259, %v683
      %685 = vmatmul.bf16.gmra.mxu0 %v437
      %v686 = vpop.f32.mrf.mxu0
      %v687 = vadd.f32 %v259, %v686
      %v688 = vpop.f32.mrf.mxu0
      %v689 = vadd.f32 %v259, %v688
      %690 = vmatmul.bf16.gmra.mxu0 %v439
      %v691 = vpop.f32.mrf.mxu0
      %v692 = vadd.f32 %v259, %v691
      %v693 = vpop.f32.mrf.mxu0
      %v694 = vadd.f32 %v259, %v693
      %695 = vmatmul.bf16.gmra.mxu0 %v441
      %v696 = vpop.f32.mrf.mxu0
      %v697 = vadd.f32 %v259, %v696
      %v698 = vpop.f32.mrf.mxu0
      %v699 = vadd.f32 %v259, %v698
      %700 = vmatmul.bf16.gmra.mxu0 %v443
      %v701 = vpop.f32.mrf.mxu0
      %v702 = vadd.f32 %v259, %v701
      %v703 = vpop.f32.mrf.mxu0
      %v704 = vadd.f32 %v259, %v703
      %705 = vmatmul.bf16.gmra.mxu0 %v445
      %v706 = vpop.f32.mrf.mxu0
      %v707 = vadd.f32 %v259, %v706
      %v708 = vpop.f32.mrf.mxu0
      %v709 = vadd.f32 %v259, %v708
      %710 = vmatmul.bf16.gmra.mxu0 %v447
      %v711 = vpop.f32.mrf.mxu0
      %v712 = vadd.f32 %v259, %v711
      %v713 = vpop.f32.mrf.mxu0
      %v714 = vadd.f32 %v259, %v713
      %715 = vmatmul.bf16.gmra.mxu0 %v449
      %v716 = vpop.f32.mrf.mxu0
      %v717 = vadd.f32 %v259, %v716
      %v718 = vpop.f32.mrf.mxu0
      %v719 = vadd.f32 %v259, %v718
      %720 = vmatmul.bf16.gmra.mxu0 %v451
      %v721 = vpop.f32.mrf.mxu0
      %v722 = vadd.f32 %v259, %v721
      %v723 = vpop.f32.mrf.mxu0
      %v724 = vadd.f32 %v259, %v723
      %725 = vdwg.mxu0
      %726 = vmatpush.bf16.msra.mxu0 %v580
      %727 = vmatpush.bf16.msra.mxu0 %v579
      %728 = vmatpush.bf16.msra.mxu0 %v578
      %729 = vmatpush.bf16.msra.mxu0 %v577
      %730 = vmatpush.bf16.msra.mxu0 %v576
      %731 = vmatpush.bf16.msra.mxu0 %v575
      %732 = vmatpush.bf16.msra.mxu0 %v574
      %733 = vmatpush.bf16.msra.mxu0 %v573
      %734 = vmatmul.bf16.gmra.mxu0 %v406
      %v735 = vpop.f32.mrf.mxu0
      %v736 = vadd.f32 %v607, %v735
      %v737 = vpop.f32.mrf.mxu0
      %v738 = vadd.f32 %v609, %v737
      %739 = vmatmul.bf16.gmra.mxu0 %v408
      %v740 = vpop.f32.mrf.mxu0
      %v741 = vadd.f32 %v612, %v740
      %v742 = vpop.f32.mrf.mxu0
      %v743 = vadd.f32 %v614, %v742
      %744 = vmatmul.bf16.gmra.mxu0 %v410
      %v745 = vpop.f32.mrf.mxu0
      %v746 = vadd.f32 %v617, %v745
      %v747 = vpop.f32.mrf.mxu0
      %v748 = vadd.f32 %v619, %v747
      %749 = vmatmul.bf16.gmra.mxu0 %v412
      %v750 = vpop.f32.mrf.mxu0
      %v751 = vadd.f32 %v622, %v750
      %v752 = vpop.f32.mrf.mxu0
      %v753 = vadd.f32 %v624, %v752
      %754 = vmatmul.bf16.gmra.mxu0 %v414
      %v755 = vpop.f32.mrf.mxu0
      %v756 = vadd.f32 %v627, %v755
      %v757 = vpop.f32.mrf.mxu0
      %v758 = vadd.f32 %v629, %v757
      %759 = vmatmul.bf16.gmra.mxu0 %v416
      %v760 = vpop.f32.mrf.mxu0
      %v761 = vadd.f32 %v632, %v760
      %v762 = vpop.f32.mrf.mxu0
      %v763 = vadd.f32 %v634, %v762
      %764 = vmatmul.bf16.gmra.mxu0 %v418
      %v765 = vpop.f32.mrf.mxu0
      %v766 = vadd.f32 %v637, %v765
      %v767 = vpop.f32.mrf.mxu0
      %v768 = vadd.f32 %v639, %v767
      %769 = vmatmul.bf16.gmra.mxu0 %v420
      %v770 = vpop.f32.mrf.mxu0
      %v771 = vadd.f32 %v642, %v770
      %v772 = vpop.f32.mrf.mxu0
      %v773 = vadd.f32 %v644, %v772
      %774 = vmatmul.bf16.gmra.mxu0 %v422
      %v775 = vpop.f32.mrf.mxu0
      %v776 = vadd.f32 %v647, %v775
      %v777 = vpop.f32.mrf.mxu0
      %v778 = vadd.f32 %v649, %v777
      %779 = vmatmul.bf16.gmra.mxu0 %v424
      %v780 = vpop.f32.mrf.mxu0
      %v781 = vadd.f32 %v652, %v780
      %v782 = vpop.f32.mrf.mxu0
      %v783 = vadd.f32 %v654, %v782
      %784 = vmatmul.bf16.gmra.mxu0 %v426
      %v785 = vpop.f32.mrf.mxu0
      %v786 = vadd.f32 %v657, %v785
      %v787 = vpop.f32.mrf.mxu0
      %v788 = vadd.f32 %v659, %v787
      %789 = vmatmul.bf16.gmra.mxu0 %v428
      %v790 = vpop.f32.mrf.mxu0
      %v791 = vadd.f32 %v662, %v790
      %v792 = vpop.f32.mrf.mxu0
      %v793 = vadd.f32 %v664, %v792
      %794 = vmatmul.bf16.gmra.mxu0 %v430
      %v795 = vpop.f32.mrf.mxu0
      %v796 = vadd.f32 %v667, %v795
      %v797 = vpop.f32.mrf.mxu0
      %v798 = vadd.f32 %v669, %v797
      %799 = vmatmul.bf16.gmra.mxu0 %v432
      %v800 = vpop.f32.mrf.mxu0
      %v801 = vadd.f32 %v672, %v800
      %v802 = vpop.f32.mrf.mxu0
      %v803 = vadd.f32 %v674, %v802
      %804 = vmatmul.bf16.gmra.mxu0 %v434
      %v805 = vpop.f32.mrf.mxu0
      %v806 = vadd.f32 %v677, %v805
      %v807 = vpop.f32.mrf.mxu0
      %v808 = vadd.f32 %v679, %v807
      %809 = vmatmul.bf16.gmra.mxu0 %v436
      %v810 = vpop.f32.mrf.mxu0
      %v811 = vadd.f32 %v682, %v810
      %v812 = vpop.f32.mrf.mxu0
      %v813 = vadd.f32 %v684, %v812
      %814 = vmatmul.bf16.gmra.mxu0 %v438
      %v815 = vpop.f32.mrf.mxu0
      %v816 = vadd.f32 %v687, %v815
      %v817 = vpop.f32.mrf.mxu0
      %v818 = vadd.f32 %v689, %v817
      %819 = vmatmul.bf16.gmra.mxu0 %v440
      %v820 = vpop.f32.mrf.mxu0
      %v821 = vadd.f32 %v692, %v820
      %v822 = vpop.f32.mrf.mxu0
      %v823 = vadd.f32 %v694, %v822
      %824 = vmatmul.bf16.gmra.mxu0 %v442
      %v825 = vpop.f32.mrf.mxu0
      %v826 = vadd.f32 %v697, %v825
      %v827 = vpop.f32.mrf.mxu0
      %v828 = vadd.f32 %v699, %v827
      %829 = vmatmul.bf16.gmra.mxu0 %v444
      %v830 = vpop.f32.mrf.mxu0
      %v831 = vadd.f32 %v702, %v830
      %v832 = vpop.f32.mrf.mxu0
      %v833 = vadd.f32 %v704, %v832
      %834 = vmatmul.bf16.gmra.mxu0 %v446
      %v835 = vpop.f32.mrf.mxu0
      %v836 = vadd.f32 %v707, %v835
      %v837 = vpop.f32.mrf.mxu0
      %v838 = vadd.f32 %v709, %v837
      %839 = vmatmul.bf16.gmra.mxu0 %v448
      %v840 = vpop.f32.mrf.mxu0
      %v841 = vadd.f32 %v712, %v840
      %v842 = vpop.f32.mrf.mxu0
      %v843 = vadd.f32 %v714, %v842
      %844 = vmatmul.bf16.gmra.mxu0 %v450
      %v845 = vpop.f32.mrf.mxu0
      %v846 = vadd.f32 %v717, %v845
      %v847 = vpop.f32.mrf.mxu0
      %v848 = vadd.f32 %v719, %v847
      %849 = vmatmul.bf16.gmra.mxu0 %v452
      %v850 = vpop.f32.mrf.mxu0
      %v851 = vadd.f32 %v722, %v850
      %v852 = vpop.f32.mrf.mxu0
      %v853 = vadd.f32 %v724, %v852
      %854 = vdwg.mxu0
      %v855 = vmax.f32 %v736, 0.0
      %v856 = vmax.f32 %v738, 0.0
      %v857 = vmax.f32 %v741, 0.0
      %v858 = vmax.f32 %v743, 0.0
      %v859 = vmax.f32 %v746, 0.0
      %v860 = vmax.f32 %v748, 0.0
      %v861 = vmax.f32 %v751, 0.0
      %v862 = vmax.f32 %v753, 0.0
      %v863 = vmax.f32 %v756, 0.0
      %v864 = vmax.f32 %v758, 0.0
      %v865 = vmax.f32 %v761, 0.0
      %v866 = vmax.f32 %v763, 0.0
      %v867 = vmax.f32 %v766, 0.0
      %v868 = vmax.f32 %v768, 0.0
      %v869 = vmax.f32 %v771, 0.0
      %v870 = vmax.f32 %v773, 0.0
      %v871 = vmax.f32 %v776, 0.0
      %v872 = vmax.f32 %v778, 0.0
      %v873 = vmax.f32 %v781, 0.0
      %v874 = vmax.f32 %v783, 0.0
      %v875 = vmax.f32 %v786, 0.0
      %v876 = vmax.f32 %v788, 0.0
      %v877 = vmax.f32 %v791, 0.0
      %v878 = vmax.f32 %v793, 0.0
      %v879 = vmax.f32 %v796, 0.0
      %v880 = vmax.f32 %v798, 0.0
      %v881 = vmax.f32 %v801, 0.0
      %v882 = vmax.f32 %v803, 0.0
      %v883 = vmax.f32 %v806, 0.0
      %v884 = vmax.f32 %v808, 0.0
      %v885 = vmax.f32 %v811, 0.0
      %v886 = vmax.f32 %v813, 0.0
      %v887 = vmax.f32 %v816, 0.0
      %v888 = vmax.f32 %v818, 0.0
      %v889 = vmax.f32 %v821, 0.0
      %v890 = vmax.f32 %v823, 0.0
      %v891 = vmax.f32 %v826, 0.0
      %v892 = vmax.f32 %v828, 0.0
      %v893 = vmax.f32 %v831, 0.0
      %v894 = vmax.f32 %v833, 0.0
      %v895 = vmax.f32 %v836, 0.0
      %v896 = vmax.f32 %v838, 0.0
      %v897 = vmax.f32 %v841, 0.0
      %v898 = vmax.f32 %v843, 0.0
      %v899 = vmax.f32 %v846, 0.0
      %v900 = vmax.f32 %v848, 0.0
      %v901 = vmax.f32 %v851, 0.0
      %v902 = vmax.f32 %v853, 0.0
      %v903 = vpack.c.bf16 %v855, %v855
      %v904 = vpack.c.bf16 %v856, %v856
      %v905 = vpack.c.bf16 %v857, %v857
      %v906 = vpack.c.bf16 %v858, %v858
      %v907 = vpack.c.bf16 %v859, %v859
      %v908 = vpack.c.bf16 %v860, %v860
      %v909 = vpack.c.bf16 %v861, %v861
      %v910 = vpack.c.bf16 %v862, %v862
      %v911 = vpack.c.bf16 %v863, %v863
      %v912 = vpack.c.bf16 %v864, %v864
      %v913 = vpack.c.bf16 %v865, %v865
      %v914 = vpack.c.bf16 %v866, %v866
      %v915 = vpack.c.bf16 %v867, %v867
      %v916 = vpack.c.bf16 %v868, %v868
      %v917 = vpack.c.bf16 %v869, %v869
      %v918 = vpack.c.bf16 %v870, %v870
      %v919 = vpack.c.bf16 %v871, %v871
      %v920 = vpack.c.bf16 %v872, %v872
      %v921 = vpack.c.bf16 %v873, %v873
      %v922 = vpack.c.bf16 %v874, %v874
      %v923 = vpack.c.bf16 %v875, %v875
      %v924 = vpack.c.bf16 %v876, %v876
      %v925 = vpack.c.bf16 %v877, %v877
      %v926 = vpack.c.bf16 %v878, %v878
      %v927 = vpack.c.bf16 %v879, %v879
      %v928 = vpack.c.bf16 %v880, %v880
      %v929 = vpack.c.bf16 %v881, %v881
      %v930 = vpack.c.bf16 %v882, %v882
      %v931 = vpack.c.bf16 %v883, %v883
      %v932 = vpack.c.bf16 %v884, %v884
      %v933 = vpack.c.bf16 %v885, %v885
      %v934 = vpack.c.bf16 %v886, %v886
      %v935 = vpack.c.bf16 %v887, %v887
      %v936 = vpack.c.bf16 %v888, %v888
      %v937 = vpack.c.bf16 %v889, %v889
      %v938 = vpack.c.bf16 %v890, %v890
      %v939 = vpack.c.bf16 %v891, %v891
      %v940 = vpack.c.bf16 %v892, %v892
      %v941 = vpack.c.bf16 %v893, %v893
      %v942 = vpack.c.bf16 %v894, %v894
      %v943 = vpack.c.bf16 %v895, %v895
      %v944 = vpack.c.bf16 %v896, %v896
      %v945 = vpack.c.bf16 %v897, %v897
      %v946 = vpack.c.bf16 %v898, %v898
      %v947 = vpack.c.bf16 %v899, %v899
      %v948 = vpack.c.bf16 %v900, %v900
      %v949 = vpack.c.bf16 %v901, %v901
      %v950 = vpack.c.bf16 %v902, %v902
      %vm951 = vcmask 125952
      %952 = vst.msk [vmem:[%s175] sm:$0xf] %vm951, %v903
      %953 = vst.msk [vmem:[%s175 + $0x4] sm:$0xf] %vm951, %v904
      %954 = vst.msk [vmem:[%s175 + $0x8] sm:$0xf] %vm951, %v905
      %955 = vst.msk [vmem:[%s175 + $0xc] sm:$0xf] %vm951, %v906
      %956 = vst.msk [vmem:[%s175 + $0x10] sm:$0xf] %vm951, %v907
      %957 = vst.msk [vmem:[%s175 + $0x14] sm:$0xf] %vm951, %v908
      %958 = vst.msk [vmem:[%s175 + $0x18] sm:$0xf] %vm951, %v909
      %959 = vst.msk [vmem:[%s175 + $0x1c] sm:$0xf] %vm951, %v910
      %960 = vst.msk [vmem:[%s175 + $0x20] sm:$0xf] %vm951, %v911
      %961 = vst.msk [vmem:[%s175 + $0x24] sm:$0xf] %vm951, %v912
      %962 = vst.msk [vmem:[%s175 + $0x28] sm:$0xf] %vm951, %v913
      %963 = vst.msk [vmem:[%s175 + $0x2c] sm:$0xf] %vm951, %v914
      %964 = vst.msk [vmem:[%s175 + $0x30] sm:$0xf] %vm951, %v915
      %965 = vst.msk [vmem:[%s175 + $0x34] sm:$0xf] %vm951, %v916
      %966 = vst.msk [vmem:[%s175 + $0x38] sm:$0xf] %vm951, %v917
      %967 = vst.msk [vmem:[%s175 + $0x3c] sm:$0xf] %vm951, %v918
      %968 = vst.msk [vmem:[%s175 + $0x40] sm:$0xf] %vm951, %v919
      %969 = vst.msk [vmem:[%s175 + $0x44] sm:$0xf] %vm951, %v920
      %970 = vst.msk [vmem:[%s175 + $0x48] sm:$0xf] %vm951, %v921
      %971 = vst.msk [vmem:[%s175 + $0x4c] sm:$0xf] %vm951, %v922
      %972 = vst.msk [vmem:[%s175 + $0x50] sm:$0xf] %vm951, %v923
      %973 = vst.msk [vmem:[%s175 + $0x54] sm:$0xf] %vm951, %v924
      %974 = vst.msk [vmem:[%s175 + $0x58] sm:$0xf] %vm951, %v925
      %975 = vst.msk [vmem:[%s175 + $0x5c] sm:$0xf] %vm951, %v926
      %976 = vst.msk [vmem:[%s175 + $0x60] sm:$0xf] %vm951, %v927
      %977 = vst.msk [vmem:[%s175 + $0x64] sm:$0xf] %vm951, %v928
      %978 = vst.msk [vmem:[%s175 + $0x68] sm:$0xf] %vm951, %v929
      %979 = vst.msk [vmem:[%s175 + $0x6c] sm:$0xf] %vm951, %v930
      %980 = vst.msk [vmem:[%s175 + $0x70] sm:$0xf] %vm951, %v931
      %981 = vst.msk [vmem:[%s175 + $0x74] sm:$0xf] %vm951, %v932
      %982 = vst.msk [vmem:[%s175 + $0x78] sm:$0xf] %vm951, %v933
      %983 = vst.msk [vmem:[%s175 + $0x7c] sm:$0xf] %vm951, %v934
      %984 = vst.msk [vmem:[%s175 + $0x80] sm:$0xf] %vm951, %v935
      %985 = vst.msk [vmem:[%s175 + $0x84] sm:$0xf] %vm951, %v936
      %986 = vst.msk [vmem:[%s175 + $0x88] sm:$0xf] %vm951, %v937
      %987 = vst.msk [vmem:[%s175 + $0x8c] sm:$0xf] %vm951, %v938
      %988 = vst.msk [vmem:[%s175 + $0x90] sm:$0xf] %vm951, %v939
      %989 = vst.msk [vmem:[%s175 + $0x94] sm:$0xf] %vm951, %v940
      %990 = vst.msk [vmem:[%s175 + $0x98] sm:$0xf] %vm951, %v941
      %991 = vst.msk [vmem:[%s175 + $0x9c] sm:$0xf] %vm951, %v942
      %992 = vst.msk [vmem:[%s175 + $0xa0] sm:$0xf] %vm951, %v943
      %993 = vst.msk [vmem:[%s175 + $0xa4] sm:$0xf] %vm951, %v944
      %994 = vst.msk [vmem:[%s175 + $0xa8] sm:$0xf] %vm951, %v945
      %995 = vst.msk [vmem:[%s175 + $0xac] sm:$0xf] %vm951, %v946
      %996 = vst.msk [vmem:[%s175 + $0xb0] sm:$0xf] %vm951, %v947
      %997 = vst.msk [vmem:[%s175 + $0xb4] sm:$0xf] %vm951, %v948
      %998 = vst.msk [vmem:[%s175 + $0xb8] sm:$0xf] %vm951, %v949
      %999 = vst.msk [vmem:[%s175 + $0xbc] sm:$0xf] %vm951, %v950
      %s1000 = smul.u32 48, %s14
      %p1001 = scmp.lt.s32.totalorder %s1000, 143
      %s1002 = scalar_select %p1001, %s1000, 143
      %s1003 = smul.addr %s1002, 4
      %s1004 = scalar_lea.vmem %s3, %s1003
      // Predicated region
      $region33: #{atari_lstm_forward.3} parent=31 // pred_check
        %p1005 = pneg %p100
      $region34: #{atari_lstm_forward.3} parent=31 // pred_check_branch
        %1007 = sbr.rel (%p1005) target = $region36
      $region35: #{atari_lstm_forward.3} parent=31 // pred_region
        %s1008 = smul.u32 48, %s14
      $region36: #{atari_lstm_forward.3} parent=31 // pred_fallthru
        _
    $region32: #{atari_lstm_forward.3} parent=5 // pred_fallthru
      _
    %p1009 = scmp.le.s32.totalorder 2, %s9
    // Predicated region
    $region37: #{atari_lstm_forward.3} parent=5 // pred_check
      %p1010 = pneg %p1009
    $region38: #{atari_lstm_forward.3} parent=5 // pred_check_branch
      %1012 = sbr.rel (%p1010) target = $region40
    $region39: #{atari_lstm_forward.3} parent=5 // pred_region
      %s1013 = ssub.s32 %s9, 2
      // Predicated region
      $region41: #{atari_lstm_forward.3} parent=39 // pred_check
        %p1014 = pneg %p106
      $region42: #{atari_lstm_forward.3} parent=39 // pred_check_branch
        %1016 = sbr.rel (%p1014) target = $region44
      $region43: #{atari_lstm_forward.3} parent=39 // pred_region
        %s1017 = smul.u32 48, %s15
        %p1018 = scmp.lt.s32.totalorder %s1017, 143
        %s1019 = scalar_select %p1018, %s1017, 143
        %s1020 = smul.addr %s1019, 4
        %s1021 = scalar_lea.vmem %s3, %s1020
      $region44: #{atari_lstm_forward.3} parent=39 // pred_fallthru
        _
    $region40: #{atari_lstm_forward.3} parent=5 // pred_fallthru
      _
  $region6: #{atari_lstm_forward.3} parent=0 // loop_footer
    %s13 = sadd.s32 1, %s9
  $region7: #{atari_lstm_forward.3} parent=0 // loop_footer_branch
    %8 = sbr.rel target = $region3
  $region8: #{atari_lstm_forward.3} parent=0 // loop_exit
    _

// kernel: atari_lstm_forward.4
$region0: #{atari_lstm_forward.4}
  #allocation0 [shape = 'u32[]', space=smem, size = 0x4, offset = 0x4, fixed_abs, tag = 'smem constant byte address 0x4 - core index']
  #allocation1 [shape = 'u32[72,128]{1,0:T(1,128)}', space=vmem, size = 0x9000, scoped, tag = 'internal scratch']
  #allocation2 [shape = 'f32[128,128]{1,0:T(8,128)}', space=vmem, size = 0x10000, scoped, tag = 'scratch operand']
  %s0 = inlined_call_operand.vmem [shape: bf16[1,128,256], index: 0, kind: input, shape index: {}]
  %s1 = inlined_call_operand.vmem [shape: bf16[128,16], index: 1, kind: input, shape index: {}]
  %s2 = inlined_call_operand.vmem [shape: bf16[256,32], index: 2, kind: input, shape index: {}]
  %s3 = inlined_call_operand.vmem [shape: f32[1,32], index: 3, kind: input, shape index: {}]
  %s4 = inlined_call_operand.vmem [shape: bf16[1,32,128], index: 4, kind: input, shape index: {}]
  %s5 = inlined_call_operand.vmem [shape: f32[1,128], index: 5, kind: input, shape index: {}]
  %s6 = inlined_call_operand.vmem [shape: bf16[128,512], index: 6, kind: input, shape index: {}]
  %s7 = inlined_call_operand.vmem [shape: bf16[16,512], index: 7, kind: input, shape index: {}]
  %s8 = inlined_call_operand.vmem [shape: f32[1,512], index: 8, kind: input, shape index: {}]
  %s9 = inlined_call_operand.vmem [shape: f32[128,512], index: 9, kind: output, shape index: {}]
  %s10 = sld [smem:[#allocation0]]
  $region54: #{atari_lstm_forward.4} parent=0
    _
  %s12 = ssub.s32 1, %s10
  %s13 = scalar_select 0, %s12, %s10
  // Predicated region
  $region2: #{atari_lstm_forward.4} parent=0 // pred_check
    _
  $region3: #{atari_lstm_forward.4} parent=0 // pred_check_branch
    %15 = sbr.rel (0) target = $region5
  $region4: #{atari_lstm_forward.4} parent=0 // pred_region
    _
  $region5: #{atari_lstm_forward.4} parent=0 // pred_fallthru
    _
  // Predicated region
  $region6: #{atari_lstm_forward.4} parent=0 // pred_check
    _
  $region7: #{atari_lstm_forward.4} parent=0 // pred_check_branch
    %17 = sbr.rel (0) target = $region9
  $region8: #{atari_lstm_forward.4} parent=0 // pred_region
    _
  $region9: #{atari_lstm_forward.4} parent=0 // pred_fallthru
    _
  // Predicated region
  $region10: #{atari_lstm_forward.4} parent=0 // pred_check
    _
  $region11: #{atari_lstm_forward.4} parent=0 // pred_check_branch
    %19 = sbr.rel (0) target = $region13
  $region12: #{atari_lstm_forward.4} parent=0 // pred_region
    _
  $region13: #{atari_lstm_forward.4} parent=0 // pred_fallthru
    _
  // Predicated region
  $region14: #{atari_lstm_forward.4} parent=0 // pred_check
    _
  $region15: #{atari_lstm_forward.4} parent=0 // pred_check_branch
    %21 = sbr.rel (0) target = $region17
  $region16: #{atari_lstm_forward.4} parent=0 // pred_region
    _
  $region17: #{atari_lstm_forward.4} parent=0 // pred_fallthru
    _
  // Predicated region
  $region18: #{atari_lstm_forward.4} parent=0 // pred_check
    _
  $region19: #{atari_lstm_forward.4} parent=0 // pred_check_branch
    %23 = sbr.rel (0) target = $region21
  $region20: #{atari_lstm_forward.4} parent=0 // pred_region
    _
  $region21: #{atari_lstm_forward.4} parent=0 // pred_fallthru
    _
  // Predicated region
  $region22: #{atari_lstm_forward.4} parent=0 // pred_check
    _
  $region23: #{atari_lstm_forward.4} parent=0 // pred_check_branch
    %25 = sbr.rel (0) target = $region25
  $region24: #{atari_lstm_forward.4} parent=0 // pred_region
    _
  $region25: #{atari_lstm_forward.4} parent=0 // pred_fallthru
    _
  // Predicated region
  $region26: #{atari_lstm_forward.4} parent=0 // pred_check
    _
  $region27: #{atari_lstm_forward.4} parent=0 // pred_check_branch
    %27 = sbr.rel (0) target = $region29
  $region28: #{atari_lstm_forward.4} parent=0 // pred_region
    _
  $region29: #{atari_lstm_forward.4} parent=0 // pred_fallthru
    _
  // Predicated region
  $region30: #{atari_lstm_forward.4} parent=0 // pred_check
    _
  $region31: #{atari_lstm_forward.4} parent=0 // pred_check_branch
    %29 = sbr.rel (0) target = $region33
  $region32: #{atari_lstm_forward.4} parent=0 // pred_region
    _
  $region33: #{atari_lstm_forward.4} parent=0 // pred_fallthru
    _
  // Predicated region
  $region34: #{atari_lstm_forward.4} parent=0 // pred_check
    _
  $region35: #{atari_lstm_forward.4} parent=0 // pred_check_branch
    %31 = sbr.rel (0) target = $region37
  $region36: #{atari_lstm_forward.4} parent=0 // pred_region
    _
  $region37: #{atari_lstm_forward.4} parent=0 // pred_fallthru
    _
  %p33 = scmp.eq.s32.totalorder 0, 0
  // Predicated region
  $region38: #{atari_lstm_forward.4} parent=0 // pred_check
    %p34 = pneg %p33
  $region39: #{atari_lstm_forward.4} parent=0 // pred_check_branch
    %36 = sbr.rel (%p34) target = $region41
  $region40: #{atari_lstm_forward.4} parent=0 // pred_region
    %37 = vst [vmem:[#allocation2] sm:$0xff] 0.0
    %38 = vst [vmem:[#allocation2 + $0x8] sm:$0xff] 0.0
    %39 = vst [vmem:[#allocation2 + $0x10] sm:$0xff] 0.0
    %40 = vst [vmem:[#allocation2 + $0x18] sm:$0xff] 0.0
    %41 = vst [vmem:[#allocation2 + $0x20] sm:$0xff] 0.0
    %42 = vst [vmem:[#allocation2 + $0x28] sm:$0xff] 0.0
    %43 = vst [vmem:[#allocation2 + $0x30] sm:$0xff] 0.0
    %44 = vst [vmem:[#allocation2 + $0x38] sm:$0xff] 0.0
    %45 = vst [vmem:[#allocation2 + $0x40] sm:$0xff] 0.0
    %46 = vst [vmem:[#allocation2 + $0x48] sm:$0xff] 0.0
    %47 = vst [vmem:[#allocation2 + $0x50] sm:$0xff] 0.0
    %48 = vst [vmem:[#allocation2 + $0x58] sm:$0xff] 0.0
    %49 = vst [vmem:[#allocation2 + $0x60] sm:$0xff] 0.0
    %50 = vst [vmem:[#allocation2 + $0x68] sm:$0xff] 0.0
    %51 = vst [vmem:[#allocation2 + $0x70] sm:$0xff] 0.0
    %52 = vst [vmem:[#allocation2 + $0x78] sm:$0xff] 0.0
  $region41: #{atari_lstm_forward.4} parent=0 // pred_fallthru
    _
  %v53 = vld [vmem:[#allocation2] sm:$0xff]
  %v54 = vld [vmem:[#allocation2 + $0x8] sm:$0xff]
  %v55 = vld [vmem:[#allocation2 + $0x10] sm:$0xff]
  %v56 = vld [vmem:[#allocation2 + $0x18] sm:$0xff]
  %v57 = vld [vmem:[#allocation2 + $0x20] sm:$0xff]
  %v58 = vld [vmem:[#allocation2 + $0x28] sm:$0xff]
  %v59 = vld [vmem:[#allocation2 + $0x30] sm:$0xff]
  %v60 = vld [vmem:[#allocation2 + $0x38] sm:$0xff]
  %v61 = vld [vmem:[#allocation2 + $0x40] sm:$0xff]
  %v62 = vld [vmem:[#allocation2 + $0x48] sm:$0xff]
  %v63 = vld [vmem:[#allocation2 + $0x50] sm:$0xff]
  %v64 = vld [vmem:[#allocation2 + $0x58] sm:$0xff]
  %v65 = vld [vmem:[#allocation2 + $0x60] sm:$0xff]
  %v66 = vld [vmem:[#allocation2 + $0x68] sm:$0xff]
  %v67 = vld [vmem:[#allocation2 + $0x70] sm:$0xff]
  %v68 = vld [vmem:[#allocation2 + $0x78] sm:$0xff]
  %v69 = vld [vmem:[%s2] sm:$0xf]
  %v70 = vld [vmem:[%s2 + $0x4] sm:$0xf]
  %v71 = vld [vmem:[%s2 + $0x8] sm:$0xf]
  %v72 = vld [vmem:[%s2 + $0xc] sm:$0xf]
  %v73 = vld [vmem:[%s2 + $0x10] sm:$0xf]
  %v74 = vld [vmem:[%s2 + $0x14] sm:$0xf]
  %v75 = vld [vmem:[%s2 + $0x18] sm:$0xf]
  %v76 = vld [vmem:[%s2 + $0x1c] sm:$0xf]
  %v77 = vld [vmem:[%s2 + $0x20] sm:$0xf]
  %v78 = vld [vmem:[%s2 + $0x24] sm:$0xf]
  %v79 = vld [vmem:[%s2 + $0x28] sm:$0xf]
  %v80 = vld [vmem:[%s2 + $0x2c] sm:$0xf]
  %v81 = vld [vmem:[%s2 + $0x30] sm:$0xf]
  %v82 = vld [vmem:[%s2 + $0x34] sm:$0xf]
  %v83 = vld [vmem:[%s2 + $0x38] sm:$0xf]
  %v84 = vld [vmem:[%s2 + $0x3c] sm:$0xf]
  %v85 = vld [vmem:[%s2 + $0x40] sm:$0xf]
  %v86 = vld [vmem:[%s2 + $0x44] sm:$0xf]
  %v87 = vld [vmem:[%s2 + $0x48] sm:$0xf]
  %v88 = vld [vmem:[%s2 + $0x4c] sm:$0xf]
  %v89 = vld [vmem:[%s2 + $0x50] sm:$0xf]
  %v90 = vld [vmem:[%s2 + $0x54] sm:$0xf]
  %v91 = vld [vmem:[%s2 + $0x58] sm:$0xf]
  %v92 = vld [vmem:[%s2 + $0x5c] sm:$0xf]
  %v93 = vld [vmem:[%s2 + $0x60] sm:$0xf]
  %v94 = vld [vmem:[%s2 + $0x64] sm:$0xf]
  %v95 = vld [vmem:[%s2 + $0x68] sm:$0xf]
  %v96 = vld [vmem:[%s2 + $0x6c] sm:$0xf]
  %v97 = vld [vmem:[%s2 + $0x70] sm:$0xf]
  %v98 = vld [vmem:[%s2 + $0x74] sm:$0xf]
  %v99 = vld [vmem:[%s2 + $0x78] sm:$0xf]
  %v100 = vld [vmem:[%s2 + $0x7c] sm:$0xf]
  %v101 = vld [vmem:[%s3] sm:$0x1]
  %v102 = vld [vmem:[%s0] sm:$0xff]
  %v103 = vld [vmem:[%s0 + $0x8] sm:$0xff]
  %v104 = vld [vmem:[%s0 + $0x10] sm:$0xff]
  %v105 = vld [vmem:[%s0 + $0x18] sm:$0xff]
  %v106 = vld [vmem:[%s0 + $0x20] sm:$0xff]
  %v107 = vld [vmem:[%s0 + $0x28] sm:$0xff]
  %v108 = vld [vmem:[%s0 + $0x30] sm:$0xff]
  %v109 = vld [vmem:[%s0 + $0x38] sm:$0xff]
  %v110 = vld [vmem:[%s0 + $0x40] sm:$0xff]
  %v111 = vld [vmem:[%s0 + $0x48] sm:$0xff]
  %v112 = vld [vmem:[%s0 + $0x50] sm:$0xff]
  %v113 = vld [vmem:[%s0 + $0x58] sm:$0xff]
  %v114 = vld [vmem:[%s0 + $0x60] sm:$0xff]
  %v115 = vld [vmem:[%s0 + $0x68] sm:$0xff]
  %v116 = vld [vmem:[%s0 + $0x70] sm:$0xff]
  %v117 = vld [vmem:[%s0 + $0x78] sm:$0xff]
  %v119 = vperm.slane %v101, 0
  %v137 = vunpack.c.l.b16 %v102
  %v138 = vunpack.c.h.b16 %v102
  %v139 = vunpack.c.l.b16 %v103
  %v140 = vunpack.c.h.b16 %v103
  %v141 = vunpack.c.l.b16 %v104
  %v142 = vunpack.c.h.b16 %v104
  %v143 = vunpack.c.l.b16 %v105
  %v144 = vunpack.c.h.b16 %v105
  %v145 = vunpack.c.l.b16 %v106
  %v146 = vunpack.c.h.b16 %v106
  %v147 = vunpack.c.l.b16 %v107
  %v148 = vunpack.c.h.b16 %v107
  %v149 = vunpack.c.l.b16 %v108
  %v150 = vunpack.c.h.b16 %v108
  %v151 = vunpack.c.l.b16 %v109
  %v152 = vunpack.c.h.b16 %v109
  %v153 = vunpack.c.l.b16 %v110
  %v154 = vunpack.c.h.b16 %v110
  %v155 = vunpack.c.l.b16 %v111
  %v156 = vunpack.c.h.b16 %v111
  %v157 = vunpack.c.l.b16 %v112
  %v158 = vunpack.c.h.b16 %v112
  %v159 = vunpack.c.l.b16 %v113
  %v160 = vunpack.c.h.b16 %v113
  %v161 = vunpack.c.l.b16 %v114
  %v162 = vunpack.c.h.b16 %v114
  %v163 = vunpack.c.l.b16 %v115
  %v164 = vunpack.c.h.b16 %v115
  %v165 = vunpack.c.l.b16 %v116
  %v166 = vunpack.c.h.b16 %v116
  %v167 = vunpack.c.l.b16 %v117
  %v168 = vunpack.c.h.b16 %v117
  %v169 = vpack.c.b16 %v139, %v137
  %v170 = vpack.c.b16 %v140, %v138
  %v171 = vpack.c.b16 %v143, %v141
  %v172 = vpack.c.b16 %v144, %v142
  %v173 = vpack.c.b16 %v147, %v145
  %v174 = vpack.c.b16 %v148, %v146
  %v175 = vpack.c.b16 %v151, %v149
  %v176 = vpack.c.b16 %v152, %v150
  %v177 = vpack.c.b16 %v155, %v153
  %v178 = vpack.c.b16 %v156, %v154
  %v179 = vpack.c.b16 %v159, %v157
  %v180 = vpack.c.b16 %v160, %v158
  %v181 = vpack.c.b16 %v163, %v161
  %v182 = vpack.c.b16 %v164, %v162
  %v183 = vpack.c.b16 %v167, %v165
  %v184 = vpack.c.b16 %v168, %v166
  %v233 = vunpack.c.l.b16 %v69
  %v234 = vunpack.c.l.b16 %v70
  %v235 = vunpack.c.l.b16 %v71
  %v236 = vunpack.c.l.b16 %v72
  %v237 = vunpack.c.l.b16 %v73
  %v238 = vunpack.c.l.b16 %v74
  %v239 = vunpack.c.l.b16 %v75
  %v240 = vunpack.c.l.b16 %v76
  %v241 = vunpack.c.l.b16 %v77
  %v242 = vunpack.c.l.b16 %v78
  %v243 = vunpack.c.l.b16 %v79
  %v244 = vunpack.c.l.b16 %v80
  %v245 = vunpack.c.l.b16 %v81
  %v246 = vunpack.c.l.b16 %v82
  %v247 = vunpack.c.l.b16 %v83
  %v248 = vunpack.c.l.b16 %v84
  %v249 = vunpack.c.l.b16 %v85
  %v250 = vunpack.c.l.b16 %v86
  %v251 = vunpack.c.l.b16 %v87
  %v252 = vunpack.c.l.b16 %v88
  %v253 = vunpack.c.l.b16 %v89
  %v254 = vunpack.c.l.b16 %v90
  %v255 = vunpack.c.l.b16 %v91
  %v256 = vunpack.c.l.b16 %v92
  %v257 = vunpack.c.l.b16 %v93
  %v258 = vunpack.c.l.b16 %v94
  %v259 = vunpack.c.l.b16 %v95
  %v260 = vunpack.c.l.b16 %v96
  %v261 = vunpack.c.l.b16 %v97
  %v262 = vunpack.c.l.b16 %v98
  %v263 = vunpack.c.l.b16 %v99
  %v264 = vunpack.c.l.b16 %v100
  %v265 = vpack.c.b16 %v234, %v233
  %v266 = vpack.c.b16 %v236, %v235
  %v267 = vpack.c.b16 %v238, %v237
  %v268 = vpack.c.b16 %v240, %v239
  %v269 = vpack.c.b16 %v242, %v241
  %v270 = vpack.c.b16 %v244, %v243
  %v271 = vpack.c.b16 %v246, %v245
  %v272 = vpack.c.b16 %v248, %v247
  %v273 = vpack.c.b16 %v250, %v249
  %v274 = vpack.c.b16 %v252, %v251
  %v275 = vpack.c.b16 %v254, %v253
  %v276 = vpack.c.b16 %v256, %v255
  %v277 = vpack.c.b16 %v258, %v257
  %v278 = vpack.c.b16 %v260, %v259
  %v279 = vpack.c.b16 %v262, %v261
  %v280 = vpack.c.b16 %v264, %v263
  %297 = vmatpush.bf16.msra.mxu0 %v272
  %298 = vmatpush.bf16.msra.mxu0 %v271
  %299 = vmatpush.bf16.msra.mxu0 %v270
  %300 = vmatpush.bf16.msra.mxu0 %v269
  %301 = vmatpush.bf16.msra.mxu0 %v268
  %302 = vmatpush.bf16.msra.mxu0 %v267
  %303 = vmatpush.bf16.msra.mxu0 %v266
  %304 = vmatpush.bf16.msra.mxu0 %v265
  %305 = vmatmul.bf16.gmra.mxu0 %v169
  %v306 = vpop.f32.mrf.mxu0
  %v307 = vadd.f32 %v119, %v306
  %v308 = vpop.f32.mrf.mxu0
  %v309 = vadd.f32 %v119, %v308
  %310 = vmatmul.bf16.gmra.mxu0 %v171
  %v311 = vpop.f32.mrf.mxu0
  %v312 = vadd.f32 %v119, %v311
  %v313 = vpop.f32.mrf.mxu0
  %v314 = vadd.f32 %v119, %v313
  %315 = vmatmul.bf16.gmra.mxu0 %v173
  %v316 = vpop.f32.mrf.mxu0
  %v317 = vadd.f32 %v119, %v316
  %v318 = vpop.f32.mrf.mxu0
  %v319 = vadd.f32 %v119, %v318
  %320 = vmatmul.bf16.gmra.mxu0 %v175
  %v321 = vpop.f32.mrf.mxu0
  %v322 = vadd.f32 %v119, %v321
  %v323 = vpop.f32.mrf.mxu0
  %v324 = vadd.f32 %v119, %v323
  %325 = vmatmul.bf16.gmra.mxu0 %v177
  %v326 = vpop.f32.mrf.mxu0
  %v327 = vadd.f32 %v119, %v326
  %v328 = vpop.f32.mrf.mxu0
  %v329 = vadd.f32 %v119, %v328
  %330 = vmatmul.bf16.gmra.mxu0 %v179
  %v331 = vpop.f32.mrf.mxu0
  %v332 = vadd.f32 %v119, %v331
  %v333 = vpop.f32.mrf.mxu0
  %v334 = vadd.f32 %v119, %v333
  %335 = vmatmul.bf16.gmra.mxu0 %v181
  %v336 = vpop.f32.mrf.mxu0
  %v337 = vadd.f32 %v119, %v336
  %v338 = vpop.f32.mrf.mxu0
  %v339 = vadd.f32 %v119, %v338
  %340 = vmatmul.bf16.gmra.mxu0 %v183
  %v341 = vpop.f32.mrf.mxu0
  %v342 = vadd.f32 %v119, %v341
  %v343 = vpop.f32.mrf.mxu0
  %v344 = vadd.f32 %v119, %v343
  %345 = vdwg.mxu0
  %346 = vmatpush.bf16.msra.mxu0 %v280
  %347 = vmatpush.bf16.msra.mxu0 %v279
  %348 = vmatpush.bf16.msra.mxu0 %v278
  %349 = vmatpush.bf16.msra.mxu0 %v277
  %350 = vmatpush.bf16.msra.mxu0 %v276
  %351 = vmatpush.bf16.msra.mxu0 %v275
  %352 = vmatpush.bf16.msra.mxu0 %v274
  %353 = vmatpush.bf16.msra.mxu0 %v273
  %354 = vmatmul.bf16.gmra.mxu0 %v170
  %v355 = vpop.f32.mrf.mxu0
  %v356 = vadd.f32 %v307, %v355
  %v357 = vpop.f32.mrf.mxu0
  %v358 = vadd.f32 %v309, %v357
  %359 = vmatmul.bf16.gmra.mxu0 %v172
  %v360 = vpop.f32.mrf.mxu0
  %v361 = vadd.f32 %v312, %v360
  %v362 = vpop.f32.mrf.mxu0
  %v363 = vadd.f32 %v314, %v362
  %364 = vmatmul.bf16.gmra.mxu0 %v174
  %v365 = vpop.f32.mrf.mxu0
  %v366 = vadd.f32 %v317, %v365
  %v367 = vpop.f32.mrf.mxu0
  %v368 = vadd.f32 %v319, %v367
  %369 = vmatmul.bf16.gmra.mxu0 %v176
  %v370 = vpop.f32.mrf.mxu0
  %v371 = vadd.f32 %v322, %v370
  %v372 = vpop.f32.mrf.mxu0
  %v373 = vadd.f32 %v324, %v372
  %374 = vmatmul.bf16.gmra.mxu0 %v178
  %v375 = vpop.f32.mrf.mxu0
  %v376 = vadd.f32 %v327, %v375
  %v377 = vpop.f32.mrf.mxu0
  %v378 = vadd.f32 %v329, %v377
  %379 = vmatmul.bf16.gmra.mxu0 %v180
  %v380 = vpop.f32.mrf.mxu0
  %v381 = vadd.f32 %v332, %v380
  %v382 = vpop.f32.mrf.mxu0
  %v383 = vadd.f32 %v334, %v382
  %384 = vmatmul.bf16.gmra.mxu0 %v182
  %v385 = vpop.f32.mrf.mxu0
  %v386 = vadd.f32 %v337, %v385
  %v387 = vpop.f32.mrf.mxu0
  %v388 = vadd.f32 %v339, %v387
  %389 = vmatmul.bf16.gmra.mxu0 %v184
  %v390 = vpop.f32.mrf.mxu0
  %v391 = vadd.f32 %v342, %v390
  %v392 = vpop.f32.mrf.mxu0
  %v393 = vadd.f32 %v344, %v392
  %394 = vdwg.mxu0
  %v395 = vmax.f32 %v356, 0.0
  %v396 = vmax.f32 %v358, 0.0
  %v397 = vmax.f32 %v361, 0.0
  %v398 = vmax.f32 %v363, 0.0
  %v399 = vmax.f32 %v366, 0.0
  %v400 = vmax.f32 %v368, 0.0
  %v401 = vmax.f32 %v371, 0.0
  %v402 = vmax.f32 %v373, 0.0
  %v403 = vmax.f32 %v376, 0.0
  %v404 = vmax.f32 %v378, 0.0
  %v405 = vmax.f32 %v381, 0.0
  %v406 = vmax.f32 %v383, 0.0
  %v407 = vmax.f32 %v386, 0.0
  %v408 = vmax.f32 %v388, 0.0
  %v409 = vmax.f32 %v391, 0.0
  %v410 = vmax.f32 %v393, 0.0
  %v411 = vpack.c.bf16 %v396, %v395
  %v412 = vpack.c.bf16 %v398, %v397
  %v413 = vpack.c.bf16 %v400, %v399
  %v414 = vpack.c.bf16 %v402, %v401
  %v415 = vpack.c.bf16 %v404, %v403
  %v416 = vpack.c.bf16 %v406, %v405
  %v417 = vpack.c.bf16 %v408, %v407
  %v418 = vpack.c.bf16 %v410, %v409
  %v419 = vld [vmem:[%s4] sm:$0xf]
  %v420 = vld [vmem:[%s4 + $0x4] sm:$0xf]
  %v421 = vld [vmem:[%s4 + $0x8] sm:$0xf]
  %v422 = vld [vmem:[%s4 + $0xc] sm:$0xf]
  %v427 = vunpack.c.l.b16 %v419
  %v428 = vunpack.c.l.b16 %v420
  %v429 = vunpack.c.l.b16 %v421
  %v430 = vunpack.c.l.b16 %v422
  %v431 = vpack.c.b16 %v428, %v427
  %v432 = vpack.c.b16 %v430, %v429
  %vm435 = vcmask 261120
  %v437 = vsel %vm435, %v411, 0
  %v440 = vsel %vm435, %v412, 0
  %v443 = vsel %vm435, %v413, 0
  %v446 = vsel %vm435, %v414, 0
  %v449 = vsel %vm435, %v415, 0
  %v452 = vsel %vm435, %v416, 0
  %v455 = vsel %vm435, %v417, 0
  %v458 = vsel %vm435, %v418, 0
  %460 = vmatpush.bf16.msra.mxu0 0
  %461 = vmatpush.bf16.msra.mxu0 0
  %462 = vmatpush.bf16.msra.mxu0 0
  %463 = vmatpush.bf16.msra.mxu0 0
  %464 = vmatpush.bf16.msra.mxu0 0
  %465 = vmatpush.bf16.msra.mxu0 0
  %466 = vmatpush.bf16.msra.mxu0 %v432
  %467 = vmatpush.bf16.msra.mxu0 %v431
  %468 = vmatmul.bf16.gmra.mxu0 %v437
  %v469 = vpop.f32.mrf.mxu0
  %v470 = vadd.f32 0.0, %v469
  %v471 = vpop.f32.mrf.mxu0
  %v472 = vadd.f32 0.0, %v471
  %473 = vmatmul.bf16.gmra.mxu0 %v440
  %v474 = vpop.f32.mrf.mxu0
  %v475 = vadd.f32 0.0, %v474
  %v476 = vpop.f32.mrf.mxu0
  %v477 = vadd.f32 0.0, %v476
  %478 = vmatmul.bf16.gmra.mxu0 %v443
  %v479 = vpop.f32.mrf.mxu0
  %v480 = vadd.f32 0.0, %v479
  %v481 = vpop.f32.mrf.mxu0
  %v482 = vadd.f32 0.0, %v481
  %483 = vmatmul.bf16.gmra.mxu0 %v446
  %v484 = vpop.f32.mrf.mxu0
  %v485 = vadd.f32 0.0, %v484
  %v486 = vpop.f32.mrf.mxu0
  %v487 = vadd.f32 0.0, %v486
  %488 = vmatmul.bf16.gmra.mxu0 %v449
  %v489 = vpop.f32.mrf.mxu0
  %v490 = vadd.f32 0.0, %v489
  %v491 = vpop.f32.mrf.mxu0
  %v492 = vadd.f32 0.0, %v491
  %493 = vmatmul.bf16.gmra.mxu0 %v452
  %v494 = vpop.f32.mrf.mxu0
  %v495 = vadd.f32 0.0, %v494
  %v496 = vpop.f32.mrf.mxu0
  %v497 = vadd.f32 0.0, %v496
  %498 = vmatmul.bf16.gmra.mxu0 %v455
  %v499 = vpop.f32.mrf.mxu0
  %v500 = vadd.f32 0.0, %v499
  %v501 = vpop.f32.mrf.mxu0
  %v502 = vadd.f32 0.0, %v501
  %503 = vmatmul.bf16.gmra.mxu0 %v458
  %v504 = vpop.f32.mrf.mxu0
  %v505 = vadd.f32 0.0, %v504
  %v506 = vpop.f32.mrf.mxu0
  %v507 = vadd.f32 0.0, %v506
  %508 = vdwg.mxu0
  %v509 = vadd.f32 %v53, %v470
  %v510 = vadd.f32 %v54, %v472
  %v511 = vadd.f32 %v55, %v475
  %v512 = vadd.f32 %v56, %v477
  %v513 = vadd.f32 %v57, %v480
  %v514 = vadd.f32 %v58, %v482
  %v515 = vadd.f32 %v59, %v485
  %v516 = vadd.f32 %v60, %v487
  %v517 = vadd.f32 %v61, %v490
  %v518 = vadd.f32 %v62, %v492
  %v519 = vadd.f32 %v63, %v495
  %v520 = vadd.f32 %v64, %v497
  %v521 = vadd.f32 %v65, %v500
  %v522 = vadd.f32 %v66, %v502
  %v523 = vadd.f32 %v67, %v505
  %v524 = vadd.f32 %v68, %v507
  %525 = vst [vmem:[#allocation2] sm:$0xff] %v509
  %526 = vst [vmem:[#allocation2 + $0x8] sm:$0xff] %v510
  %527 = vst [vmem:[#allocation2 + $0x10] sm:$0xff] %v511
  %528 = vst [vmem:[#allocation2 + $0x18] sm:$0xff] %v512
  %529 = vst [vmem:[#allocation2 + $0x20] sm:$0xff] %v513
  %530 = vst [vmem:[#allocation2 + $0x28] sm:$0xff] %v514
  %531 = vst [vmem:[#allocation2 + $0x30] sm:$0xff] %v515
  %532 = vst [vmem:[#allocation2 + $0x38] sm:$0xff] %v516
  %533 = vst [vmem:[#allocation2 + $0x40] sm:$0xff] %v517
  %534 = vst [vmem:[#allocation2 + $0x48] sm:$0xff] %v518
  %535 = vst [vmem:[#allocation2 + $0x50] sm:$0xff] %v519
  %536 = vst [vmem:[#allocation2 + $0x58] sm:$0xff] %v520
  %537 = vst [vmem:[#allocation2 + $0x60] sm:$0xff] %v521
  %538 = vst [vmem:[#allocation2 + $0x68] sm:$0xff] %v522
  %539 = vst [vmem:[#allocation2 + $0x70] sm:$0xff] %v523
  %540 = vst [vmem:[#allocation2 + $0x78] sm:$0xff] %v524
  // Predicated region
  $region42: #{atari_lstm_forward.4} parent=0 // pred_check
    %p541 = pneg %p33
  $region43: #{atari_lstm_forward.4} parent=0 // pred_check_branch
    %543 = sbr.rel (%p541) target = $region45
  $region44: #{atari_lstm_forward.4} parent=0 // pred_region
    %v544 = vld [vmem:[#allocation2] sm:$0xff]
    %v545 = vld [vmem:[#allocation2 + $0x8] sm:$0xff]
    %v546 = vld [vmem:[#allocation2 + $0x10] sm:$0xff]
    %v547 = vld [vmem:[#allocation2 + $0x18] sm:$0xff]
    %v548 = vld [vmem:[#allocation2 + $0x20] sm:$0xff]
    %v549 = vld [vmem:[#allocation2 + $0x28] sm:$0xff]
    %v550 = vld [vmem:[#allocation2 + $0x30] sm:$0xff]
    %v551 = vld [vmem:[#allocation2 + $0x38] sm:$0xff]
    %v552 = vld [vmem:[#allocation2 + $0x40] sm:$0xff]
    %v553 = vld [vmem:[#allocation2 + $0x48] sm:$0xff]
    %v554 = vld [vmem:[#allocation2 + $0x50] sm:$0xff]
    %v555 = vld [vmem:[#allocation2 + $0x58] sm:$0xff]
    %v556 = vld [vmem:[#allocation2 + $0x60] sm:$0xff]
    %v557 = vld [vmem:[#allocation2 + $0x68] sm:$0xff]
    %v558 = vld [vmem:[#allocation2 + $0x70] sm:$0xff]
    %v559 = vld [vmem:[#allocation2 + $0x78] sm:$0xff]
    %v560 = vld [vmem:[%s5] sm:$0x1]
    %v562 = vperm.slane %v560, 0
    %v564 = vadd.f32 %v544, %v562
    %v565 = vadd.f32 %v545, %v562
    %v566 = vadd.f32 %v546, %v562
    %v567 = vadd.f32 %v547, %v562
    %v568 = vadd.f32 %v548, %v562
    %v569 = vadd.f32 %v549, %v562
    %v570 = vadd.f32 %v550, %v562
    %v571 = vadd.f32 %v551, %v562
    %v572 = vadd.f32 %v552, %v562
    %v573 = vadd.f32 %v553, %v562
    %v574 = vadd.f32 %v554, %v562
    %v575 = vadd.f32 %v555, %v562
    %v576 = vadd.f32 %v556, %v562
    %v577 = vadd.f32 %v557, %v562
    %v578 = vadd.f32 %v558, %v562
    %v579 = vadd.f32 %v559, %v562
    %v580 = vmax.f32 %v564, 0.0
    %v581 = vmax.f32 %v565, 0.0
    %v582 = vmax.f32 %v566, 0.0
    %v583 = vmax.f32 %v567, 0.0
    %v584 = vmax.f32 %v568, 0.0
    %v585 = vmax.f32 %v569, 0.0
    %v586 = vmax.f32 %v570, 0.0
    %v587 = vmax.f32 %v571, 0.0
    %v588 = vmax.f32 %v572, 0.0
    %v589 = vmax.f32 %v573, 0.0
    %v590 = vmax.f32 %v574, 0.0
    %v591 = vmax.f32 %v575, 0.0
    %v592 = vmax.f32 %v576, 0.0
    %v593 = vmax.f32 %v577, 0.0
    %v594 = vmax.f32 %v578, 0.0
    %v595 = vmax.f32 %v579, 0.0
    %v596 = vpack.c.bf16 %v581, %v580
    %v597 = vpack.c.bf16 %v583, %v582
    %v598 = vpack.c.bf16 %v585, %v584
    %v599 = vpack.c.bf16 %v587, %v586
    %v600 = vpack.c.bf16 %v589, %v588
    %v601 = vpack.c.bf16 %v591, %v590
    %v602 = vpack.c.bf16 %v593, %v592
    %v603 = vpack.c.bf16 %v595, %v594
    %v604 = vld [vmem:[%s6] sm:$0xff]
    %v605 = vld [vmem:[%s6 + $0x8] sm:$0xff]
    %v606 = vld [vmem:[%s6 + $0x10] sm:$0xff]
    %v607 = vld [vmem:[%s6 + $0x18] sm:$0xff]
    %v608 = vld [vmem:[%s6 + $0x20] sm:$0xff]
    %v609 = vld [vmem:[%s6 + $0x28] sm:$0xff]
    %v610 = vld [vmem:[%s6 + $0x30] sm:$0xff]
    %v611 = vld [vmem:[%s6 + $0x38] sm:$0xff]
    %v612 = vld [vmem:[%s6 + $0x40] sm:$0xff]
    %v613 = vld [vmem:[%s6 + $0x48] sm:$0xff]
    %v614 = vld [vmem:[%s6 + $0x50] sm:$0xff]
    %v615 = vld [vmem:[%s6 + $0x58] sm:$0xff]
    %v616 = vld [vmem:[%s6 + $0x60] sm:$0xff]
    %v617 = vld [vmem:[%s6 + $0x68] sm:$0xff]
    %v618 = vld [vmem:[%s6 + $0x70] sm:$0xff]
    %v619 = vld [vmem:[%s6 + $0x78] sm:$0xff]
    %v620 = vld [vmem:[%s6 + $0x80] sm:$0xff]
    %v621 = vld [vmem:[%s6 + $0x88] sm:$0xff]
    %v622 = vld [vmem:[%s6 + $0x90] sm:$0xff]
    %v623 = vld [vmem:[%s6 + $0x98] sm:$0xff]
    %v624 = vld [vmem:[%s6 + $0xa0] sm:$0xff]
    %v625 = vld [vmem:[%s6 + $0xa8] sm:$0xff]
    %v626 = vld [vmem:[%s6 + $0xb0] sm:$0xff]
    %v627 = vld [vmem:[%s6 + $0xb8] sm:$0xff]
    %v628 = vld [vmem:[%s6 + $0xc0] sm:$0xff]
    %v629 = vld [vmem:[%s6 + $0xc8] sm:$0xff]
    %v630 = vld [vmem:[%s6 + $0xd0] sm:$0xff]
    %v631 = vld [vmem:[%s6 + $0xd8] sm:$0xff]
    %v632 = vld [vmem:[%s6 + $0xe0] sm:$0xff]
    %v633 = vld [vmem:[%s6 + $0xe8] sm:$0xff]
    %v634 = vld [vmem:[%s6 + $0xf0] sm:$0xff]
    %v635 = vld [vmem:[%s6 + $0xf8] sm:$0xff]
    %v636 = vld [vmem:[%s1] sm:$0xf]
    %v637 = vld [vmem:[%s1 + $0x4] sm:$0xf]
    %v638 = vld [vmem:[%s1 + $0x8] sm:$0xf]
    %v639 = vld [vmem:[%s1 + $0xc] sm:$0xf]
    %v640 = vld [vmem:[%s1 + $0x10] sm:$0xf]
    %v641 = vld [vmem:[%s1 + $0x14] sm:$0xf]
    %v642 = vld [vmem:[%s1 + $0x18] sm:$0xf]
    %v643 = vld [vmem:[%s1 + $0x1c] sm:$0xf]
    %v644 = vld [vmem:[%s1 + $0x20] sm:$0xf]
    %v645 = vld [vmem:[%s1 + $0x24] sm:$0xf]
    %v646 = vld [vmem:[%s1 + $0x28] sm:$0xf]
    %v647 = vld [vmem:[%s1 + $0x2c] sm:$0xf]
    %v648 = vld [vmem:[%s1 + $0x30] sm:$0xf]
    %v649 = vld [vmem:[%s1 + $0x34] sm:$0xf]
    %v650 = vld [vmem:[%s1 + $0x38] sm:$0xf]
    %v651 = vld [vmem:[%s1 + $0x3c] sm:$0xf]
    %v652 = vld [vmem:[%s7] sm:$0xff]
    %v653 = vld [vmem:[%s7 + $0x8] sm:$0xff]
    %v654 = vld [vmem:[%s7 + $0x10] sm:$0xff]
    %v655 = vld [vmem:[%s7 + $0x18] sm:$0xff]
    %v672 = vunpack.c.l.b16 %v636
    %v673 = vunpack.c.l.b16 %v637
    %v674 = vunpack.c.l.b16 %v638
    %v675 = vunpack.c.l.b16 %v639
    %v676 = vunpack.c.l.b16 %v640
    %v677 = vunpack.c.l.b16 %v641
    %v678 = vunpack.c.l.b16 %v642
    %v679 = vunpack.c.l.b16 %v643
    %v680 = vunpack.c.l.b16 %v644
    %v681 = vunpack.c.l.b16 %v645
    %v682 = vunpack.c.l.b16 %v646
    %v683 = vunpack.c.l.b16 %v647
    %v684 = vunpack.c.l.b16 %v648
    %v685 = vunpack.c.l.b16 %v649
    %v686 = vunpack.c.l.b16 %v650
    %v687 = vunpack.c.l.b16 %v651
    %v688 = vpack.c.b16 %v673, %v672
    %v689 = vpack.c.b16 %v675, %v674
    %v690 = vpack.c.b16 %v677, %v676
    %v691 = vpack.c.b16 %v679, %v678
    %v692 = vpack.c.b16 %v681, %v680
    %v693 = vpack.c.b16 %v683, %v682
    %v694 = vpack.c.b16 %v685, %v684
    %v695 = vpack.c.b16 %v687, %v686
    %v700 = vunpack.c.l.b16 %v652
    %v701 = vunpack.c.h.b16 %v652
    %v702 = vunpack.c.l.b16 %v653
    %v703 = vunpack.c.h.b16 %v653
    %v704 = vunpack.c.l.b16 %v654
    %v705 = vunpack.c.h.b16 %v654
    %v706 = vunpack.c.l.b16 %v655
    %v707 = vunpack.c.h.b16 %v655
    %v708 = vpack.c.b16 %v704, %v700
    %v709 = vpack.c.b16 %v705, %v701
    %v710 = vpack.c.b16 %v706, %v702
    %v711 = vpack.c.b16 %v707, %v703
    %vm716 = vcmask 130048
    %v718 = vsel %vm716, %v688, 0
    %v721 = vsel %vm716, %v689, 0
    %v724 = vsel %vm716, %v690, 0
    %v727 = vsel %vm716, %v691, 0
    %v730 = vsel %vm716, %v692, 0
    %v733 = vsel %vm716, %v693, 0
    %v736 = vsel %vm716, %v694, 0
    %v739 = vsel %vm716, %v695, 0
    %741 = vmatpush.bf16.msra.mxu0 0
    %742 = vmatpush.bf16.msra.mxu0 0
    %743 = vmatpush.bf16.msra.mxu0 0
    %744 = vmatpush.bf16.msra.mxu0 0
    %745 = vmatpush.bf16.msra.mxu0 0
    %746 = vmatpush.bf16.msra.mxu0 0
    %747 = vmatpush.bf16.msra.mxu0 0
    %748 = vmatpush.bf16.msra.mxu0 %v708
    %749 = vmatmul.bf16.gmra.mxu0 %v718
    %v750 = vpop.f32.mrf.mxu0
    %v751 = vadd.f32 0.0, %v750
    %v752 = vpop.f32.mrf.mxu0
    %v753 = vadd.f32 0.0, %v752
    %754 = vmatmul.bf16.gmra.mxu0 %v721
    %v755 = vpop.f32.mrf.mxu0
    %v756 = vadd.f32 0.0, %v755
    %v757 = vpop.f32.mrf.mxu0
    %v758 = vadd.f32 0.0, %v757
    %759 = vmatmul.bf16.gmra.mxu0 %v724
    %v760 = vpop.f32.mrf.mxu0
    %v761 = vadd.f32 0.0, %v760
    %v762 = vpop.f32.mrf.mxu0
    %v763 = vadd.f32 0.0, %v762
    %764 = vmatmul.bf16.gmra.mxu0 %v727
    %v765 = vpop.f32.mrf.mxu0
    %v766 = vadd.f32 0.0, %v765
    %v767 = vpop.f32.mrf.mxu0
    %v768 = vadd.f32 0.0, %v767
    %769 = vmatmul.bf16.gmra.mxu0 %v730
    %v770 = vpop.f32.mrf.mxu0
    %v771 = vadd.f32 0.0, %v770
    %v772 = vpop.f32.mrf.mxu0
    %v773 = vadd.f32 0.0, %v772
    %774 = vmatmul.bf16.gmra.mxu0 %v733
    %v775 = vpop.f32.mrf.mxu0
    %v776 = vadd.f32 0.0, %v775
    %v777 = vpop.f32.mrf.mxu0
    %v778 = vadd.f32 0.0, %v777
    %779 = vmatmul.bf16.gmra.mxu0 %v736
    %v780 = vpop.f32.mrf.mxu0
    %v781 = vadd.f32 0.0, %v780
    %v782 = vpop.f32.mrf.mxu0
    %v783 = vadd.f32 0.0, %v782
    %784 = vmatmul.bf16.gmra.mxu0 %v739
    %v785 = vpop.f32.mrf.mxu0
    %v786 = vadd.f32 0.0, %v785
    %v787 = vpop.f32.mrf.mxu0
    %v788 = vadd.f32 0.0, %v787
    %789 = vdwg.mxu0
    %790 = vmatpush.bf16.msra.mxu0 0
    %791 = vmatpush.bf16.msra.mxu0 0
    %792 = vmatpush.bf16.msra.mxu0 0
    %793 = vmatpush.bf16.msra.mxu0 0
    %794 = vmatpush.bf16.msra.mxu0 0
    %795 = vmatpush.bf16.msra.mxu0 0
    %796 = vmatpush.bf16.msra.mxu0 0
    %797 = vmatpush.bf16.msra.mxu0 %v709
    %798 = vmatmul.bf16.gmra.mxu0 %v718
    %v799 = vpop.f32.mrf.mxu0
    %v800 = vadd.f32 0.0, %v799
    %v801 = vpop.f32.mrf.mxu0
    %v802 = vadd.f32 0.0, %v801
    %803 = vmatmul.bf16.gmra.mxu0 %v721
    %v804 = vpop.f32.mrf.mxu0
    %v805 = vadd.f32 0.0, %v804
    %v806 = vpop.f32.mrf.mxu0
    %v807 = vadd.f32 0.0, %v806
    %808 = vmatmul.bf16.gmra.mxu0 %v724
    %v809 = vpop.f32.mrf.mxu0
    %v810 = vadd.f32 0.0, %v809
    %v811 = vpop.f32.mrf.mxu0
    %v812 = vadd.f32 0.0, %v811
    %813 = vmatmul.bf16.gmra.mxu0 %v727
    %v814 = vpop.f32.mrf.mxu0
    %v815 = vadd.f32 0.0, %v814
    %v816 = vpop.f32.mrf.mxu0
    %v817 = vadd.f32 0.0, %v816
    %818 = vmatmul.bf16.gmra.mxu0 %v730
    %v819 = vpop.f32.mrf.mxu0
    %v820 = vadd.f32 0.0, %v819
    %v821 = vpop.f32.mrf.mxu0
    %v822 = vadd.f32 0.0, %v821
    %823 = vmatmul.bf16.gmra.mxu0 %v733
    %v824 = vpop.f32.mrf.mxu0
    %v825 = vadd.f32 0.0, %v824
    %v826 = vpop.f32.mrf.mxu0
    %v827 = vadd.f32 0.0, %v826
    %828 = vmatmul.bf16.gmra.mxu0 %v736
    %v829 = vpop.f32.mrf.mxu0
    %v830 = vadd.f32 0.0, %v829
    %v831 = vpop.f32.mrf.mxu0
    %v832 = vadd.f32 0.0, %v831
    %833 = vmatmul.bf16.gmra.mxu0 %v739
    %v834 = vpop.f32.mrf.mxu0
    %v835 = vadd.f32 0.0, %v834
    %v836 = vpop.f32.mrf.mxu0
    %v837 = vadd.f32 0.0, %v836
    %838 = vdwg.mxu0
    %839 = vmatpush.bf16.msra.mxu0 0
    %840 = vmatpush.bf16.msra.mxu0 0
    %841 = vmatpush.bf16.msra.mxu0 0
    %842 = vmatpush.bf16.msra.mxu0 0
    %843 = vmatpush.bf16.msra.mxu0 0
    %844 = vmatpush.bf16.msra.mxu0 0
    %845 = vmatpush.bf16.msra.mxu0 0
    %846 = vmatpush.bf16.msra.mxu0 %v710
    %847 = vmatmul.bf16.gmra.mxu0 %v718
    %v848 = vpop.f32.mrf.mxu0
    %v849 = vadd.f32 0.0, %v848
    %v850 = vpop.f32.mrf.mxu0
    %v851 = vadd.f32 0.0, %v850
    %852 = vmatmul.bf16.gmra.mxu0 %v721
    %v853 = vpop.f32.mrf.mxu0
    %v854 = vadd.f32 0.0, %v853
    %v855 = vpop.f32.mrf.mxu0
    %v856 = vadd.f32 0.0, %v855
    %857 = vmatmul.bf16.gmra.mxu0 %v724
    %v858 = vpop.f32.mrf.mxu0
    %v859 = vadd.f32 0.0, %v858
    %v860 = vpop.f32.mrf.mxu0
    %v861 = vadd.f32 0.0, %v860
    %862 = vmatmul.bf16.gmra.mxu0 %v727
    %v863 = vpop.f32.mrf.mxu0
    %v864 = vadd.f32 0.0, %v863
    %v865 = vpop.f32.mrf.mxu0
    %v866 = vadd.f32 0.0, %v865
    %867 = vmatmul.bf16.gmra.mxu0 %v730
    %v868 = vpop.f32.mrf.mxu0
    %v869 = vadd.f32 0.0, %v868
    %v870 = vpop.f32.mrf.mxu0
    %v871 = vadd.f32 0.0, %v870
    %872 = vmatmul.bf16.gmra.mxu0 %v733
    %v873 = vpop.f32.mrf.mxu0
    %v874 = vadd.f32 0.0, %v873
    %v875 = vpop.f32.mrf.mxu0
    %v876 = vadd.f32 0.0, %v875
    %877 = vmatmul.bf16.gmra.mxu0 %v736
    %v878 = vpop.f32.mrf.mxu0
    %v879 = vadd.f32 0.0, %v878
    %v880 = vpop.f32.mrf.mxu0
    %v881 = vadd.f32 0.0, %v880
    %882 = vmatmul.bf16.gmra.mxu0 %v739
    %v883 = vpop.f32.mrf.mxu0
    %v884 = vadd.f32 0.0, %v883
    %v885 = vpop.f32.mrf.mxu0
    %v886 = vadd.f32 0.0, %v885
    %887 = vdwg.mxu0
    %888 = vmatpush.bf16.msra.mxu0 0
    %889 = vmatpush.bf16.msra.mxu0 0
    %890 = vmatpush.bf16.msra.mxu0 0
    %891 = vmatpush.bf16.msra.mxu0 0
    %892 = vmatpush.bf16.msra.mxu0 0
    %893 = vmatpush.bf16.msra.mxu0 0
    %894 = vmatpush.bf16.msra.mxu0 0
    %895 = vmatpush.bf16.msra.mxu0 %v711
    %896 = vmatmul.bf16.gmra.mxu0 %v718
    %v897 = vpop.f32.mrf.mxu0
    %v898 = vadd.f32 0.0, %v897
    %v899 = vpop.f32.mrf.mxu0
    %v900 = vadd.f32 0.0, %v899
    %901 = vmatmul.bf16.gmra.mxu0 %v721
    %v902 = vpop.f32.mrf.mxu0
    %v903 = vadd.f32 0.0, %v902
    %v904 = vpop.f32.mrf.mxu0
    %v905 = vadd.f32 0.0, %v904
    %906 = vmatmul.bf16.gmra.mxu0 %v724
    %v907 = vpop.f32.mrf.mxu0
    %v908 = vadd.f32 0.0, %v907
    %v909 = vpop.f32.mrf.mxu0
    %v910 = vadd.f32 0.0, %v909
    %911 = vmatmul.bf16.gmra.mxu0 %v727
    %v912 = vpop.f32.mrf.mxu0
    %v913 = vadd.f32 0.0, %v912
    %v914 = vpop.f32.mrf.mxu0
    %v915 = vadd.f32 0.0, %v914
    %916 = vmatmul.bf16.gmra.mxu0 %v730
    %v917 = vpop.f32.mrf.mxu0
    %v918 = vadd.f32 0.0, %v917
    %v919 = vpop.f32.mrf.mxu0
    %v920 = vadd.f32 0.0, %v919
    %921 = vmatmul.bf16.gmra.mxu0 %v733
    %v922 = vpop.f32.mrf.mxu0
    %v923 = vadd.f32 0.0, %v922
    %v924 = vpop.f32.mrf.mxu0
    %v925 = vadd.f32 0.0, %v924
    %926 = vmatmul.bf16.gmra.mxu0 %v736
    %v927 = vpop.f32.mrf.mxu0
    %v928 = vadd.f32 0.0, %v927
    %v929 = vpop.f32.mrf.mxu0
    %v930 = vadd.f32 0.0, %v929
    %931 = vmatmul.bf16.gmra.mxu0 %v739
    %v932 = vpop.f32.mrf.mxu0
    %v933 = vadd.f32 0.0, %v932
    %v934 = vpop.f32.mrf.mxu0
    %v935 = vadd.f32 0.0, %v934
    %936 = vdwg.mxu0
    %v969 = vunpack.c.l.b16 %v604
    %v970 = vunpack.c.h.b16 %v604
    %v971 = vunpack.c.l.b16 %v605
    %v972 = vunpack.c.h.b16 %v605
    %v973 = vunpack.c.l.b16 %v606
    %v974 = vunpack.c.h.b16 %v606
    %v975 = vunpack.c.l.b16 %v607
    %v976 = vunpack.c.h.b16 %v607
    %v977 = vunpack.c.l.b16 %v608
    %v978 = vunpack.c.h.b16 %v608
    %v979 = vunpack.c.l.b16 %v609
    %v980 = vunpack.c.h.b16 %v609
    %v981 = vunpack.c.l.b16 %v610
    %v982 = vunpack.c.h.b16 %v610
    %v983 = vunpack.c.l.b16 %v611
    %v984 = vunpack.c.h.b16 %v611
    %v985 = vunpack.c.l.b16 %v612
    %v986 = vunpack.c.h.b16 %v612
    %v987 = vunpack.c.l.b16 %v613
    %v988 = vunpack.c.h.b16 %v613
    %v989 = vunpack.c.l.b16 %v614
    %v990 = vunpack.c.h.b16 %v614
    %v991 = vunpack.c.l.b16 %v615
    %v992 = vunpack.c.h.b16 %v615
    %v993 = vunpack.c.l.b16 %v616
    %v994 = vunpack.c.h.b16 %v616
    %v995 = vunpack.c.l.b16 %v617
    %v996 = vunpack.c.h.b16 %v617
    %v997 = vunpack.c.l.b16 %v618
    %v998 = vunpack.c.h.b16 %v618
    %v999 = vunpack.c.l.b16 %v619
    %v1000 = vunpack.c.h.b16 %v619
    %v1001 = vunpack.c.l.b16 %v620
    %v1002 = vunpack.c.h.b16 %v620
    %v1003 = vunpack.c.l.b16 %v621
    %v1004 = vunpack.c.h.b16 %v621
    %v1005 = vunpack.c.l.b16 %v622
    %v1006 = vunpack.c.h.b16 %v622
    %v1007 = vunpack.c.l.b16 %v623
    %v1008 = vunpack.c.h.b16 %v623
    %v1009 = vunpack.c.l.b16 %v624
    %v1010 = vunpack.c.h.b16 %v624
    %v1011 = vunpack.c.l.b16 %v625
    %v1012 = vunpack.c.h.b16 %v625
    %v1013 = vunpack.c.l.b16 %v626
    %v1014 = vunpack.c.h.b16 %v626
    %v1015 = vunpack.c.l.b16 %v627
    %v1016 = vunpack.c.h.b16 %v627
    %v1017 = vunpack.c.l.b16 %v628
    %v1018 = vunpack.c.h.b16 %v628
    %v1019 = vunpack.c.l.b16 %v629
    %v1020 = vunpack.c.h.b16 %v629
    %v1021 = vunpack.c.l.b16 %v630
    %v1022 = vunpack.c.h.b16 %v630
    %v1023 = vunpack.c.l.b16 %v631
    %v1024 = vunpack.c.h.b16 %v631
    %v1025 = vunpack.c.l.b16 %v632
    %v1026 = vunpack.c.h.b16 %v632
    %v1027 = vunpack.c.l.b16 %v633
    %v1028 = vunpack.c.h.b16 %v633
    %v1029 = vunpack.c.l.b16 %v634
    %v1030 = vunpack.c.h.b16 %v634
    %v1031 = vunpack.c.l.b16 %v635
    %v1032 = vunpack.c.h.b16 %v635
    %v1033 = vpack.c.b16 %v973, %v969
    %v1034 = vpack.c.b16 %v974, %v970
    %v1035 = vpack.c.b16 %v975, %v971
    %v1036 = vpack.c.b16 %v976, %v972
    %v1037 = vpack.c.b16 %v981, %v977
    %v1038 = vpack.c.b16 %v982, %v978
    %v1039 = vpack.c.b16 %v983, %v979
    %v1040 = vpack.c.b16 %v984, %v980
    %v1041 = vpack.c.b16 %v989, %v985
    %v1042 = vpack.c.b16 %v990, %v986
    %v1043 = vpack.c.b16 %v991, %v987
    %v1044 = vpack.c.b16 %v992, %v988
    %v1045 = vpack.c.b16 %v997, %v993
    %v1046 = vpack.c.b16 %v998, %v994
    %v1047 = vpack.c.b16 %v999, %v995
    %v1048 = vpack.c.b16 %v1000, %v996
    %v1049 = vpack.c.b16 %v1005, %v1001
    %v1050 = vpack.c.b16 %v1006, %v1002
    %v1051 = vpack.c.b16 %v1007, %v1003
    %v1052 = vpack.c.b16 %v1008, %v1004
    %v1053 = vpack.c.b16 %v1013, %v1009
    %v1054 = vpack.c.b16 %v1014, %v1010
    %v1055 = vpack.c.b16 %v1015, %v1011
    %v1056 = vpack.c.b16 %v1016, %v1012
    %v1057 = vpack.c.b16 %v1021, %v1017
    %v1058 = vpack.c.b16 %v1022, %v1018
    %v1059 = vpack.c.b16 %v1023, %v1019
    %v1060 = vpack.c.b16 %v1024, %v1020
    %v1061 = vpack.c.b16 %v1029, %v1025
    %v1062 = vpack.c.b16 %v1030, %v1026
    %v1063 = vpack.c.b16 %v1031, %v1027
    %v1064 = vpack.c.b16 %v1032, %v1028
    %1097 = vmatpush.bf16.msra.mxu0 %v1061
    %1098 = vmatpush.bf16.msra.mxu0 %v1057
    %1099 = vmatpush.bf16.msra.mxu0 %v1053
    %1100 = vmatpush.bf16.msra.mxu0 %v1049
    %1101 = vmatpush.bf16.msra.mxu0 %v1045
    %1102 = vmatpush.bf16.msra.mxu0 %v1041
    %1103 = vmatpush.bf16.msra.mxu0 %v1037
    %1104 = vmatpush.bf16.msra.mxu0 %v1033
    %1105 = vmatmul.bf16.gmra.mxu0 %v596
    %v1106 = vpop.f32.mrf.mxu0
    %v1107 = vadd.f32 %v751, %v1106
    %v1108 = vpop.f32.mrf.mxu0
    %v1109 = vadd.f32 %v753, %v1108
    %1110 = vmatmul.bf16.gmra.mxu0 %v597
    %v1111 = vpop.f32.mrf.mxu0
    %v1112 = vadd.f32 %v756, %v1111
    %v1113 = vpop.f32.mrf.mxu0
    %v1114 = vadd.f32 %v758, %v1113
    %1115 = vmatmul.bf16.gmra.mxu0 %v598
    %v1116 = vpop.f32.mrf.mxu0
    %v1117 = vadd.f32 %v761, %v1116
    %v1118 = vpop.f32.mrf.mxu0
    %v1119 = vadd.f32 %v763, %v1118
    %1120 = vmatmul.bf16.gmra.mxu0 %v599
    %v1121 = vpop.f32.mrf.mxu0
    %v1122 = vadd.f32 %v766, %v1121
    %v1123 = vpop.f32.mrf.mxu0
    %v1124 = vadd.f32 %v768, %v1123
    %1125 = vmatmul.bf16.gmra.mxu0 %v600
    %v1126 = vpop.f32.mrf.mxu0
    %v1127 = vadd.f32 %v771, %v1126
    %v1128 = vpop.f32.mrf.mxu0
    %v1129 = vadd.f32 %v773, %v1128
    %1130 = vmatmul.bf16.gmra.mxu0 %v601
    %v1131 = vpop.f32.mrf.mxu0
    %v1132 = vadd.f32 %v776, %v1131
    %v1133 = vpop.f32.mrf.mxu0
    %v1134 = vadd.f32 %v778, %v1133
    %1135 = vmatmul.bf16.gmra.mxu0 %v602
    %v1136 = vpop.f32.mrf.mxu0
    %v1137 = vadd.f32 %v781, %v1136
    %v1138 = vpop.f32.mrf.mxu0
    %v1139 = vadd.f32 %v783, %v1138
    %1140 = vmatmul.bf16.gmra.mxu0 %v603
    %v1141 = vpop.f32.mrf.mxu0
    %v1142 = vadd.f32 %v786, %v1141
    %v1143 = vpop.f32.mrf.mxu0
    %v1144 = vadd.f32 %v788, %v1143
    %1145 = vdwg.mxu0
    %1146 = vmatpush.bf16.msra.mxu0 %v1062
    %1147 = vmatpush.bf16.msra.mxu0 %v1058
    %1148 = vmatpush.bf16.msra.mxu0 %v1054
    %1149 = vmatpush.bf16.msra.mxu0 %v1050
    %1150 = vmatpush.bf16.msra.mxu0 %v1046
    %1151 = vmatpush.bf16.msra.mxu0 %v1042
    %1152 = vmatpush.bf16.msra.mxu0 %v1038
    %1153 = vmatpush.bf16.msra.mxu0 %v1034
    %1154 = vmatmul.bf16.gmra.mxu0 %v596
    %v1155 = vpop.f32.mrf.mxu0
    %v1156 = vadd.f32 %v800, %v1155
    %v1157 = vpop.f32.mrf.mxu0
    %v1158 = vadd.f32 %v802, %v1157
    %1159 = vmatmul.bf16.gmra.mxu0 %v597
    %v1160 = vpop.f32.mrf.mxu0
    %v1161 = vadd.f32 %v805, %v1160
    %v1162 = vpop.f32.mrf.mxu0
    %v1163 = vadd.f32 %v807, %v1162
    %1164 = vmatmul.bf16.gmra.mxu0 %v598
    %v1165 = vpop.f32.mrf.mxu0
    %v1166 = vadd.f32 %v810, %v1165
    %v1167 = vpop.f32.mrf.mxu0
    %v1168 = vadd.f32 %v812, %v1167
    %1169 = vmatmul.bf16.gmra.mxu0 %v599
    %v1170 = vpop.f32.mrf.mxu0
    %v1171 = vadd.f32 %v815, %v1170
    %v1172 = vpop.f32.mrf.mxu0
    %v1173 = vadd.f32 %v817, %v1172
    %1174 = vmatmul.bf16.gmra.mxu0 %v600
    %v1175 = vpop.f32.mrf.mxu0
    %v1176 = vadd.f32 %v820, %v1175
    %v1177 = vpop.f32.mrf.mxu0
    %v1178 = vadd.f32 %v822, %v1177
    %1179 = vmatmul.bf16.gmra.mxu0 %v601
    %v1180 = vpop.f32.mrf.mxu0
    %v1181 = vadd.f32 %v825, %v1180
    %v1182 = vpop.f32.mrf.mxu0
    %v1183 = vadd.f32 %v827, %v1182
    %1184 = vmatmul.bf16.gmra.mxu0 %v602
    %v1185 = vpop.f32.mrf.mxu0
    %v1186 = vadd.f32 %v830, %v1185
    %v1187 = vpop.f32.mrf.mxu0
    %v1188 = vadd.f32 %v832, %v1187
    %1189 = vmatmul.bf16.gmra.mxu0 %v603
    %v1190 = vpop.f32.mrf.mxu0
    %v1191 = vadd.f32 %v835, %v1190
    %v1192 = vpop.f32.mrf.mxu0
    %v1193 = vadd.f32 %v837, %v1192
    %1194 = vdwg.mxu0
    %1195 = vmatpush.bf16.msra.mxu0 %v1063
    %1196 = vmatpush.bf16.msra.mxu0 %v1059
    %1197 = vmatpush.bf16.msra.mxu0 %v1055
    %1198 = vmatpush.bf16.msra.mxu0 %v1051
    %1199 = vmatpush.bf16.msra.mxu0 %v1047
    %1200 = vmatpush.bf16.msra.mxu0 %v1043
    %1201 = vmatpush.bf16.msra.mxu0 %v1039
    %1202 = vmatpush.bf16.msra.mxu0 %v1035
    %1203 = vmatmul.bf16.gmra.mxu0 %v596
    %v1204 = vpop.f32.mrf.mxu0
    %v1205 = vadd.f32 %v849, %v1204
    %v1206 = vpop.f32.mrf.mxu0
    %v1207 = vadd.f32 %v851, %v1206
    %1208 = vmatmul.bf16.gmra.mxu0 %v597
    %v1209 = vpop.f32.mrf.mxu0
    %v1210 = vadd.f32 %v854, %v1209
    %v1211 = vpop.f32.mrf.mxu0
    %v1212 = vadd.f32 %v856, %v1211
    %1213 = vmatmul.bf16.gmra.mxu0 %v598
    %v1214 = vpop.f32.mrf.mxu0
    %v1215 = vadd.f32 %v859, %v1214
    %v1216 = vpop.f32.mrf.mxu0
    %v1217 = vadd.f32 %v861, %v1216
    %1218 = vmatmul.bf16.gmra.mxu0 %v599
    %v1219 = vpop.f32.mrf.mxu0
    %v1220 = vadd.f32 %v864, %v1219
    %v1221 = vpop.f32.mrf.mxu0
    %v1222 = vadd.f32 %v866, %v1221
    %1223 = vmatmul.bf16.gmra.mxu0 %v600
    %v1224 = vpop.f32.mrf.mxu0
    %v1225 = vadd.f32 %v869, %v1224
    %v1226 = vpop.f32.mrf.mxu0
    %v1227 = vadd.f32 %v871, %v1226
    %1228 = vmatmul.bf16.gmra.mxu0 %v601
    %v1229 = vpop.f32.mrf.mxu0
    %v1230 = vadd.f32 %v874, %v1229
    %v1231 = vpop.f32.mrf.mxu0
    %v1232 = vadd.f32 %v876, %v1231
    %1233 = vmatmul.bf16.gmra.mxu0 %v602
    %v1234 = vpop.f32.mrf.mxu0
    %v1235 = vadd.f32 %v879, %v1234
    %v1236 = vpop.f32.mrf.mxu0
    %v1237 = vadd.f32 %v881, %v1236
    %1238 = vmatmul.bf16.gmra.mxu0 %v603
    %v1239 = vpop.f32.mrf.mxu0
    %v1240 = vadd.f32 %v884, %v1239
    %v1241 = vpop.f32.mrf.mxu0
    %v1242 = vadd.f32 %v886, %v1241
    %1243 = vdwg.mxu0
    %1244 = vmatpush.bf16.msra.mxu0 %v1064
    %1245 = vmatpush.bf16.msra.mxu0 %v1060
    %1246 = vmatpush.bf16.msra.mxu0 %v1056
    %1247 = vmatpush.bf16.msra.mxu0 %v1052
    %1248 = vmatpush.bf16.msra.mxu0 %v1048
    %1249 = vmatpush.bf16.msra.mxu0 %v1044
    %1250 = vmatpush.bf16.msra.mxu0 %v1040
    %1251 = vmatpush.bf16.msra.mxu0 %v1036
    %1252 = vmatmul.bf16.gmra.mxu0 %v596
    %v1253 = vpop.f32.mrf.mxu0
    %v1254 = vadd.f32 %v898, %v1253
    %v1255 = vpop.f32.mrf.mxu0
    %v1256 = vadd.f32 %v900, %v1255
    %1257 = vmatmul.bf16.gmra.mxu0 %v597
    %v1258 = vpop.f32.mrf.mxu0
    %v1259 = vadd.f32 %v903, %v1258
    %v1260 = vpop.f32.mrf.mxu0
    %v1261 = vadd.f32 %v905, %v1260
    %1262 = vmatmul.bf16.gmra.mxu0 %v598
    %v1263 = vpop.f32.mrf.mxu0
    %v1264 = vadd.f32 %v908, %v1263
    %v1265 = vpop.f32.mrf.mxu0
    %v1266 = vadd.f32 %v910, %v1265
    %1267 = vmatmul.bf16.gmra.mxu0 %v599
    %v1268 = vpop.f32.mrf.mxu0
    %v1269 = vadd.f32 %v913, %v1268
    %v1270 = vpop.f32.mrf.mxu0
    %v1271 = vadd.f32 %v915, %v1270
    %1272 = vmatmul.bf16.gmra.mxu0 %v600
    %v1273 = vpop.f32.mrf.mxu0
    %v1274 = vadd.f32 %v918, %v1273
    %v1275 = vpop.f32.mrf.mxu0
    %v1276 = vadd.f32 %v920, %v1275
    %1277 = vmatmul.bf16.gmra.mxu0 %v601
    %v1278 = vpop.f32.mrf.mxu0
    %v1279 = vadd.f32 %v923, %v1278
    %v1280 = vpop.f32.mrf.mxu0
    %v1281 = vadd.f32 %v925, %v1280
    %1282 = vmatmul.bf16.gmra.mxu0 %v602
    %v1283 = vpop.f32.mrf.mxu0
    %v1284 = vadd.f32 %v928, %v1283
    %v1285 = vpop.f32.mrf.mxu0
    %v1286 = vadd.f32 %v930, %v1285
    %1287 = vmatmul.bf16.gmra.mxu0 %v603
    %v1288 = vpop.f32.mrf.mxu0
    %v1289 = vadd.f32 %v933, %v1288
    %v1290 = vpop.f32.mrf.mxu0
    %v1291 = vadd.f32 %v935, %v1290
    %1292 = vdwg.mxu0
    %v1293 = vld [vmem:[%s8] sm:$0xf]
    %v1295 = vperm.slane %v1293, 0
    %v1296 = vperm.slane %v1293, 1
    %v1297 = vperm.slane %v1293, 2
    %v1298 = vperm.slane %v1293, 3
    %v1303 = vadd.f32 %v1107, %v1295
    %v1304 = vadd.f32 %v1156, %v1296
    %v1305 = vadd.f32 %v1205, %v1297
    %v1306 = vadd.f32 %v1254, %v1298
    %v1307 = vadd.f32 %v1109, %v1295
    %v1308 = vadd.f32 %v1158, %v1296
    %v1309 = vadd.f32 %v1207, %v1297
    %v1310 = vadd.f32 %v1256, %v1298
    %v1311 = vadd.f32 %v1112, %v1295
    %v1312 = vadd.f32 %v1161, %v1296
    %v1313 = vadd.f32 %v1210, %v1297
    %v1314 = vadd.f32 %v1259, %v1298
    %v1315 = vadd.f32 %v1114, %v1295
    %v1316 = vadd.f32 %v1163, %v1296
    %v1317 = vadd.f32 %v1212, %v1297
    %v1318 = vadd.f32 %v1261, %v1298
    %v1319 = vadd.f32 %v1117, %v1295
    %v1320 = vadd.f32 %v1166, %v1296
    %v1321 = vadd.f32 %v1215, %v1297
    %v1322 = vadd.f32 %v1264, %v1298
    %v1323 = vadd.f32 %v1119, %v1295
    %v1324 = vadd.f32 %v1168, %v1296
    %v1325 = vadd.f32 %v1217, %v1297
    %v1326 = vadd.f32 %v1266, %v1298
    %v1327 = vadd.f32 %v1122, %v1295
    %v1328 = vadd.f32 %v1171, %v1296
    %v1329 = vadd.f32 %v1220, %v1297
    %v1330 = vadd.f32 %v1269, %v1298
    %v1331 = vadd.f32 %v1124, %v1295
    %v1332 = vadd.f32 %v1173, %v1296
    %v1333 = vadd.f32 %v1222, %v1297
    %v1334 = vadd.f32 %v1271, %v1298
    %v1335 = vadd.f32 %v1127, %v1295
    %v1336 = vadd.f32 %v1176, %v1296
    %v1337 = vadd.f32 %v1225, %v1297
    %v1338 = vadd.f32 %v1274, %v1298
    %v1339 = vadd.f32 %v1129, %v1295
    %v1340 = vadd.f32 %v1178, %v1296
    %v1341 = vadd.f32 %v1227, %v1297
    %v1342 = vadd.f32 %v1276, %v1298
    %v1343 = vadd.f32 %v1132, %v1295
    %v1344 = vadd.f32 %v1181, %v1296
    %v1345 = vadd.f32 %v1230, %v1297
    %v1346 = vadd.f32 %v1279, %v1298
    %v1347 = vadd.f32 %v1134, %v1295
    %v1348 = vadd.f32 %v1183, %v1296
    %v1349 = vadd.f32 %v1232, %v1297
    %v1350 = vadd.f32 %v1281, %v1298
    %v1351 = vadd.f32 %v1137, %v1295
    %v1352 = vadd.f32 %v1186, %v1296
    %v1353 = vadd.f32 %v1235, %v1297
    %v1354 = vadd.f32 %v1284, %v1298
    %v1355 = vadd.f32 %v1139, %v1295
    %v1356 = vadd.f32 %v1188, %v1296
    %v1357 = vadd.f32 %v1237, %v1297
    %v1358 = vadd.f32 %v1286, %v1298
    %v1359 = vadd.f32 %v1142, %v1295
    %v1360 = vadd.f32 %v1191, %v1296
    %v1361 = vadd.f32 %v1240, %v1297
    %v1362 = vadd.f32 %v1289, %v1298
    %v1363 = vadd.f32 %v1144, %v1295
    %v1364 = vadd.f32 %v1193, %v1296
    %v1365 = vadd.f32 %v1242, %v1297
    %v1366 = vadd.f32 %v1291, %v1298
    %1367 = vst [vmem:[%s9] sm:$0xff] %v1303
    %1368 = vst [vmem:[%s9 + $0x8] sm:$0xff] %v1304
    %1369 = vst [vmem:[%s9 + $0x10] sm:$0xff] %v1305
    %1370 = vst [vmem:[%s9 + $0x18] sm:$0xff] %v1306
    %1371 = vst [vmem:[%s9 + $0x20] sm:$0xff] %v1307
    %1372 = vst [vmem:[%s9 + $0x28] sm:$0xff] %v1308
    %1373 = vst [vmem:[%s9 + $0x30] sm:$0xff] %v1309
    %1374 = vst [vmem:[%s9 + $0x38] sm:$0xff] %v1310
    %1375 = vst [vmem:[%s9 + $0x40] sm:$0xff] %v1311
    %1376 = vst [vmem:[%s9 + $0x48] sm:$0xff] %v1312
    %1377 = vst [vmem:[%s9 + $0x50] sm:$0xff] %v1313
    %1378 = vst [vmem:[%s9 + $0x58] sm:$0xff] %v1314
    %1379 = vst [vmem:[%s9 + $0x60] sm:$0xff] %v1315
    %1380 = vst [vmem:[%s9 + $0x68] sm:$0xff] %v1316
    %1381 = vst [vmem:[%s9 + $0x70] sm:$0xff] %v1317
    %1382 = vst [vmem:[%s9 + $0x78] sm:$0xff] %v1318
    %1383 = vst [vmem:[%s9 + $0x80] sm:$0xff] %v1319
    %1384 = vst [vmem:[%s9 + $0x88] sm:$0xff] %v1320
    %1385 = vst [vmem:[%s9 + $0x90] sm:$0xff] %v1321
    %1386 = vst [vmem:[%s9 + $0x98] sm:$0xff] %v1322
    %1387 = vst [vmem:[%s9 + $0xa0] sm:$0xff] %v1323
    %1388 = vst [vmem:[%s9 + $0xa8] sm:$0xff] %v1324
    %1389 = vst [vmem:[%s9 + $0xb0] sm:$0xff] %v1325
    %1390 = vst [vmem:[%s9 + $0xb8] sm:$0xff] %v1326
    %1391 = vst [vmem:[%s9 + $0xc0] sm:$0xff] %v1327
    %1392 = vst [vmem:[%s9 + $0xc8] sm:$0xff] %v1328
    %1393 = vst [vmem:[%s9 + $0xd0] sm:$0xff] %v1329
    %1394 = vst [vmem:[%s9 + $0xd8] sm:$0xff] %v1330
    %1395 = vst [vmem:[%s9 + $0xe0] sm:$0xff] %v1331
    %1396 = vst [vmem:[%s9 + $0xe8] sm:$0xff] %v1332
    %1397 = vst [vmem:[%s9 + $0xf0] sm:$0xff] %v1333
    %1398 = vst [vmem:[%s9 + $0xf8] sm:$0xff] %v1334
    %1399 = vst [vmem:[%s9 + $0x100] sm:$0xff] %v1335
    %1400 = vst [vmem:[%s9 + $0x108] sm:$0xff] %v1336
    %1401 = vst [vmem:[%s9 + $0x110] sm:$0xff] %v1337
    %1402 = vst [vmem:[%s9 + $0x118] sm:$0xff] %v1338
    %1403 = vst [vmem:[%s9 + $0x120] sm:$0xff] %v1339
    %1404 = vst [vmem:[%s9 + $0x128] sm:$0xff] %v1340
    %1405 = vst [vmem:[%s9 + $0x130] sm:$0xff] %v1341
    %1406 = vst [vmem:[%s9 + $0x138] sm:$0xff] %v1342
    %1407 = vst [vmem:[%s9 + $0x140] sm:$0xff] %v1343
    %1408 = vst [vmem:[%s9 + $0x148] sm:$0xff] %v1344
    %1409 = vst [vmem:[%s9 + $0x150] sm:$0xff] %v1345
    %1410 = vst [vmem:[%s9 + $0x158] sm:$0xff] %v1346
    %1411 = vst [vmem:[%s9 + $0x160] sm:$0xff] %v1347
    %1412 = vst [vmem:[%s9 + $0x168] sm:$0xff] %v1348
    %1413 = vst [vmem:[%s9 + $0x170] sm:$0xff] %v1349
    %1414 = vst [vmem:[%s9 + $0x178] sm:$0xff] %v1350
    %1415 = vst [vmem:[%s9 + $0x180] sm:$0xff] %v1351
    %1416 = vst [vmem:[%s9 + $0x188] sm:$0xff] %v1352
    %1417 = vst [vmem:[%s9 + $0x190] sm:$0xff] %v1353
    %1418 = vst [vmem:[%s9 + $0x198] sm:$0xff] %v1354
    %1419 = vst [vmem:[%s9 + $0x1a0] sm:$0xff] %v1355
    %1420 = vst [vmem:[%s9 + $0x1a8] sm:$0xff] %v1356
    %1421 = vst [vmem:[%s9 + $0x1b0] sm:$0xff] %v1357
    %1422 = vst [vmem:[%s9 + $0x1b8] sm:$0xff] %v1358
    %1423 = vst [vmem:[%s9 + $0x1c0] sm:$0xff] %v1359
    %1424 = vst [vmem:[%s9 + $0x1c8] sm:$0xff] %v1360
    %1425 = vst [vmem:[%s9 + $0x1d0] sm:$0xff] %v1361
    %1426 = vst [vmem:[%s9 + $0x1d8] sm:$0xff] %v1362
    %1427 = vst [vmem:[%s9 + $0x1e0] sm:$0xff] %v1363
    %1428 = vst [vmem:[%s9 + $0x1e8] sm:$0xff] %v1364
    %1429 = vst [vmem:[%s9 + $0x1f0] sm:$0xff] %v1365
    %1430 = vst [vmem:[%s9 + $0x1f8] sm:$0xff] %v1366
  $region45: #{atari_lstm_forward.4} parent=0 // pred_fallthru
    _
  // Predicated region
  $region46: #{atari_lstm_forward.4} parent=0 // pred_check
    _
  $region47: #{atari_lstm_forward.4} parent=0 // pred_check_branch
    %1432 = sbr.rel (0) target = $region49
  $region48: #{atari_lstm_forward.4} parent=0 // pred_region
    _
  $region49: #{atari_lstm_forward.4} parent=0 // pred_fallthru
    _
  // Predicated region
  $region50: #{atari_lstm_forward.4} parent=0 // pred_check
    _
  $region51: #{atari_lstm_forward.4} parent=0 // pred_check_branch
    %1434 = sbr.rel (0) target = $region53
  $region52: #{atari_lstm_forward.4} parent=0 // pred_region
    _
  $region53: #{atari_lstm_forward.4} parent=0 // pred_fallthru
    _

// kernel: atari_lstm_forward.5
$region0: #{atari_lstm_forward.5}
  #allocation0 [shape = 'u32[]', space=smem, size = 0x4, offset = 0x4, fixed_abs, tag = 'smem constant byte address 0x4 - core index']
  #allocation1 [shape = 'u32[72,128]{1,0:T(1,128)}', space=vmem, size = 0x9000, scoped, tag = 'internal scratch']
  %s0 = inlined_call_operand.vmem [shape: f32[8,16,512], index: 0, kind: input, shape index: {}]
  %s1 = inlined_call_operand.vmem [shape: f32[16,128], index: 1, kind: input, shape index: {}]
  %s2 = inlined_call_operand.vmem [shape: f32[16,128], index: 2, kind: input, shape index: {}]
  %s3 = inlined_call_operand.vmem [shape: bf16[128,512], index: 3, kind: input, shape index: {}]
  %s4 = inlined_call_operand.vmem [shape: bf16[128,128], index: 4, kind: input, shape index: {}]
  %s5 = inlined_call_operand.vmem [shape: f32[1,128], index: 5, kind: input, shape index: {}]
  %s6 = inlined_call_operand.vmem [shape: f32[8,16,128], index: 6, kind: output, shape index: {0}]
  %s7 = inlined_call_operand.vmem [shape: f32[16,128], index: 7, kind: output, shape index: {1}]
  %s8 = inlined_call_operand.vmem [shape: f32[16,128], index: 8, kind: output, shape index: {2}]
  %9 = xla_tuple %s6, %s7, %s8
  %s10 = sld [smem:[#allocation0]]
  $region57: #{atari_lstm_forward.5} parent=0
    _
  %s12 = ssub.s32 1, %s10
  %s13 = scalar_select 0, %s12, %s10
  // Predicated region
  $region2: #{atari_lstm_forward.5} parent=0 // pred_check
    _
  $region3: #{atari_lstm_forward.5} parent=0 // pred_check_branch
    %15 = sbr.rel (0) target = $region5
  $region4: #{atari_lstm_forward.5} parent=0 // pred_region
    _
  $region5: #{atari_lstm_forward.5} parent=0 // pred_fallthru
    _
  // Predicated region
  $region6: #{atari_lstm_forward.5} parent=0 // pred_check
    _
  $region7: #{atari_lstm_forward.5} parent=0 // pred_check_branch
    %17 = sbr.rel (0) target = $region9
  $region8: #{atari_lstm_forward.5} parent=0 // pred_region
    _
  $region9: #{atari_lstm_forward.5} parent=0 // pred_fallthru
    _
  // Predicated region
  $region10: #{atari_lstm_forward.5} parent=0 // pred_check
    _
  $region11: #{atari_lstm_forward.5} parent=0 // pred_check_branch
    %19 = sbr.rel (0) target = $region13
  $region12: #{atari_lstm_forward.5} parent=0 // pred_region
    _
  $region13: #{atari_lstm_forward.5} parent=0 // pred_fallthru
    _
  // Predicated region
  $region14: #{atari_lstm_forward.5} parent=0 // pred_check
    _
  $region15: #{atari_lstm_forward.5} parent=0 // pred_check_branch
    %21 = sbr.rel (0) target = $region17
  $region16: #{atari_lstm_forward.5} parent=0 // pred_region
    _
  $region17: #{atari_lstm_forward.5} parent=0 // pred_fallthru
    _
  // Predicated region
  $region18: #{atari_lstm_forward.5} parent=0 // pred_check
    _
  $region19: #{atari_lstm_forward.5} parent=0 // pred_check_branch
    %23 = sbr.rel (0) target = $region21
  $region20: #{atari_lstm_forward.5} parent=0 // pred_region
    _
  $region21: #{atari_lstm_forward.5} parent=0 // pred_fallthru
    _
  // Predicated region
  $region22: #{atari_lstm_forward.5} parent=0 // pred_check
    _
  $region23: #{atari_lstm_forward.5} parent=0 // pred_check_branch
    %25 = sbr.rel (0) target = $region25
  $region24: #{atari_lstm_forward.5} parent=0 // pred_region
    _
  $region25: #{atari_lstm_forward.5} parent=0 // pred_fallthru
    _
  %v26 = vlaneseq
  %v27 = vand.u32 %v26, 127
  %vm28 = vcmp.lt.s32.totalorder %v27, 6
  %v29 = vld [vmem:[%s1] sm:$0xff]
  %v30 = vld [vmem:[%s1 + $0x8] sm:$0xff]
  %v31 = vld [vmem:[%s2] sm:$0xff]
  %v32 = vld [vmem:[%s2 + $0x8] sm:$0xff]
  loop: start=0, step=1, limit=8
  $region26: #{atari_lstm_forward.5} parent=0 // loop_pre_header
    _
  $region27: #{atari_lstm_forward.5} parent=0 // loop_header
    %s34 = sphi 0, %s38
    %p35 = scmp.ge.s32.totalorder %s34, 8
    %v39 = vphi %v29, %v435
    %v40 = vphi %v30, %v436
    %v41 = vphi %v31, %v431
    %v42 = vphi %v32, %v432
  $region28: #{atari_lstm_forward.5} parent=0 // loop_header_branch
    %37 = sbr.rel (%p35) target = $region32
  $region29: #{atari_lstm_forward.5} parent=0 // loop_body
    %s43 = smul.u32 %s34, 8
    %s44 = smul.addr %s43, 8
    %s45 = scalar_lea.vmem %s0, %s44
    %v46 = vld [vmem:[%s45] sm:$0xff]
    %v47 = vld [vmem:[%s45 + $0x8] sm:$0xff]
    %v48 = vld [vmem:[%s45 + $0x10] sm:$0xff]
    %v49 = vld [vmem:[%s45 + $0x18] sm:$0xff]
    %v50 = vld [vmem:[%s45 + $0x20] sm:$0xff]
    %v51 = vld [vmem:[%s45 + $0x28] sm:$0xff]
    %v52 = vld [vmem:[%s45 + $0x30] sm:$0xff]
    %v53 = vld [vmem:[%s45 + $0x38] sm:$0xff]
    %v54 = vpack.c.bf16 %v40, %v39
    %v55 = vld [vmem:[%s3] sm:$0xff]
    %v56 = vld [vmem:[%s3 + $0x8] sm:$0xff]
    %v57 = vld [vmem:[%s3 + $0x10] sm:$0xff]
    %v58 = vld [vmem:[%s3 + $0x18] sm:$0xff]
    %v59 = vld [vmem:[%s3 + $0x20] sm:$0xff]
    %v60 = vld [vmem:[%s3 + $0x28] sm:$0xff]
    %v61 = vld [vmem:[%s3 + $0x30] sm:$0xff]
    %v62 = vld [vmem:[%s3 + $0x38] sm:$0xff]
    %v63 = vld [vmem:[%s3 + $0x40] sm:$0xff]
    %v64 = vld [vmem:[%s3 + $0x48] sm:$0xff]
    %v65 = vld [vmem:[%s3 + $0x50] sm:$0xff]
    %v66 = vld [vmem:[%s3 + $0x58] sm:$0xff]
    %v67 = vld [vmem:[%s3 + $0x60] sm:$0xff]
    %v68 = vld [vmem:[%s3 + $0x68] sm:$0xff]
    %v69 = vld [vmem:[%s3 + $0x70] sm:$0xff]
    %v70 = vld [vmem:[%s3 + $0x78] sm:$0xff]
    %v71 = vld [vmem:[%s3 + $0x80] sm:$0xff]
    %v72 = vld [vmem:[%s3 + $0x88] sm:$0xff]
    %v73 = vld [vmem:[%s3 + $0x90] sm:$0xff]
    %v74 = vld [vmem:[%s3 + $0x98] sm:$0xff]
    %v75 = vld [vmem:[%s3 + $0xa0] sm:$0xff]
    %v76 = vld [vmem:[%s3 + $0xa8] sm:$0xff]
    %v77 = vld [vmem:[%s3 + $0xb0] sm:$0xff]
    %v78 = vld [vmem:[%s3 + $0xb8] sm:$0xff]
    %v79 = vld [vmem:[%s3 + $0xc0] sm:$0xff]
    %v80 = vld [vmem:[%s3 + $0xc8] sm:$0xff]
    %v81 = vld [vmem:[%s3 + $0xd0] sm:$0xff]
    %v82 = vld [vmem:[%s3 + $0xd8] sm:$0xff]
    %v83 = vld [vmem:[%s3 + $0xe0] sm:$0xff]
    %v84 = vld [vmem:[%s3 + $0xe8] sm:$0xff]
    %v85 = vld [vmem:[%s3 + $0xf0] sm:$0xff]
    %v86 = vld [vmem:[%s3 + $0xf8] sm:$0xff]
    %v119 = vunpack.c.l.b16 %v55
    %v120 = vunpack.c.h.b16 %v55
    %v121 = vunpack.c.l.b16 %v56
    %v122 = vunpack.c.h.b16 %v56
    %v123 = vunpack.c.l.b16 %v57
    %v124 = vunpack.c.h.b16 %v57
    %v125 = vunpack.c.l.b16 %v58
    %v126 = vunpack.c.h.b16 %v58
    %v127 = vunpack.c.l.b16 %v59
    %v128 = vunpack.c.h.b16 %v59
    %v129 = vunpack.c.l.b16 %v60
    %v130 = vunpack.c.h.b16 %v60
    %v131 = vunpack.c.l.b16 %v61
    %v132 = vunpack.c.h.b16 %v61
    %v133 = vunpack.c.l.b16 %v62
    %v134 = vunpack.c.h.b16 %v62
    %v135 = vunpack.c.l.b16 %v63
    %v136 = vunpack.c.h.b16 %v63
    %v137 = vunpack.c.l.b16 %v64
    %v138 = vunpack.c.h.b16 %v64
    %v139 = vunpack.c.l.b16 %v65
    %v140 = vunpack.c.h.b16 %v65
    %v141 = vunpack.c.l.b16 %v66
    %v142 = vunpack.c.h.b16 %v66
    %v143 = vunpack.c.l.b16 %v67
    %v144 = vunpack.c.h.b16 %v67
    %v145 = vunpack.c.l.b16 %v68
    %v146 = vunpack.c.h.b16 %v68
    %v147 = vunpack.c.l.b16 %v69
    %v148 = vunpack.c.h.b16 %v69
    %v149 = vunpack.c.l.b16 %v70
    %v150 = vunpack.c.h.b16 %v70
    %v151 = vunpack.c.l.b16 %v71
    %v152 = vunpack.c.h.b16 %v71
    %v153 = vunpack.c.l.b16 %v72
    %v154 = vunpack.c.h.b16 %v72
    %v155 = vunpack.c.l.b16 %v73
    %v156 = vunpack.c.h.b16 %v73
    %v157 = vunpack.c.l.b16 %v74
    %v158 = vunpack.c.h.b16 %v74
    %v159 = vunpack.c.l.b16 %v75
    %v160 = vunpack.c.h.b16 %v75
    %v161 = vunpack.c.l.b16 %v76
    %v162 = vunpack.c.h.b16 %v76
    %v163 = vunpack.c.l.b16 %v77
    %v164 = vunpack.c.h.b16 %v77
    %v165 = vunpack.c.l.b16 %v78
    %v166 = vunpack.c.h.b16 %v78
    %v167 = vunpack.c.l.b16 %v79
    %v168 = vunpack.c.h.b16 %v79
    %v169 = vunpack.c.l.b16 %v80
    %v170 = vunpack.c.h.b16 %v80
    %v171 = vunpack.c.l.b16 %v81
    %v172 = vunpack.c.h.b16 %v81
    %v173 = vunpack.c.l.b16 %v82
    %v174 = vunpack.c.h.b16 %v82
    %v175 = vunpack.c.l.b16 %v83
    %v176 = vunpack.c.h.b16 %v83
    %v177 = vunpack.c.l.b16 %v84
    %v178 = vunpack.c.h.b16 %v84
    %v179 = vunpack.c.l.b16 %v85
    %v180 = vunpack.c.h.b16 %v85
    %v181 = vunpack.c.l.b16 %v86
    %v182 = vunpack.c.h.b16 %v86
    %v183 = vpack.c.b16 %v123, %v119
    %v184 = vpack.c.b16 %v124, %v120
    %v185 = vpack.c.b16 %v125, %v121
    %v186 = vpack.c.b16 %v126, %v122
    %v187 = vpack.c.b16 %v131, %v127
    %v188 = vpack.c.b16 %v132, %v128
    %v189 = vpack.c.b16 %v133, %v129
    %v190 = vpack.c.b16 %v134, %v130
    %v191 = vpack.c.b16 %v139, %v135
    %v192 = vpack.c.b16 %v140, %v136
    %v193 = vpack.c.b16 %v141, %v137
    %v194 = vpack.c.b16 %v142, %v138
    %v195 = vpack.c.b16 %v147, %v143
    %v196 = vpack.c.b16 %v148, %v144
    %v197 = vpack.c.b16 %v149, %v145
    %v198 = vpack.c.b16 %v150, %v146
    %v199 = vpack.c.b16 %v155, %v151
    %v200 = vpack.c.b16 %v156, %v152
    %v201 = vpack.c.b16 %v157, %v153
    %v202 = vpack.c.b16 %v158, %v154
    %v203 = vpack.c.b16 %v163, %v159
    %v204 = vpack.c.b16 %v164, %v160
    %v205 = vpack.c.b16 %v165, %v161
    %v206 = vpack.c.b16 %v166, %v162
    %v207 = vpack.c.b16 %v171, %v167
    %v208 = vpack.c.b16 %v172, %v168
    %v209 = vpack.c.b16 %v173, %v169
    %v210 = vpack.c.b16 %v174, %v170
    %v211 = vpack.c.b16 %v179, %v175
    %v212 = vpack.c.b16 %v180, %v176
    %v213 = vpack.c.b16 %v181, %v177
    %v214 = vpack.c.b16 %v182, %v178
    %247 = vmatpush.bf16.msra.mxu0 %v211
    %248 = vmatpush.bf16.msra.mxu0 %v207
    %249 = vmatpush.bf16.msra.mxu0 %v203
    %250 = vmatpush.bf16.msra.mxu0 %v199
    %251 = vmatpush.bf16.msra.mxu0 %v195
    %252 = vmatpush.bf16.msra.mxu0 %v191
    %253 = vmatpush.bf16.msra.mxu0 %v187
    %254 = vmatpush.bf16.msra.mxu0 %v183
    %255 = vmatmul.bf16.gmra.mxu0 %v54
    %v256 = vpop.f32.mrf.mxu0
    %v257 = vadd.f32 0.0, %v256
    %v258 = vpop.f32.mrf.mxu0
    %v259 = vadd.f32 0.0, %v258
    %260 = vdwg.mxu0
    %261 = vmatpush.bf16.msra.mxu0 %v212
    %262 = vmatpush.bf16.msra.mxu0 %v208
    %263 = vmatpush.bf16.msra.mxu0 %v204
    %264 = vmatpush.bf16.msra.mxu0 %v200
    %265 = vmatpush.bf16.msra.mxu0 %v196
    %266 = vmatpush.bf16.msra.mxu0 %v192
    %267 = vmatpush.bf16.msra.mxu0 %v188
    %268 = vmatpush.bf16.msra.mxu0 %v184
    %269 = vmatmul.bf16.gmra.mxu0 %v54
    %v270 = vpop.f32.mrf.mxu0
    %v271 = vadd.f32 0.0, %v270
    %v272 = vpop.f32.mrf.mxu0
    %v273 = vadd.f32 0.0, %v272
    %274 = vdwg.mxu0
    %275 = vmatpush.bf16.msra.mxu0 %v213
    %276 = vmatpush.bf16.msra.mxu0 %v209
    %277 = vmatpush.bf16.msra.mxu0 %v205
    %278 = vmatpush.bf16.msra.mxu0 %v201
    %279 = vmatpush.bf16.msra.mxu0 %v197
    %280 = vmatpush.bf16.msra.mxu0 %v193
    %281 = vmatpush.bf16.msra.mxu0 %v189
    %282 = vmatpush.bf16.msra.mxu0 %v185
    %283 = vmatmul.bf16.gmra.mxu0 %v54
    %v284 = vpop.f32.mrf.mxu0
    %v285 = vadd.f32 0.0, %v284
    %v286 = vpop.f32.mrf.mxu0
    %v287 = vadd.f32 0.0, %v286
    %288 = vdwg.mxu0
    %289 = vmatpush.bf16.msra.mxu0 %v214
    %290 = vmatpush.bf16.msra.mxu0 %v210
    %291 = vmatpush.bf16.msra.mxu0 %v206
    %292 = vmatpush.bf16.msra.mxu0 %v202
    %293 = vmatpush.bf16.msra.mxu0 %v198
    %294 = vmatpush.bf16.msra.mxu0 %v194
    %295 = vmatpush.bf16.msra.mxu0 %v190
    %296 = vmatpush.bf16.msra.mxu0 %v186
    %297 = vmatmul.bf16.gmra.mxu0 %v54
    %v298 = vpop.f32.mrf.mxu0
    %v299 = vadd.f32 0.0, %v298
    %v300 = vpop.f32.mrf.mxu0
    %v301 = vadd.f32 0.0, %v300
    %302 = vdwg.mxu0
    %v303 = vadd.f32 %v46, %v257
    %v304 = vadd.f32 %v47, %v271
    %v305 = vadd.f32 %v48, %v285
    %v306 = vadd.f32 %v49, %v299
    %v307 = vadd.f32 %v50, %v259
    %v308 = vadd.f32 %v51, %v273
    %v309 = vadd.f32 %v52, %v287
    %v310 = vadd.f32 %v53, %v301
    %v311 = vxor.u32 %v303, 2147483648
    %v312 = vxor.u32 %v307, 2147483648
    %v313 = vmul.f32 %v311, 1.442695
    %v314 = vpow.pop %v313
    %v315 = vmul.f32 %v312, 1.442695
    %v316 = vpow.pop %v315
    %v317 = vadd.f32 %v314, 1.0
    %v318 = vadd.f32 %v316, 1.0
    %v319 = vrcp.pop %v317
    %v320 = vmul.f32 %v317, %v319
    %v321 = vsub.f32 1.0, %v320
    %v322 = vmul.f32 %v319, %v321
    %v323 = vadd.f32 %v319, %v322
    %vm324 = vweird.f32 %v317
    %vm325 = vweird.f32 %v319
    %vm326 = vmor %vm324, %vm325
    %v327 = vsel %vm326, %v319, %v323
    %v328 = vand.u32 2147483647, %v317
    %vm329 = vcmp.eq.f32.partialorder %v328, 8.507059e+37
    %v330 = vand.u32 %v317, 2147483648
    %v331 = vor.u32 1.1754944e-38, %v330
    %v332 = vsel %vm329, %v331, %v327
    %v333 = vmul.f32 1.0, %v332
    %v334 = vrcp.pop %v318
    %v335 = vmul.f32 %v318, %v334
    %v336 = vsub.f32 1.0, %v335
    %v337 = vmul.f32 %v334, %v336
    %v338 = vadd.f32 %v334, %v337
    %vm339 = vweird.f32 %v318
    %vm340 = vweird.f32 %v334
    %vm341 = vmor %vm339, %vm340
    %v342 = vsel %vm341, %v334, %v338
    %v343 = vand.u32 2147483647, %v318
    %vm344 = vcmp.eq.f32.partialorder %v343, 8.507059e+37
    %v345 = vand.u32 %v318, 2147483648
    %v346 = vor.u32 1.1754944e-38, %v345
    %v347 = vsel %vm344, %v346, %v342
    %v348 = vmul.f32 1.0, %v347
    %v349 = vxor.u32 %v304, 2147483648
    %v350 = vxor.u32 %v308, 2147483648
    %v351 = vmul.f32 %v349, 1.442695
    %v352 = vpow.pop %v351
    %v353 = vmul.f32 %v350, 1.442695
    %v354 = vpow.pop %v353
    %v355 = vadd.f32 %v352, 1.0
    %v356 = vadd.f32 %v354, 1.0
    %v357 = vrcp.pop %v355
    %v358 = vmul.f32 %v355, %v357
    %v359 = vsub.f32 1.0, %v358
    %v360 = vmul.f32 %v357, %v359
    %v361 = vadd.f32 %v357, %v360
    %vm362 = vweird.f32 %v355
    %vm363 = vweird.f32 %v357
    %vm364 = vmor %vm362, %vm363
    %v365 = vsel %vm364, %v357, %v361
    %v366 = vand.u32 2147483647, %v355
    %vm367 = vcmp.eq.f32.partialorder %v366, 8.507059e+37
    %v368 = vand.u32 %v355, 2147483648
    %v369 = vor.u32 1.1754944e-38, %v368
    %v370 = vsel %vm367, %v369, %v365
    %v371 = vmul.f32 1.0, %v370
    %v372 = vrcp.pop %v356
    %v373 = vmul.f32 %v356, %v372
    %v374 = vsub.f32 1.0, %v373
    %v375 = vmul.f32 %v372, %v374
    %v376 = vadd.f32 %v372, %v375
    %vm377 = vweird.f32 %v356
    %vm378 = vweird.f32 %v372
    %vm379 = vmor %vm377, %vm378
    %v380 = vsel %vm379, %v372, %v376
    %v381 = vand.u32 2147483647, %v356
    %vm382 = vcmp.eq.f32.partialorder %v381, 8.507059e+37
    %v383 = vand.u32 %v356, 2147483648
    %v384 = vor.u32 1.1754944e-38, %v383
    %v385 = vsel %vm382, %v384, %v380
    %v386 = vmul.f32 1.0, %v385
    %v387 = vtanh.pop %v305
    %v388 = vtanh.pop %v309
    %v389 = vxor.u32 %v306, 2147483648
    %v390 = vxor.u32 %v310, 2147483648
    %v391 = vmul.f32 %v389, 1.442695
    %v392 = vpow.pop %v391
    %v393 = vmul.f32 %v390, 1.442695
    %v394 = vpow.pop %v393
    %v395 = vadd.f32 %v392, 1.0
    %v396 = vadd.f32 %v394, 1.0
    %v397 = vrcp.pop %v395
    %v398 = vmul.f32 %v395, %v397
    %v399 = vsub.f32 1.0, %v398
    %v400 = vmul.f32 %v397, %v399
    %v401 = vadd.f32 %v397, %v400
    %vm402 = vweird.f32 %v395
    %vm403 = vweird.f32 %v397
    %vm404 = vmor %vm402, %vm403
    %v405 = vsel %vm404, %v397, %v401
    %v406 = vand.u32 2147483647, %v395
    %vm407 = vcmp.eq.f32.partialorder %v406, 8.507059e+37
    %v408 = vand.u32 %v395, 2147483648
    %v409 = vor.u32 1.1754944e-38, %v408
    %v410 = vsel %vm407, %v409, %v405
    %v411 = vmul.f32 1.0, %v410
    %v412 = vrcp.pop %v396
    %v413 = vmul.f32 %v396, %v412
    %v414 = vsub.f32 1.0, %v413
    %v415 = vmul.f32 %v412, %v414
    %v416 = vadd.f32 %v412, %v415
    %vm417 = vweird.f32 %v396
    %vm418 = vweird.f32 %v412
    %vm419 = vmor %vm417, %vm418
    %v420 = vsel %vm419, %v412, %v416
    %v421 = vand.u32 2147483647, %v396
    %vm422 = vcmp.eq.f32.partialorder %v421, 8.507059e+37
    %v423 = vand.u32 %v396, 2147483648
    %v424 = vor.u32 1.1754944e-38, %v423
    %v425 = vsel %vm422, %v424, %v420
    %v426 = vmul.f32 1.0, %v425
    %v427 = vmul.f32 %v371, %v41
    %v428 = vmul.f32 %v386, %v42
    %v429 = vmul.f32 %v333, %v387
    %v430 = vmul.f32 %v348, %v388
    %v431 = vadd.f32 %v427, %v429
    %v432 = vadd.f32 %v428, %v430
    %v433 = vtanh.pop %v431
    %v434 = vtanh.pop %v432
    %v435 = vmul.f32 %v411, %v433
    %v436 = vmul.f32 %v426, %v434
    %v437 = vpack.c.bf16 %v436, %v435
    %v438 = vld [vmem:[%s4] sm:$0xf]
    %v439 = vld [vmem:[%s4 + $0x4] sm:$0xf]
    %v440 = vld [vmem:[%s4 + $0x8] sm:$0xf]
    %v441 = vld [vmem:[%s4 + $0xc] sm:$0xf]
    %v442 = vld [vmem:[%s4 + $0x10] sm:$0xf]
    %v443 = vld [vmem:[%s4 + $0x14] sm:$0xf]
    %v444 = vld [vmem:[%s4 + $0x18] sm:$0xf]
    %v445 = vld [vmem:[%s4 + $0x1c] sm:$0xf]
    %v446 = vld [vmem:[%s4 + $0x20] sm:$0xf]
    %v447 = vld [vmem:[%s4 + $0x24] sm:$0xf]
    %v448 = vld [vmem:[%s4 + $0x28] sm:$0xf]
    %v449 = vld [vmem:[%s4 + $0x2c] sm:$0xf]
    %v450 = vld [vmem:[%s4 + $0x30] sm:$0xf]
    %v451 = vld [vmem:[%s4 + $0x34] sm:$0xf]
    %v452 = vld [vmem:[%s4 + $0x38] sm:$0xf]
    %v453 = vld [vmem:[%s4 + $0x3c] sm:$0xf]
    %v454 = vld [vmem:[%s5] sm:$0x1]
    %v456 = vperm.slane %v454, 0
    %v474 = vunpack.c.l.b16 %v438
    %v475 = vunpack.c.l.b16 %v439
    %v476 = vunpack.c.l.b16 %v440
    %v477 = vunpack.c.l.b16 %v441
    %v478 = vunpack.c.l.b16 %v442
    %v479 = vunpack.c.l.b16 %v443
    %v480 = vunpack.c.l.b16 %v444
    %v481 = vunpack.c.l.b16 %v445
    %v482 = vunpack.c.l.b16 %v446
    %v483 = vunpack.c.l.b16 %v447
    %v484 = vunpack.c.l.b16 %v448
    %v485 = vunpack.c.l.b16 %v449
    %v486 = vunpack.c.l.b16 %v450
    %v487 = vunpack.c.l.b16 %v451
    %v488 = vunpack.c.l.b16 %v452
    %v489 = vunpack.c.l.b16 %v453
    %v490 = vpack.c.b16 %v475, %v474
    %v491 = vpack.c.b16 %v477, %v476
    %v492 = vpack.c.b16 %v479, %v478
    %v493 = vpack.c.b16 %v481, %v480
    %v494 = vpack.c.b16 %v483, %v482
    %v495 = vpack.c.b16 %v485, %v484
    %v496 = vpack.c.b16 %v487, %v486
    %v497 = vpack.c.b16 %v489, %v488
    %506 = vmatpush.bf16.msra.mxu0 %v497
    %507 = vmatpush.bf16.msra.mxu0 %v496
    %508 = vmatpush.bf16.msra.mxu0 %v495
    %509 = vmatpush.bf16.msra.mxu0 %v494
    %510 = vmatpush.bf16.msra.mxu0 %v493
    %511 = vmatpush.bf16.msra.mxu0 %v492
    %512 = vmatpush.bf16.msra.mxu0 %v491
    %513 = vmatpush.bf16.msra.mxu0 %v490
    %514 = vmatmul.bf16.gmra.mxu0 %v437
    %v515 = vpop.f32.mrf.mxu0
    %v516 = vadd.f32 %v456, %v515
    %v517 = vpop.f32.mrf.mxu0
    %v518 = vadd.f32 %v456, %v517
    %519 = vdwg.mxu0
    %v520 = vsel %vm28, %v516, -inf
    %v521 = vsel %vm28, %v518, -inf
    %522 = vmax.xlane.f32.xlu0 %v520
    %v523 = vpop.xlane.xlu0 %522
    %524 = vmax.xlane.f32.xlu0 %v521
    %v525 = vpop.xlane.xlu0 %524
    %v526 = vsub.f32 %v520, %v523
    %v527 = vsub.f32 %v521, %v525
    %v528 = vmul.f32 %v526, 1.442695
    %v529 = vpow.pop %v528
    %v530 = vmul.f32 %v527, 1.442695
    %v531 = vpow.pop %v530
    %v532 = vsel %vm28, %v529, 0.0
    %v533 = vsel %vm28, %v531, 0.0
    %534 = vadd.xlane.f32.xlu0 %v532
    %v535 = vpop.xlane.xlu0 %534
    %536 = vadd.xlane.f32.xlu0 %v533
    %v537 = vpop.xlane.xlu0 %536
    %v538 = vrcp.pop %v535
    %v539 = vrcp.pop %v537
    %v540 = vmul.f32 %v532, %v538
    %v541 = vmul.f32 %v533, %v539
    %v542 = vsel %vm28, %v540, %v516
    %v543 = vsel %vm28, %v541, %v518
    %s544 = smul.u32 %s34, 16
    %s545 = scalar_lea.vmem %s6, %s544
    %546 = vst [vmem:[%s545] sm:$0xff] %v542
    %547 = vst [vmem:[%s545 + $0x8] sm:$0xff] %v543
  $region30: #{atari_lstm_forward.5} parent=0 // loop_footer
    %s38 = sadd.s32 1, %s34
  $region31: #{atari_lstm_forward.5} parent=0 // loop_footer_branch
    %33 = sbr.rel target = $region27
  $region32: #{atari_lstm_forward.5} parent=0 // loop_exit
    _
  %548 = vst [vmem:[%s7] sm:$0xff] %v39
  %549 = vst [vmem:[%s7 + $0x8] sm:$0xff] %v40
  %550 = vst [vmem:[%s8] sm:$0xff] %v41
  %551 = vst [vmem:[%s8 + $0x8] sm:$0xff] %v42
  // Predicated region
  $region33: #{atari_lstm_forward.5} parent=0 // pred_check
    _
  $region34: #{atari_lstm_forward.5} parent=0 // pred_check_branch
    %553 = sbr.rel (0) target = $region36
  $region35: #{atari_lstm_forward.5} parent=0 // pred_region
    _
  $region36: #{atari_lstm_forward.5} parent=0 // pred_fallthru
    _
  // Predicated region
  $region37: #{atari_lstm_forward.5} parent=0 // pred_check
    _
  $region38: #{atari_lstm_forward.5} parent=0 // pred_check_branch
    %555 = sbr.rel (0) target = $region40
  $region39: #{atari_lstm_forward.5} parent=0 // pred_region
    _
  $region40: #{atari_lstm_forward.5} parent=0 // pred_fallthru
    _
  // Predicated region
  $region41: #{atari_lstm_forward.5} parent=0 // pred_check
    _
  $region42: #{atari_lstm_forward.5} parent=0 // pred_check_branch
    %557 = sbr.rel (0) target = $region44
  $region43: #{atari_lstm_forward.5} parent=0 // pred_region
    _
  $region44: #{atari_lstm_forward.5} parent=0 // pred_fallthru
    _
  // Predicated region
  $region45: #{atari_lstm_forward.5} parent=0 // pred_check
    _
  $region46: #{atari_lstm_forward.5} parent=0 // pred_check_branch
    %559 = sbr.rel (0) target = $region48
  $region47: #{atari_lstm_forward.5} parent=0 // pred_region
    _
  $region48: #{atari_lstm_forward.5} parent=0 // pred_fallthru
    _
  // Predicated region
  $region49: #{atari_lstm_forward.5} parent=0 // pred_check
    _
  $region50: #{atari_lstm_forward.5} parent=0 // pred_check_branch
    %561 = sbr.rel (0) target = $region52
  $region51: #{atari_lstm_forward.5} parent=0 // pred_region
    _
  $region52: #{atari_lstm_forward.5} parent=0 // pred_fallthru
    _
  // Predicated region
  $region53: #{atari_lstm_forward.5} parent=0 // pred_check
    _
  $region54: #{atari_lstm_forward.5} parent=0 // pred_check_branch
    %563 = sbr.rel (0) target = $region56
  $region55: #{atari_lstm_forward.5} parent=0 // pred_region
    _
  $region56: #{atari_lstm_forward.5} parent=0 // pred_fallthru
    _

</llo_original>
